<compile_context>
chip_gen: v6e
topology: v6e:2x2x1
jax: 0.10.0
libtpu: 0.0.40
codegen_flags: <defaults>
</compile_context>

<pallas_src>
import math

import jax
import jax.numpy as jnp
from jax.experimental import pallas as pl
from jax.experimental.pallas import tpu as pltpu

LANE = 128  # padded feature width for every activation / weight dim


def _make_kernel(B, T, DM, NHEAD, L, S_PAD, DMP):
    S = T + 1                      # real sequence length (CLS + tokens)
    HP = DMP // NHEAD              # padded per-head dim (32)
    R = B * S_PAD
    EPS = 1e-5                     # torch LayerNorm default
    NEG = -1e30                    # key-padding mask value
    bf16 = jnp.bfloat16

    def kernel(x_ref, wl_ref, bl_ref, wh_ref, bh_ref, z_ref):

        def mm(a_bf, w_bf, b=None):
            # bf16 operands, f32 accumulation on the MXU.
            o = jnp.dot(a_bf, w_bf, preferred_element_type=jnp.float32)
            return o if b is None else o + b

        # feature mask: real d_model columns of the 128-lane padded stream
        fmask = (jax.lax.broadcasted_iota(jnp.int32, (1, DMP), 1) < DM
                 ).astype(jnp.float32)

        def layer_norm(v, g, b):
            # stats over the true DM columns only (padded cols are exactly 0)
            mu = jnp.sum(v, axis=-1, keepdims=True) * (1.0 / DM)
            vc = (v - mu) * fmask
            var = jnp.sum(vc * vc, axis=-1, keepdims=True) * (1.0 / DM)
            return vc * jax.lax.rsqrt(var + EPS) * g + b

        def gelu(v):
            # TODO(synk): tanh-approximate GELU (EUP tanh); torch F.gelu uses
            # exact erf (~1e-3 abs deviation).
            c = 0.7978845608028654
            return 0.5 * v * (1.0 + jnp.tanh(c * (v + 0.044715 * v * v * v)))

        # ---- input projection: (B*T, 128) @ (128, 128) ----
        proj = mm(x_ref[...].astype(bf16), wh_ref[:, 0:DMP], bh_ref[1:2, :])

        # ---- sequence assembly in registers: [CLS | tokens | zero pad rows]
        cls = bh_ref[0:1, :].reshape(1, 1, DMP)
        pieces = [jnp.broadcast_to(cls, (B, 1, DMP)), proj.reshape(B, T, DMP)]
        if S_PAD > S:
            pieces.append(jnp.zeros((B, S_PAD - S, DMP), jnp.float32))
        s2 = jnp.concatenate(pieces, axis=1).reshape(R, DMP)      # (R, 128)

        # key-padding mask: padded key columns -> -1e30 before softmax
        kcol = jax.lax.broadcasted_iota(jnp.int32, (1, S_PAD, S_PAD), 2)
        kmask = jnp.where(kcol < S, 0.0, NEG).astype(jnp.float32)

        # ---- transformer encoder layers (post-norm, GELU, no dropout) ----
        for l in range(L):
            # fused QKV projection (1/sqrt(head_dim) pre-folded into wq/bq)
            s2_bf = s2.astype(bf16)
            qkv = mm(s2_bf, wl_ref[l, :, 0:3 * DMP])              # (R, 384)
            q_all = (qkv[:, 0:DMP] + bl_ref[l, 0:1, :]).astype(bf16)
            k_all = (qkv[:, DMP:2 * DMP] + bl_ref[l, 1:2, :]).astype(bf16)
            v_all = (qkv[:, 2 * DMP:3 * DMP] + bl_ref[l, 2:3, :]).astype(bf16)

            ctx_parts = []
            for h in range(NHEAD):
                sl = slice(h * HP, (h + 1) * HP)
                q_h = q_all[:, sl].reshape(B, S_PAD, HP)          # no transpose
                k_h = k_all[:, sl].reshape(B, S_PAD, HP)
                v_h = v_all[:, sl].reshape(B, S_PAD, HP)
                sc = jnp.einsum('bqd,bkd->bqk', q_h, k_h,
                                preferred_element_type=jnp.float32) + kmask
                sc = sc - jnp.max(sc, axis=-1, keepdims=True)
                p = jnp.exp(sc)
                p = p * pl.reciprocal(jnp.sum(p, axis=-1, keepdims=True),
                                      approx=True)
                ctx_parts.append(
                    jnp.einsum('bqk,bkd->bqd', p.astype(bf16), v_h,
                               preferred_element_type=jnp.float32))
            ctx = jnp.concatenate(ctx_parts, axis=-1).reshape(R, DMP)

            sa = mm(ctx.astype(bf16), wl_ref[l, :, 3 * DMP:4 * DMP],
                    bl_ref[l, 3:4, :])
            s2 = layer_norm(s2 + sa, bl_ref[l, 6:7, :], bl_ref[l, 7:8, :])

            ff = gelu(mm(s2.astype(bf16), wl_ref[l, :, 4 * DMP:5 * DMP],
                         bl_ref[l, 4:5, :]))
            ff = mm(ff.astype(bf16), wl_ref[l, :, 5 * DMP:6 * DMP],
                    bl_ref[l, 5:6, :])
            s2 = layer_norm(s2 + ff, bl_ref[l, 8:9, :], bl_ref[l, 9:10, :])

        # ---- CLS readout + projection head ----
        cls_out = s2.reshape(B, S_PAD, DMP)[:, 0, :]              # (B, 128)
        h1 = jnp.maximum(
            mm(cls_out.astype(bf16), wh_ref[:, DMP:2 * DMP], bh_ref[2:3, :]),
            0.0)
        z_ref[...] = mm(h1.astype(bf16), wh_ref[:, 2 * DMP:3 * DMP],
                        bh_ref[3:4, :])

    return kernel


def _pack_params(p, *, d_in, d_model, nhead, num_layers, dff, proj_dim):
    """Pad every feature dim to 128 lanes and pack the 24 params into 4 slabs."""
    DM, L, HD = d_model, num_layers, d_model // nhead
    dmp = dffp = dinp = projp = LANE
    HP = dmp // nhead
    scale = 1.0 / math.sqrt(HD)                 # folded into wq / bq

    def pad2(w, rows, cols):
        return jnp.pad(w, ((0, rows - w.shape[0]), (0, cols - w.shape[1])))

    def head_cols(w):           # (DM, DM) -> (dmp, dmp), head-major out cols
        w = w.reshape(DM, nhead, HD)
        w = jnp.pad(w, ((0, dmp - DM), (0, 0), (0, HP - HD)))
        return w.reshape(dmp, dmp)

    def head_rows(w):           # (DM, DM) -> (dmp, dmp), head-major in rows
        w = w.reshape(nhead, HD, DM)
        w = jnp.pad(w, ((0, 0), (0, HP - HD), (0, dmp - DM)))
        return w.reshape(dmp, dmp)

    def head_bias(b):           # (1, DM) -> (1, dmp), head-major
        b = b.reshape(1, nhead, HD)
        b = jnp.pad(b, ((0, 0), (0, 0), (0, HP - HD)))
        return b.reshape(1, dmp)

    wl, bl = [], []
    for l in range(L):
        wl.append(jnp.concatenate([
            head_cols(p['wq'][l] * scale), head_cols(p['wk'][l]),
            head_cols(p['wv'][l]), head_rows(p['wo'][l]),
            pad2(p['w1'][l], dmp, dffp), pad2(p['w2'][l], dffp, dmp)], axis=1))
        bl.append(jnp.concatenate([
            head_bias(p['bq'][l] * scale), head_bias(p['bk'][l]),
            head_bias(p['bv'][l]), pad2(p['bo'][l], 1, dmp),
            pad2(p['b1'][l], 1, dffp), pad2(p['b2'][l], 1, dmp),
            pad2(p['g1'][l], 1, dmp), pad2(p['be1'][l], 1, dmp),
            pad2(p['g2'][l], 1, dmp), pad2(p['be2'][l], 1, dmp)], axis=0))
    wlyr = jnp.stack(wl).astype(jnp.bfloat16)          # (L, 128, 768)
    blyr = jnp.stack(bl).astype(jnp.float32)           # (L, 10, 128)

    whead = jnp.concatenate([
        pad2(p['wp'], dinp, dmp), pad2(p['wh1'], dmp, dmp),
        pad2(p['wh2'], dmp, projp)], axis=1).astype(jnp.bfloat16)  # (128, 384)
    bhead = jnp.concatenate([
        pad2(p['cls'], 1, dmp), pad2(p['bp'], 1, dmp),
        pad2(p['bh1'], 1, dmp), pad2(p['bh2'], 1, projp)],
        axis=0).astype(jnp.float32)                                 # (4, 128)
    return wlyr, blyr, whead, bhead


def simclr_forward(x, params, *, d_model, nhead, num_layers, dff, proj_dim):
    B, T, d_in = x.shape
    assert d_model % nhead == 0 and LANE % nhead == 0
    assert (LANE // nhead) >= (d_model // nhead)
    assert max(d_model, dff, d_in, proj_dim) <= LANE
    S_pad = max(8, ((T + 1 + 7) // 8) * 8)     # sequence to a sublane multiple

    wlyr, blyr, whead, bhead = _pack_params(
        params, d_in=d_in, d_model=d_model, nhead=nhead,
        num_layers=num_layers, dff=dff, proj_dim=proj_dim)

    # zero-pad token features to 128 lanes and flatten tokens (glue only)
    x2 = jnp.pad(x.astype(jnp.float32),
                 ((0, 0), (0, 0), (0, LANE - d_in))).reshape(B * T, LANE)

    kernel = _make_kernel(B, T, d_model, nhead, num_layers, S_pad, LANE)
    vmem = pl.BlockSpec(memory_space=pltpu.MemorySpace.VMEM)
    # Single gridless program: total VMEM footprint ~0.5 MiB.  For large B on
    # v7x, switch to grid=(pl.cdiv(B, bt),), dimension_semantics=("parallel",).
    z = pl.pallas_call(
        kernel,
        out_shape=jax.ShapeDtypeStruct((B, LANE), jnp.float32),
        in_specs=[vmem] * 5,
        out_specs=vmem,
    )(x2, wlyr, blyr, whead, bhead)
    return z[:, :proj_dim]


def init_params(key, d_in, d_model, num_layers, dff, proj_dim):
    ks = jax.random.split(key, 20)

    def nrm(k, shape, scale=0.05):
        return (scale * jax.random.normal(k, shape)).astype(jnp.float32)

    L, dm = num_layers, d_model
    return dict(
        cls=nrm(ks[0], (1, dm), 1.0),                    # torch.randn(1,1,dm)
        wp=nrm(ks[1], (d_in, dm)),  bp=nrm(ks[2], (1, dm)),
        wq=nrm(ks[3], (L, dm, dm)),  bq=nrm(ks[4], (L, 1, dm)),
        wk=nrm(ks[5], (L, dm, dm)),  bk=nrm(ks[6], (L, 1, dm)),
        wv=nrm(ks[7], (L, dm, dm)),  bv=nrm(ks[8], (L, 1, dm)),
        wo=nrm(ks[9], (L, dm, dm)),  bo=nrm(ks[10], (L, 1, dm)),
        w1=nrm(ks[11], (L, dm, dff)), b1=nrm(ks[12], (L, 1, dff)),
        w2=nrm(ks[13], (L, dff, dm)), b2=nrm(ks[14], (L, 1, dm)),
        g1=jnp.ones((L, 1, dm), jnp.float32),  be1=jnp.zeros((L, 1, dm), jnp.float32),
        g2=jnp.ones((L, 1, dm), jnp.float32),  be2=jnp.zeros((L, 1, dm), jnp.float32),
        wh1=nrm(ks[15], (dm, dm)),       bh1=nrm(ks[16], (1, dm)),
        wh2=nrm(ks[17], (dm, proj_dim)), bh2=nrm(ks[18], (1, proj_dim)),
    )


if __name__ == "__main__":
    # Walker2d-ish token dims, small transformer config.
    STATE_DIM, ACTION_DIM = 17, 6
    D_IN = STATE_DIM + ACTION_DIM            # 23
    D_MODEL, NHEAD, NUM_LAYERS = 32, 4, 2
    DFF, PROJ_DIM = 64, 128
    B, T = 2, 8                              # batch, tokens per task

    key = jax.random.PRNGKey(0)
    kx, kp = jax.random.split(key)
    task_tokens_batch = jax.random.normal(kx, (B, T, D_IN), jnp.float32)
    params = init_params(kp, D_IN, D_MODEL, NUM_LAYERS, DFF, PROJ_DIM)

    z = simclr_forward(task_tokens_batch, params,
                       d_model=D_MODEL, nhead=NHEAD, num_layers=NUM_LAYERS,
                       dff=DFF, proj_dim=PROJ_DIM)
    jax.block_until_ready(z)
    assert z.shape == (B, PROJ_DIM) and bool(jnp.all(jnp.isfinite(z)))
    print("KERNEL_OK")
</pallas_src>

<mosaic_0001>
module attributes {stable_mosaic.version = 11 : i64} {
  func.func @kernel(%arg0: memref<16x128xf32, #tpu.memory_space<vmem>>, %arg1: memref<2x128x768xbf16, #tpu.memory_space<vmem>>, %arg2: memref<2x10x128xf32, #tpu.memory_space<vmem>>, %arg3: memref<128x384xbf16, #tpu.memory_space<vmem>>, %arg4: memref<4x128xf32, #tpu.memory_space<vmem>>, %arg5: memref<2x128xf32, #tpu.memory_space<vmem>>) attributes {dimension_semantics = [], scalar_prefetch = 0 : i64, scratch_operands = 0 : i64, tpu.core_type = #tpu.core_type<tc>} {
    %0 = tpu.iota {dimensions = array<i32: 1>} : vector<1x128xi32>
    %c32_i32 = arith.constant 32 : i32
    %1 = vector.broadcast %c32_i32 : i32 to vector<1x128xi32>
    %2 = arith.cmpi slt, %0, %1 : vector<1x128xi32>
    %3 = arith.extui %2 : vector<1x128xi1> to vector<1x128xi32>
    %4 = arith.sitofp %3 : vector<1x128xi32> to vector<1x128xf32>
    %c0 = arith.constant 0 : index
    %c0_0 = arith.constant 0 : index
    %5 = vector.load %arg0[%c0, %c0_0] : memref<16x128xf32, #tpu.memory_space<vmem>>, vector<16x128xf32>
    %6 = arith.truncf %5 : vector<16x128xf32> to vector<16x128xbf16>
    %c0_1 = arith.constant 0 : index
    %c0_2 = arith.constant 0 : index
    %7 = vector.load %arg3[%c0_1, %c0_2] : memref<128x384xbf16, #tpu.memory_space<vmem>>, vector<128x128xbf16>
    %c1 = arith.constant 1 : index
    %c0_3 = arith.constant 0 : index
    %8 = vector.load %arg4[%c1, %c0_3] : memref<4x128xf32, #tpu.memory_space<vmem>>, vector<1x128xf32>
    %cst = arith.constant dense<0.000000e+00> : vector<16x128xf32>
    %9 = tpu.matmul %6, %7, %cst {dimension_numbers = #tpu.dot_dimension_numbers<[1], [0], [0], [1], [0, 0, 1, 1], [], []>} : vector<16x128xbf16>, vector<128x128xbf16>, vector<16x128xf32> -> vector<16x128xf32>
    %10 = vector.broadcast %8 : vector<1x128xf32> to vector<16x128xf32>
    %11 = arith.addf %9, %10 : vector<16x128xf32>
    %c0_4 = arith.constant 0 : index
    %c0_5 = arith.constant 0 : index
    %12 = vector.load %arg4[%c0_4, %c0_5] : memref<4x128xf32, #tpu.memory_space<vmem>>, vector<1x128xf32>
    %13 = vector.shape_cast %12 : vector<1x128xf32> to vector<1x1x128xf32>
    %14 = vector.shape_cast %13 : vector<1x1x128xf32> to vector<1x1x128xf32>
    %15 = vector.broadcast %14 : vector<1x1x128xf32> to vector<2x1x128xf32>
    %16 = vector.shape_cast %11 : vector<16x128xf32> to vector<2x8x128xf32>
    %cst_6 = arith.constant 0.000000e+00 : f32
    %17 = vector.broadcast %cst_6 : f32 to vector<2x7x128xf32>
    %18 = tpu.concatenate %15, %16, %17 in 1 : vector<2x1x128xf32>, vector<2x8x128xf32>, vector<2x7x128xf32> -> vector<2x16x128xf32>
    %19 = vector.shape_cast %18 : vector<2x16x128xf32> to vector<32x128xf32>
    %20 = tpu.iota {dimensions = array<i32: 2>} : vector<1x16x16xi32>
    %c9_i32 = arith.constant 9 : i32
    %21 = vector.broadcast %c9_i32 : i32 to vector<1x16x16xi32>
    %22 = arith.cmpi slt, %20, %21 : vector<1x16x16xi32>
    %cst_7 = arith.constant 0.000000e+00 : f32
    %cst_8 = arith.constant -1.000000e+30 : f32
    %23 = vector.broadcast %cst_7 : f32 to vector<1x16x16xf32>
    %24 = vector.broadcast %cst_8 : f32 to vector<1x16x16xf32>
    %25 = arith.select %22, %23, %24 : vector<1x16x16xi1>, vector<1x16x16xf32>
    %26 = arith.truncf %19 : vector<32x128xf32> to vector<32x128xbf16>
    %c0_9 = arith.constant 0 : index
    %c0_10 = arith.constant 0 : index
    %c0_11 = arith.constant 0 : index
    %27 = vector.load %arg1[%c0_9, %c0_10, %c0_11] : memref<2x128x768xbf16, #tpu.memory_space<vmem>>, vector<1x128x384xbf16>
    %28 = vector.shape_cast %27 : vector<1x128x384xbf16> to vector<128x384xbf16>
    %cst_12 = arith.constant dense<0.000000e+00> : vector<32x384xf32>
    %29 = tpu.matmul %26, %28, %cst_12 {dimension_numbers = #tpu.dot_dimension_numbers<[1], [0], [0], [1], [0, 0, 1, 1], [], []>} : vector<32x128xbf16>, vector<128x384xbf16>, vector<32x384xf32> -> vector<32x384xf32>
    %30 = vector.extract_strided_slice %29 {offsets = [0, 0], sizes = [32, 128], strides = [1, 1]} : vector<32x384xf32> to vector<32x128xf32>
    %c0_13 = arith.constant 0 : index
    %c0_14 = arith.constant 0 : index
    %c0_15 = arith.constant 0 : index
    %31 = vector.load %arg2[%c0_13, %c0_14, %c0_15] : memref<2x10x128xf32, #tpu.memory_space<vmem>>, vector<1x1x128xf32>
    %32 = vector.shape_cast %31 : vector<1x1x128xf32> to vector<1x128xf32>
    %33 = vector.broadcast %32 : vector<1x128xf32> to vector<32x128xf32>
    %34 = arith.addf %30, %33 : vector<32x128xf32>
    %35 = arith.truncf %34 : vector<32x128xf32> to vector<32x128xbf16>
    %36 = vector.extract_strided_slice %29 {offsets = [0, 128], sizes = [32, 128], strides = [1, 1]} : vector<32x384xf32> to vector<32x128xf32>
    %c0_16 = arith.constant 0 : index
    %c1_17 = arith.constant 1 : index
    %c0_18 = arith.constant 0 : index
    %37 = vector.load %arg2[%c0_16, %c1_17, %c0_18] : memref<2x10x128xf32, #tpu.memory_space<vmem>>, vector<1x1x128xf32>
    %38 = vector.shape_cast %37 : vector<1x1x128xf32> to vector<1x128xf32>
    %39 = vector.broadcast %38 : vector<1x128xf32> to vector<32x128xf32>
    %40 = arith.addf %36, %39 : vector<32x128xf32>
    %41 = arith.truncf %40 : vector<32x128xf32> to vector<32x128xbf16>
    %42 = vector.extract_strided_slice %29 {offsets = [0, 256], sizes = [32, 128], strides = [1, 1]} : vector<32x384xf32> to vector<32x128xf32>
    %c0_19 = arith.constant 0 : index
    %c2 = arith.constant 2 : index
    %c0_20 = arith.constant 0 : index
    %43 = vector.load %arg2[%c0_19, %c2, %c0_20] : memref<2x10x128xf32, #tpu.memory_space<vmem>>, vector<1x1x128xf32>
    %44 = vector.shape_cast %43 : vector<1x1x128xf32> to vector<1x128xf32>
    %45 = vector.broadcast %44 : vector<1x128xf32> to vector<32x128xf32>
    %46 = arith.addf %42, %45 : vector<32x128xf32>
    %47 = arith.truncf %46 : vector<32x128xf32> to vector<32x128xbf16>
    %48 = vector.extract_strided_slice %35 {offsets = [0, 0], sizes = [32, 32], strides = [1, 1]} : vector<32x128xbf16> to vector<32x32xbf16>
    %49 = vector.shape_cast %48 : vector<32x32xbf16> to vector<2x16x32xbf16>
    %50 = vector.extract_strided_slice %41 {offsets = [0, 0], sizes = [32, 32], strides = [1, 1]} : vector<32x128xbf16> to vector<32x32xbf16>
    %51 = vector.shape_cast %50 : vector<32x32xbf16> to vector<2x16x32xbf16>
    %52 = vector.extract_strided_slice %47 {offsets = [0, 0], sizes = [32, 32], strides = [1, 1]} : vector<32x128xbf16> to vector<32x32xbf16>
    %53 = vector.shape_cast %52 : vector<32x32xbf16> to vector<2x16x32xbf16>
    "tpu.trace_start"() <{level = 10 : i32, message = "bqd,bkd->bqk"}> : () -> ()
    %cst_21 = arith.constant dense<0.000000e+00> : vector<2x16x16xf32>
    %54 = tpu.matmul %49, %51, %cst_21 {dimension_numbers = #tpu.dot_dimension_numbers<[2], [2], [1], [1], [0, 0, 0, 1, 1, 1], [0], [0]>} : vector<2x16x32xbf16>, vector<2x16x32xbf16>, vector<2x16x16xf32> -> vector<2x16x16xf32>
    "tpu.trace_stop"() : () -> ()
    %55 = vector.broadcast %25 : vector<1x16x16xf32> to vector<2x16x16xf32>
    %56 = arith.addf %54, %55 : vector<2x16x16xf32>
    %cst_22 = arith.constant dense<0xFF800000> : vector<2x16xf32>
    %57 = vector.multi_reduction <maximumf>, %56, %cst_22 [2] : vector<2x16x16xf32> to vector<2x16xf32>
    %58 = vector.shape_cast %57 : vector<2x16xf32> to vector<2x16x1xf32>
    %59 = vector.broadcast %58 : vector<2x16x1xf32> to vector<2x16x16xf32>
    %60 = arith.subf %56, %59 : vector<2x16x16xf32>
    %61 = math.exp %60 : vector<2x16x16xf32>
    %cst_23 = arith.constant dense<0.000000e+00> : vector<2x16xf32>
    %62 = vector.multi_reduction <add>, %61, %cst_23 [2] : vector<2x16x16xf32> to vector<2x16xf32>
    %63 = vector.shape_cast %62 : vector<2x16xf32> to vector<2x16x1xf32>
    %64 = tpu.reciprocal %63 {approx = true} : vector<2x16x1xf32> -> vector<2x16x1xf32>
    %65 = vector.broadcast %64 : vector<2x16x1xf32> to vector<2x16x16xf32>
    %66 = arith.mulf %61, %65 : vector<2x16x16xf32>
    %67 = arith.truncf %66 : vector<2x16x16xf32> to vector<2x16x16xbf16>
    "tpu.trace_start"() <{level = 10 : i32, message = "bqk,bkd->bqd"}> : () -> ()
    %cst_24 = arith.constant dense<0.000000e+00> : vector<2x16x32xf32>
    %68 = tpu.matmul %67, %53, %cst_24 {dimension_numbers = #tpu.dot_dimension_numbers<[2], [1], [1], [2], [0, 0, 0, 1, 1, 2], [0], [0]>} : vector<2x16x16xbf16>, vector<2x16x32xbf16>, vector<2x16x32xf32> -> vector<2x16x32xf32>
    "tpu.trace_stop"() : () -> ()
    %69 = vector.extract_strided_slice %35 {offsets = [0, 32], sizes = [32, 32], strides = [1, 1]} : vector<32x128xbf16> to vector<32x32xbf16>
    %70 = vector.shape_cast %69 : vector<32x32xbf16> to vector<2x16x32xbf16>
    %71 = vector.extract_strided_slice %41 {offsets = [0, 32], sizes = [32, 32], strides = [1, 1]} : vector<32x128xbf16> to vector<32x32xbf16>
    %72 = vector.shape_cast %71 : vector<32x32xbf16> to vector<2x16x32xbf16>
    %73 = vector.extract_strided_slice %47 {offsets = [0, 32], sizes = [32, 32], strides = [1, 1]} : vector<32x128xbf16> to vector<32x32xbf16>
    %74 = vector.shape_cast %73 : vector<32x32xbf16> to vector<2x16x32xbf16>
    "tpu.trace_start"() <{level = 10 : i32, message = "bqd,bkd->bqk"}> : () -> ()
    %cst_25 = arith.constant dense<0.000000e+00> : vector<2x16x16xf32>
    %75 = tpu.matmul %70, %72, %cst_25 {dimension_numbers = #tpu.dot_dimension_numbers<[2], [2], [1], [1], [0, 0, 0, 1, 1, 1], [0], [0]>} : vector<2x16x32xbf16>, vector<2x16x32xbf16>, vector<2x16x16xf32> -> vector<2x16x16xf32>
    "tpu.trace_stop"() : () -> ()
    %76 = vector.broadcast %25 : vector<1x16x16xf32> to vector<2x16x16xf32>
    %77 = arith.addf %75, %76 : vector<2x16x16xf32>
    %cst_26 = arith.constant dense<0xFF800000> : vector<2x16xf32>
    %78 = vector.multi_reduction <maximumf>, %77, %cst_26 [2] : vector<2x16x16xf32> to vector<2x16xf32>
    %79 = vector.shape_cast %78 : vector<2x16xf32> to vector<2x16x1xf32>
    %80 = vector.broadcast %79 : vector<2x16x1xf32> to vector<2x16x16xf32>
    %81 = arith.subf %77, %80 : vector<2x16x16xf32>
    %82 = math.exp %81 : vector<2x16x16xf32>
    %cst_27 = arith.constant dense<0.000000e+00> : vector<2x16xf32>
    %83 = vector.multi_reduction <add>, %82, %cst_27 [2] : vector<2x16x16xf32> to vector<2x16xf32>
    %84 = vector.shape_cast %83 : vector<2x16xf32> to vector<2x16x1xf32>
    %85 = tpu.reciprocal %84 {approx = true} : vector<2x16x1xf32> -> vector<2x16x1xf32>
    %86 = vector.broadcast %85 : vector<2x16x1xf32> to vector<2x16x16xf32>
    %87 = arith.mulf %82, %86 : vector<2x16x16xf32>
    %88 = arith.truncf %87 : vector<2x16x16xf32> to vector<2x16x16xbf16>
    "tpu.trace_start"() <{level = 10 : i32, message = "bqk,bkd->bqd"}> : () -> ()
    %cst_28 = arith.constant dense<0.000000e+00> : vector<2x16x32xf32>
    %89 = tpu.matmul %88, %74, %cst_28 {dimension_numbers = #tpu.dot_dimension_numbers<[2], [1], [1], [2], [0, 0, 0, 1, 1, 2], [0], [0]>} : vector<2x16x16xbf16>, vector<2x16x32xbf16>, vector<2x16x32xf32> -> vector<2x16x32xf32>
    "tpu.trace_stop"() : () -> ()
    %90 = vector.extract_strided_slice %35 {offsets = [0, 64], sizes = [32, 32], strides = [1, 1]} : vector<32x128xbf16> to vector<32x32xbf16>
    %91 = vector.shape_cast %90 : vector<32x32xbf16> to vector<2x16x32xbf16>
    %92 = vector.extract_strided_slice %41 {offsets = [0, 64], sizes = [32, 32], strides = [1, 1]} : vector<32x128xbf16> to vector<32x32xbf16>
    %93 = vector.shape_cast %92 : vector<32x32xbf16> to vector<2x16x32xbf16>
    %94 = vector.extract_strided_slice %47 {offsets = [0, 64], sizes = [32, 32], strides = [1, 1]} : vector<32x128xbf16> to vector<32x32xbf16>
    %95 = vector.shape_cast %94 : vector<32x32xbf16> to vector<2x16x32xbf16>
    "tpu.trace_start"() <{level = 10 : i32, message = "bqd,bkd->bqk"}> : () -> ()
    %cst_29 = arith.constant dense<0.000000e+00> : vector<2x16x16xf32>
    %96 = tpu.matmul %91, %93, %cst_29 {dimension_numbers = #tpu.dot_dimension_numbers<[2], [2], [1], [1], [0, 0, 0, 1, 1, 1], [0], [0]>} : vector<2x16x32xbf16>, vector<2x16x32xbf16>, vector<2x16x16xf32> -> vector<2x16x16xf32>
    "tpu.trace_stop"() : () -> ()
    %97 = vector.broadcast %25 : vector<1x16x16xf32> to vector<2x16x16xf32>
    %98 = arith.addf %96, %97 : vector<2x16x16xf32>
    %cst_30 = arith.constant dense<0xFF800000> : vector<2x16xf32>
    %99 = vector.multi_reduction <maximumf>, %98, %cst_30 [2] : vector<2x16x16xf32> to vector<2x16xf32>
    %100 = vector.shape_cast %99 : vector<2x16xf32> to vector<2x16x1xf32>
    %101 = vector.broadcast %100 : vector<2x16x1xf32> to vector<2x16x16xf32>
    %102 = arith.subf %98, %101 : vector<2x16x16xf32>
    %103 = math.exp %102 : vector<2x16x16xf32>
    %cst_31 = arith.constant dense<0.000000e+00> : vector<2x16xf32>
    %104 = vector.multi_reduction <add>, %103, %cst_31 [2] : vector<2x16x16xf32> to vector<2x16xf32>
    %105 = vector.shape_cast %104 : vector<2x16xf32> to vector<2x16x1xf32>
    %106 = tpu.reciprocal %105 {approx = true} : vector<2x16x1xf32> -> vector<2x16x1xf32>
    %107 = vector.broadcast %106 : vector<2x16x1xf32> to vector<2x16x16xf32>
    %108 = arith.mulf %103, %107 : vector<2x16x16xf32>
    %109 = arith.truncf %108 : vector<2x16x16xf32> to vector<2x16x16xbf16>
    "tpu.trace_start"() <{level = 10 : i32, message = "bqk,bkd->bqd"}> : () -> ()
    %cst_32 = arith.constant dense<0.000000e+00> : vector<2x16x32xf32>
    %110 = tpu.matmul %109, %95, %cst_32 {dimension_numbers = #tpu.dot_dimension_numbers<[2], [1], [1], [2], [0, 0, 0, 1, 1, 2], [0], [0]>} : vector<2x16x16xbf16>, vector<2x16x32xbf16>, vector<2x16x32xf32> -> vector<2x16x32xf32>
    "tpu.trace_stop"() : () -> ()
    %111 = vector.extract_strided_slice %35 {offsets = [0, 96], sizes = [32, 32], strides = [1, 1]} : vector<32x128xbf16> to vector<32x32xbf16>
    %112 = vector.shape_cast %111 : vector<32x32xbf16> to vector<2x16x32xbf16>
    %113 = vector.extract_strided_slice %41 {offsets = [0, 96], sizes = [32, 32], strides = [1, 1]} : vector<32x128xbf16> to vector<32x32xbf16>
    %114 = vector.shape_cast %113 : vector<32x32xbf16> to vector<2x16x32xbf16>
    %115 = vector.extract_strided_slice %47 {offsets = [0, 96], sizes = [32, 32], strides = [1, 1]} : vector<32x128xbf16> to vector<32x32xbf16>
    %116 = vector.shape_cast %115 : vector<32x32xbf16> to vector<2x16x32xbf16>
    "tpu.trace_start"() <{level = 10 : i32, message = "bqd,bkd->bqk"}> : () -> ()
    %cst_33 = arith.constant dense<0.000000e+00> : vector<2x16x16xf32>
    %117 = tpu.matmul %112, %114, %cst_33 {dimension_numbers = #tpu.dot_dimension_numbers<[2], [2], [1], [1], [0, 0, 0, 1, 1, 1], [0], [0]>} : vector<2x16x32xbf16>, vector<2x16x32xbf16>, vector<2x16x16xf32> -> vector<2x16x16xf32>
    "tpu.trace_stop"() : () -> ()
    %118 = vector.broadcast %25 : vector<1x16x16xf32> to vector<2x16x16xf32>
    %119 = arith.addf %117, %118 : vector<2x16x16xf32>
    %cst_34 = arith.constant dense<0xFF800000> : vector<2x16xf32>
    %120 = vector.multi_reduction <maximumf>, %119, %cst_34 [2] : vector<2x16x16xf32> to vector<2x16xf32>
    %121 = vector.shape_cast %120 : vector<2x16xf32> to vector<2x16x1xf32>
    %122 = vector.broadcast %121 : vector<2x16x1xf32> to vector<2x16x16xf32>
    %123 = arith.subf %119, %122 : vector<2x16x16xf32>
    %124 = math.exp %123 : vector<2x16x16xf32>
    %cst_35 = arith.constant dense<0.000000e+00> : vector<2x16xf32>
    %125 = vector.multi_reduction <add>, %124, %cst_35 [2] : vector<2x16x16xf32> to vector<2x16xf32>
    %126 = vector.shape_cast %125 : vector<2x16xf32> to vector<2x16x1xf32>
    %127 = tpu.reciprocal %126 {approx = true} : vector<2x16x1xf32> -> vector<2x16x1xf32>
    %128 = vector.broadcast %127 : vector<2x16x1xf32> to vector<2x16x16xf32>
    %129 = arith.mulf %124, %128 : vector<2x16x16xf32>
    %130 = arith.truncf %129 : vector<2x16x16xf32> to vector<2x16x16xbf16>
    "tpu.trace_start"() <{level = 10 : i32, message = "bqk,bkd->bqd"}> : () -> ()
    %cst_36 = arith.constant dense<0.000000e+00> : vector<2x16x32xf32>
    %131 = tpu.matmul %130, %116, %cst_36 {dimension_numbers = #tpu.dot_dimension_numbers<[2], [1], [1], [2], [0, 0, 0, 1, 1, 2], [0], [0]>} : vector<2x16x16xbf16>, vector<2x16x32xbf16>, vector<2x16x32xf32> -> vector<2x16x32xf32>
    "tpu.trace_stop"() : () -> ()
    %132 = tpu.concatenate %68, %89, %110, %131 in 2 : vector<2x16x32xf32>, vector<2x16x32xf32>, vector<2x16x32xf32>, vector<2x16x32xf32> -> vector<2x16x128xf32>
    %133 = vector.shape_cast %132 : vector<2x16x128xf32> to vector<32x128xf32>
    %134 = arith.truncf %133 : vector<32x128xf32> to vector<32x128xbf16>
    %c0_37 = arith.constant 0 : index
    %c0_38 = arith.constant 0 : index
    %c384 = arith.constant 384 : index
    %135 = vector.load %arg1[%c0_37, %c0_38, %c384] : memref<2x128x768xbf16, #tpu.memory_space<vmem>>, vector<1x128x128xbf16>
    %136 = vector.shape_cast %135 : vector<1x128x128xbf16> to vector<128x128xbf16>
    %c0_39 = arith.constant 0 : index
    %c3 = arith.constant 3 : index
    %c0_40 = arith.constant 0 : index
    %137 = vector.load %arg2[%c0_39, %c3, %c0_40] : memref<2x10x128xf32, #tpu.memory_space<vmem>>, vector<1x1x128xf32>
    %138 = vector.shape_cast %137 : vector<1x1x128xf32> to vector<1x128xf32>
    %cst_41 = arith.constant dense<0.000000e+00> : vector<32x128xf32>
    %139 = tpu.matmul %134, %136, %cst_41 {dimension_numbers = #tpu.dot_dimension_numbers<[1], [0], [0], [1], [0, 0, 1, 1], [], []>} : vector<32x128xbf16>, vector<128x128xbf16>, vector<32x128xf32> -> vector<32x128xf32>
    %140 = vector.broadcast %138 : vector<1x128xf32> to vector<32x128xf32>
    %141 = arith.addf %139, %140 : vector<32x128xf32>
    %142 = arith.addf %19, %141 : vector<32x128xf32>
    %c0_42 = arith.constant 0 : index
    %c6 = arith.constant 6 : index
    %c0_43 = arith.constant 0 : index
    %143 = vector.load %arg2[%c0_42, %c6, %c0_43] : memref<2x10x128xf32, #tpu.memory_space<vmem>>, vector<1x1x128xf32>
    %144 = vector.shape_cast %143 : vector<1x1x128xf32> to vector<1x128xf32>
    %c0_44 = arith.constant 0 : index
    %c7 = arith.constant 7 : index
    %c0_45 = arith.constant 0 : index
    %145 = vector.load %arg2[%c0_44, %c7, %c0_45] : memref<2x10x128xf32, #tpu.memory_space<vmem>>, vector<1x1x128xf32>
    %146 = vector.shape_cast %145 : vector<1x1x128xf32> to vector<1x128xf32>
    %cst_46 = arith.constant dense<0.000000e+00> : vector<32xf32>
    %147 = vector.multi_reduction <add>, %142, %cst_46 [1] : vector<32x128xf32> to vector<32xf32>
    %148 = vector.shape_cast %147 : vector<32xf32> to vector<32x1xf32>
    %cst_47 = arith.constant 3.125000e-02 : f32
    %149 = vector.broadcast %cst_47 : f32 to vector<32x1xf32>
    %150 = arith.mulf %148, %149 : vector<32x1xf32>
    %151 = vector.broadcast %150 : vector<32x1xf32> to vector<32x128xf32>
    %152 = arith.subf %142, %151 : vector<32x128xf32>
    %153 = vector.broadcast %4 : vector<1x128xf32> to vector<32x128xf32>
    %154 = arith.mulf %152, %153 : vector<32x128xf32>
    %155 = arith.mulf %154, %154 : vector<32x128xf32>
    %cst_48 = arith.constant dense<0.000000e+00> : vector<32xf32>
    %156 = vector.multi_reduction <add>, %155, %cst_48 [1] : vector<32x128xf32> to vector<32xf32>
    %157 = vector.shape_cast %156 : vector<32xf32> to vector<32x1xf32>
    %cst_49 = arith.constant 3.125000e-02 : f32
    %158 = vector.broadcast %cst_49 : f32 to vector<32x1xf32>
    %159 = arith.mulf %157, %158 : vector<32x1xf32>
    %cst_50 = arith.constant 9.99999974E-6 : f32
    %160 = vector.broadcast %cst_50 : f32 to vector<32x1xf32>
    %161 = arith.addf %159, %160 : vector<32x1xf32>
    %162 = math.rsqrt %161 : vector<32x1xf32>
    %163 = vector.broadcast %162 : vector<32x1xf32> to vector<32x128xf32>
    %164 = arith.mulf %154, %163 : vector<32x128xf32>
    %165 = vector.broadcast %144 : vector<1x128xf32> to vector<32x128xf32>
    %166 = arith.mulf %164, %165 : vector<32x128xf32>
    %167 = vector.broadcast %146 : vector<1x128xf32> to vector<32x128xf32>
    %168 = arith.addf %166, %167 : vector<32x128xf32>
    %169 = arith.truncf %168 : vector<32x128xf32> to vector<32x128xbf16>
    %c0_51 = arith.constant 0 : index
    %c0_52 = arith.constant 0 : index
    %c512 = arith.constant 512 : index
    %170 = vector.load %arg1[%c0_51, %c0_52, %c512] : memref<2x128x768xbf16, #tpu.memory_space<vmem>>, vector<1x128x128xbf16>
    %171 = vector.shape_cast %170 : vector<1x128x128xbf16> to vector<128x128xbf16>
    %c0_53 = arith.constant 0 : index
    %c4 = arith.constant 4 : index
    %c0_54 = arith.constant 0 : index
    %172 = vector.load %arg2[%c0_53, %c4, %c0_54] : memref<2x10x128xf32, #tpu.memory_space<vmem>>, vector<1x1x128xf32>
    %173 = vector.shape_cast %172 : vector<1x1x128xf32> to vector<1x128xf32>
    %cst_55 = arith.constant dense<0.000000e+00> : vector<32x128xf32>
    %174 = tpu.matmul %169, %171, %cst_55 {dimension_numbers = #tpu.dot_dimension_numbers<[1], [0], [0], [1], [0, 0, 1, 1], [], []>} : vector<32x128xbf16>, vector<128x128xbf16>, vector<32x128xf32> -> vector<32x128xf32>
    %175 = vector.broadcast %173 : vector<1x128xf32> to vector<32x128xf32>
    %176 = arith.addf %174, %175 : vector<32x128xf32>
    %cst_56 = arith.constant 5.000000e-01 : f32
    %177 = vector.broadcast %cst_56 : f32 to vector<32x128xf32>
    %178 = arith.mulf %177, %176 : vector<32x128xf32>
    %cst_57 = arith.constant 4.471500e-02 : f32
    %179 = vector.broadcast %cst_57 : f32 to vector<32x128xf32>
    %180 = arith.mulf %179, %176 : vector<32x128xf32>
    %181 = arith.mulf %180, %176 : vector<32x128xf32>
    %182 = arith.mulf %181, %176 : vector<32x128xf32>
    %183 = arith.addf %176, %182 : vector<32x128xf32>
    %cst_58 = arith.constant 0.797884583 : f32
    %184 = vector.broadcast %cst_58 : f32 to vector<32x128xf32>
    %185 = arith.mulf %184, %183 : vector<32x128xf32>
    %186 = math.tanh %185 : vector<32x128xf32>
    %cst_59 = arith.constant 1.000000e+00 : f32
    %187 = vector.broadcast %cst_59 : f32 to vector<32x128xf32>
    %188 = arith.addf %187, %186 : vector<32x128xf32>
    %189 = arith.mulf %178, %188 : vector<32x128xf32>
    %190 = arith.truncf %189 : vector<32x128xf32> to vector<32x128xbf16>
    %c0_60 = arith.constant 0 : index
    %c0_61 = arith.constant 0 : index
    %c640 = arith.constant 640 : index
    %191 = vector.load %arg1[%c0_60, %c0_61, %c640] : memref<2x128x768xbf16, #tpu.memory_space<vmem>>, vector<1x128x128xbf16>
    %192 = vector.shape_cast %191 : vector<1x128x128xbf16> to vector<128x128xbf16>
    %c0_62 = arith.constant 0 : index
    %c5 = arith.constant 5 : index
    %c0_63 = arith.constant 0 : index
    %193 = vector.load %arg2[%c0_62, %c5, %c0_63] : memref<2x10x128xf32, #tpu.memory_space<vmem>>, vector<1x1x128xf32>
    %194 = vector.shape_cast %193 : vector<1x1x128xf32> to vector<1x128xf32>
    %cst_64 = arith.constant dense<0.000000e+00> : vector<32x128xf32>
    %195 = tpu.matmul %190, %192, %cst_64 {dimension_numbers = #tpu.dot_dimension_numbers<[1], [0], [0], [1], [0, 0, 1, 1], [], []>} : vector<32x128xbf16>, vector<128x128xbf16>, vector<32x128xf32> -> vector<32x128xf32>
    %196 = vector.broadcast %194 : vector<1x128xf32> to vector<32x128xf32>
    %197 = arith.addf %195, %196 : vector<32x128xf32>
    %198 = arith.addf %168, %197 : vector<32x128xf32>
    %c0_65 = arith.constant 0 : index
    %c8 = arith.constant 8 : index
    %c0_66 = arith.constant 0 : index
    %199 = vector.load %arg2[%c0_65, %c8, %c0_66] : memref<2x10x128xf32, #tpu.memory_space<vmem>>, vector<1x1x128xf32>
    %200 = vector.shape_cast %199 : vector<1x1x128xf32> to vector<1x128xf32>
    %c0_67 = arith.constant 0 : index
    %c9 = arith.constant 9 : index
    %c0_68 = arith.constant 0 : index
    %201 = vector.load %arg2[%c0_67, %c9, %c0_68] : memref<2x10x128xf32, #tpu.memory_space<vmem>>, vector<1x1x128xf32>
    %202 = vector.shape_cast %201 : vector<1x1x128xf32> to vector<1x128xf32>
    %cst_69 = arith.constant dense<0.000000e+00> : vector<32xf32>
    %203 = vector.multi_reduction <add>, %198, %cst_69 [1] : vector<32x128xf32> to vector<32xf32>
    %204 = vector.shape_cast %203 : vector<32xf32> to vector<32x1xf32>
    %cst_70 = arith.constant 3.125000e-02 : f32
    %205 = vector.broadcast %cst_70 : f32 to vector<32x1xf32>
    %206 = arith.mulf %204, %205 : vector<32x1xf32>
    %207 = vector.broadcast %206 : vector<32x1xf32> to vector<32x128xf32>
    %208 = arith.subf %198, %207 : vector<32x128xf32>
    %209 = vector.broadcast %4 : vector<1x128xf32> to vector<32x128xf32>
    %210 = arith.mulf %208, %209 : vector<32x128xf32>
    %211 = arith.mulf %210, %210 : vector<32x128xf32>
    %cst_71 = arith.constant dense<0.000000e+00> : vector<32xf32>
    %212 = vector.multi_reduction <add>, %211, %cst_71 [1] : vector<32x128xf32> to vector<32xf32>
    %213 = vector.shape_cast %212 : vector<32xf32> to vector<32x1xf32>
    %cst_72 = arith.constant 3.125000e-02 : f32
    %214 = vector.broadcast %cst_72 : f32 to vector<32x1xf32>
    %215 = arith.mulf %213, %214 : vector<32x1xf32>
    %cst_73 = arith.constant 9.99999974E-6 : f32
    %216 = vector.broadcast %cst_73 : f32 to vector<32x1xf32>
    %217 = arith.addf %215, %216 : vector<32x1xf32>
    %218 = math.rsqrt %217 : vector<32x1xf32>
    %219 = vector.broadcast %218 : vector<32x1xf32> to vector<32x128xf32>
    %220 = arith.mulf %210, %219 : vector<32x128xf32>
    %221 = vector.broadcast %200 : vector<1x128xf32> to vector<32x128xf32>
    %222 = arith.mulf %220, %221 : vector<32x128xf32>
    %223 = vector.broadcast %202 : vector<1x128xf32> to vector<32x128xf32>
    %224 = arith.addf %222, %223 : vector<32x128xf32>
    %225 = arith.truncf %224 : vector<32x128xf32> to vector<32x128xbf16>
    %c1_74 = arith.constant 1 : index
    %c0_75 = arith.constant 0 : index
    %c0_76 = arith.constant 0 : index
    %226 = vector.load %arg1[%c1_74, %c0_75, %c0_76] : memref<2x128x768xbf16, #tpu.memory_space<vmem>>, vector<1x128x384xbf16>
    %227 = vector.shape_cast %226 : vector<1x128x384xbf16> to vector<128x384xbf16>
    %cst_77 = arith.constant dense<0.000000e+00> : vector<32x384xf32>
    %228 = tpu.matmul %225, %227, %cst_77 {dimension_numbers = #tpu.dot_dimension_numbers<[1], [0], [0], [1], [0, 0, 1, 1], [], []>} : vector<32x128xbf16>, vector<128x384xbf16>, vector<32x384xf32> -> vector<32x384xf32>
    %229 = vector.extract_strided_slice %228 {offsets = [0, 0], sizes = [32, 128], strides = [1, 1]} : vector<32x384xf32> to vector<32x128xf32>
    %c1_78 = arith.constant 1 : index
    %c0_79 = arith.constant 0 : index
    %c0_80 = arith.constant 0 : index
    %230 = vector.load %arg2[%c1_78, %c0_79, %c0_80] : memref<2x10x128xf32, #tpu.memory_space<vmem>>, vector<1x1x128xf32>
    %231 = vector.shape_cast %230 : vector<1x1x128xf32> to vector<1x128xf32>
    %232 = vector.broadcast %231 : vector<1x128xf32> to vector<32x128xf32>
    %233 = arith.addf %229, %232 : vector<32x128xf32>
    %234 = arith.truncf %233 : vector<32x128xf32> to vector<32x128xbf16>
    %235 = vector.extract_strided_slice %228 {offsets = [0, 128], sizes = [32, 128], strides = [1, 1]} : vector<32x384xf32> to vector<32x128xf32>
    %c1_81 = arith.constant 1 : index
    %c1_82 = arith.constant 1 : index
    %c0_83 = arith.constant 0 : index
    %236 = vector.load %arg2[%c1_81, %c1_82, %c0_83] : memref<2x10x128xf32, #tpu.memory_space<vmem>>, vector<1x1x128xf32>
    %237 = vector.shape_cast %236 : vector<1x1x128xf32> to vector<1x128xf32>
    %238 = vector.broadcast %237 : vector<1x128xf32> to vector<32x128xf32>
    %239 = arith.addf %235, %238 : vector<32x128xf32>
    %240 = arith.truncf %239 : vector<32x128xf32> to vector<32x128xbf16>
    %241 = vector.extract_strided_slice %228 {offsets = [0, 256], sizes = [32, 128], strides = [1, 1]} : vector<32x384xf32> to vector<32x128xf32>
    %c1_84 = arith.constant 1 : index
    %c2_85 = arith.constant 2 : index
    %c0_86 = arith.constant 0 : index
    %242 = vector.load %arg2[%c1_84, %c2_85, %c0_86] : memref<2x10x128xf32, #tpu.memory_space<vmem>>, vector<1x1x128xf32>
    %243 = vector.shape_cast %242 : vector<1x1x128xf32> to vector<1x128xf32>
    %244 = vector.broadcast %243 : vector<1x128xf32> to vector<32x128xf32>
    %245 = arith.addf %241, %244 : vector<32x128xf32>
    %246 = arith.truncf %245 : vector<32x128xf32> to vector<32x128xbf16>
    %247 = vector.extract_strided_slice %234 {offsets = [0, 0], sizes = [32, 32], strides = [1, 1]} : vector<32x128xbf16> to vector<32x32xbf16>
    %248 = vector.shape_cast %247 : vector<32x32xbf16> to vector<2x16x32xbf16>
    %249 = vector.extract_strided_slice %240 {offsets = [0, 0], sizes = [32, 32], strides = [1, 1]} : vector<32x128xbf16> to vector<32x32xbf16>
    %250 = vector.shape_cast %249 : vector<32x32xbf16> to vector<2x16x32xbf16>
    %251 = vector.extract_strided_slice %246 {offsets = [0, 0], sizes = [32, 32], strides = [1, 1]} : vector<32x128xbf16> to vector<32x32xbf16>
    %252 = vector.shape_cast %251 : vector<32x32xbf16> to vector<2x16x32xbf16>
    "tpu.trace_start"() <{level = 10 : i32, message = "bqd,bkd->bqk"}> : () -> ()
    %cst_87 = arith.constant dense<0.000000e+00> : vector<2x16x16xf32>
    %253 = tpu.matmul %248, %250, %cst_87 {dimension_numbers = #tpu.dot_dimension_numbers<[2], [2], [1], [1], [0, 0, 0, 1, 1, 1], [0], [0]>} : vector<2x16x32xbf16>, vector<2x16x32xbf16>, vector<2x16x16xf32> -> vector<2x16x16xf32>
    "tpu.trace_stop"() : () -> ()
    %254 = vector.broadcast %25 : vector<1x16x16xf32> to vector<2x16x16xf32>
    %255 = arith.addf %253, %254 : vector<2x16x16xf32>
    %cst_88 = arith.constant dense<0xFF800000> : vector<2x16xf32>
    %256 = vector.multi_reduction <maximumf>, %255, %cst_88 [2] : vector<2x16x16xf32> to vector<2x16xf32>
    %257 = vector.shape_cast %256 : vector<2x16xf32> to vector<2x16x1xf32>
    %258 = vector.broadcast %257 : vector<2x16x1xf32> to vector<2x16x16xf32>
    %259 = arith.subf %255, %258 : vector<2x16x16xf32>
    %260 = math.exp %259 : vector<2x16x16xf32>
    %cst_89 = arith.constant dense<0.000000e+00> : vector<2x16xf32>
    %261 = vector.multi_reduction <add>, %260, %cst_89 [2] : vector<2x16x16xf32> to vector<2x16xf32>
    %262 = vector.shape_cast %261 : vector<2x16xf32> to vector<2x16x1xf32>
    %263 = tpu.reciprocal %262 {approx = true} : vector<2x16x1xf32> -> vector<2x16x1xf32>
    %264 = vector.broadcast %263 : vector<2x16x1xf32> to vector<2x16x16xf32>
    %265 = arith.mulf %260, %264 : vector<2x16x16xf32>
    %266 = arith.truncf %265 : vector<2x16x16xf32> to vector<2x16x16xbf16>
    "tpu.trace_start"() <{level = 10 : i32, message = "bqk,bkd->bqd"}> : () -> ()
    %cst_90 = arith.constant dense<0.000000e+00> : vector<2x16x32xf32>
    %267 = tpu.matmul %266, %252, %cst_90 {dimension_numbers = #tpu.dot_dimension_numbers<[2], [1], [1], [2], [0, 0, 0, 1, 1, 2], [0], [0]>} : vector<2x16x16xbf16>, vector<2x16x32xbf16>, vector<2x16x32xf32> -> vector<2x16x32xf32>
    "tpu.trace_stop"() : () -> ()
    %268 = vector.extract_strided_slice %234 {offsets = [0, 32], sizes = [32, 32], strides = [1, 1]} : vector<32x128xbf16> to vector<32x32xbf16>
    %269 = vector.shape_cast %268 : vector<32x32xbf16> to vector<2x16x32xbf16>
    %270 = vector.extract_strided_slice %240 {offsets = [0, 32], sizes = [32, 32], strides = [1, 1]} : vector<32x128xbf16> to vector<32x32xbf16>
    %271 = vector.shape_cast %270 : vector<32x32xbf16> to vector<2x16x32xbf16>
    %272 = vector.extract_strided_slice %246 {offsets = [0, 32], sizes = [32, 32], strides = [1, 1]} : vector<32x128xbf16> to vector<32x32xbf16>
    %273 = vector.shape_cast %272 : vector<32x32xbf16> to vector<2x16x32xbf16>
    "tpu.trace_start"() <{level = 10 : i32, message = "bqd,bkd->bqk"}> : () -> ()
    %cst_91 = arith.constant dense<0.000000e+00> : vector<2x16x16xf32>
    %274 = tpu.matmul %269, %271, %cst_91 {dimension_numbers = #tpu.dot_dimension_numbers<[2], [2], [1], [1], [0, 0, 0, 1, 1, 1], [0], [0]>} : vector<2x16x32xbf16>, vector<2x16x32xbf16>, vector<2x16x16xf32> -> vector<2x16x16xf32>
    "tpu.trace_stop"() : () -> ()
    %275 = vector.broadcast %25 : vector<1x16x16xf32> to vector<2x16x16xf32>
    %276 = arith.addf %274, %275 : vector<2x16x16xf32>
    %cst_92 = arith.constant dense<0xFF800000> : vector<2x16xf32>
    %277 = vector.multi_reduction <maximumf>, %276, %cst_92 [2] : vector<2x16x16xf32> to vector<2x16xf32>
    %278 = vector.shape_cast %277 : vector<2x16xf32> to vector<2x16x1xf32>
    %279 = vector.broadcast %278 : vector<2x16x1xf32> to vector<2x16x16xf32>
    %280 = arith.subf %276, %279 : vector<2x16x16xf32>
    %281 = math.exp %280 : vector<2x16x16xf32>
    %cst_93 = arith.constant dense<0.000000e+00> : vector<2x16xf32>
    %282 = vector.multi_reduction <add>, %281, %cst_93 [2] : vector<2x16x16xf32> to vector<2x16xf32>
    %283 = vector.shape_cast %282 : vector<2x16xf32> to vector<2x16x1xf32>
    %284 = tpu.reciprocal %283 {approx = true} : vector<2x16x1xf32> -> vector<2x16x1xf32>
    %285 = vector.broadcast %284 : vector<2x16x1xf32> to vector<2x16x16xf32>
    %286 = arith.mulf %281, %285 : vector<2x16x16xf32>
    %287 = arith.truncf %286 : vector<2x16x16xf32> to vector<2x16x16xbf16>
    "tpu.trace_start"() <{level = 10 : i32, message = "bqk,bkd->bqd"}> : () -> ()
    %cst_94 = arith.constant dense<0.000000e+00> : vector<2x16x32xf32>
    %288 = tpu.matmul %287, %273, %cst_94 {dimension_numbers = #tpu.dot_dimension_numbers<[2], [1], [1], [2], [0, 0, 0, 1, 1, 2], [0], [0]>} : vector<2x16x16xbf16>, vector<2x16x32xbf16>, vector<2x16x32xf32> -> vector<2x16x32xf32>
    "tpu.trace_stop"() : () -> ()
    %289 = vector.extract_strided_slice %234 {offsets = [0, 64], sizes = [32, 32], strides = [1, 1]} : vector<32x128xbf16> to vector<32x32xbf16>
    %290 = vector.shape_cast %289 : vector<32x32xbf16> to vector<2x16x32xbf16>
    %291 = vector.extract_strided_slice %240 {offsets = [0, 64], sizes = [32, 32], strides = [1, 1]} : vector<32x128xbf16> to vector<32x32xbf16>
    %292 = vector.shape_cast %291 : vector<32x32xbf16> to vector<2x16x32xbf16>
    %293 = vector.extract_strided_slice %246 {offsets = [0, 64], sizes = [32, 32], strides = [1, 1]} : vector<32x128xbf16> to vector<32x32xbf16>
    %294 = vector.shape_cast %293 : vector<32x32xbf16> to vector<2x16x32xbf16>
    "tpu.trace_start"() <{level = 10 : i32, message = "bqd,bkd->bqk"}> : () -> ()
    %cst_95 = arith.constant dense<0.000000e+00> : vector<2x16x16xf32>
    %295 = tpu.matmul %290, %292, %cst_95 {dimension_numbers = #tpu.dot_dimension_numbers<[2], [2], [1], [1], [0, 0, 0, 1, 1, 1], [0], [0]>} : vector<2x16x32xbf16>, vector<2x16x32xbf16>, vector<2x16x16xf32> -> vector<2x16x16xf32>
    "tpu.trace_stop"() : () -> ()
    %296 = vector.broadcast %25 : vector<1x16x16xf32> to vector<2x16x16xf32>
    %297 = arith.addf %295, %296 : vector<2x16x16xf32>
    %cst_96 = arith.constant dense<0xFF800000> : vector<2x16xf32>
    %298 = vector.multi_reduction <maximumf>, %297, %cst_96 [2] : vector<2x16x16xf32> to vector<2x16xf32>
    %299 = vector.shape_cast %298 : vector<2x16xf32> to vector<2x16x1xf32>
    %300 = vector.broadcast %299 : vector<2x16x1xf32> to vector<2x16x16xf32>
    %301 = arith.subf %297, %300 : vector<2x16x16xf32>
    %302 = math.exp %301 : vector<2x16x16xf32>
    %cst_97 = arith.constant dense<0.000000e+00> : vector<2x16xf32>
    %303 = vector.multi_reduction <add>, %302, %cst_97 [2] : vector<2x16x16xf32> to vector<2x16xf32>
    %304 = vector.shape_cast %303 : vector<2x16xf32> to vector<2x16x1xf32>
    %305 = tpu.reciprocal %304 {approx = true} : vector<2x16x1xf32> -> vector<2x16x1xf32>
    %306 = vector.broadcast %305 : vector<2x16x1xf32> to vector<2x16x16xf32>
    %307 = arith.mulf %302, %306 : vector<2x16x16xf32>
    %308 = arith.truncf %307 : vector<2x16x16xf32> to vector<2x16x16xbf16>
    "tpu.trace_start"() <{level = 10 : i32, message = "bqk,bkd->bqd"}> : () -> ()
    %cst_98 = arith.constant dense<0.000000e+00> : vector<2x16x32xf32>
    %309 = tpu.matmul %308, %294, %cst_98 {dimension_numbers = #tpu.dot_dimension_numbers<[2], [1], [1], [2], [0, 0, 0, 1, 1, 2], [0], [0]>} : vector<2x16x16xbf16>, vector<2x16x32xbf16>, vector<2x16x32xf32> -> vector<2x16x32xf32>
    "tpu.trace_stop"() : () -> ()
    %310 = vector.extract_strided_slice %234 {offsets = [0, 96], sizes = [32, 32], strides = [1, 1]} : vector<32x128xbf16> to vector<32x32xbf16>
    %311 = vector.shape_cast %310 : vector<32x32xbf16> to vector<2x16x32xbf16>
    %312 = vector.extract_strided_slice %240 {offsets = [0, 96], sizes = [32, 32], strides = [1, 1]} : vector<32x128xbf16> to vector<32x32xbf16>
    %313 = vector.shape_cast %312 : vector<32x32xbf16> to vector<2x16x32xbf16>
    %314 = vector.extract_strided_slice %246 {offsets = [0, 96], sizes = [32, 32], strides = [1, 1]} : vector<32x128xbf16> to vector<32x32xbf16>
    %315 = vector.shape_cast %314 : vector<32x32xbf16> to vector<2x16x32xbf16>
    "tpu.trace_start"() <{level = 10 : i32, message = "bqd,bkd->bqk"}> : () -> ()
    %cst_99 = arith.constant dense<0.000000e+00> : vector<2x16x16xf32>
    %316 = tpu.matmul %311, %313, %cst_99 {dimension_numbers = #tpu.dot_dimension_numbers<[2], [2], [1], [1], [0, 0, 0, 1, 1, 1], [0], [0]>} : vector<2x16x32xbf16>, vector<2x16x32xbf16>, vector<2x16x16xf32> -> vector<2x16x16xf32>
    "tpu.trace_stop"() : () -> ()
    %317 = vector.broadcast %25 : vector<1x16x16xf32> to vector<2x16x16xf32>
    %318 = arith.addf %316, %317 : vector<2x16x16xf32>
    %cst_100 = arith.constant dense<0xFF800000> : vector<2x16xf32>
    %319 = vector.multi_reduction <maximumf>, %318, %cst_100 [2] : vector<2x16x16xf32> to vector<2x16xf32>
    %320 = vector.shape_cast %319 : vector<2x16xf32> to vector<2x16x1xf32>
    %321 = vector.broadcast %320 : vector<2x16x1xf32> to vector<2x16x16xf32>
    %322 = arith.subf %318, %321 : vector<2x16x16xf32>
    %323 = math.exp %322 : vector<2x16x16xf32>
    %cst_101 = arith.constant dense<0.000000e+00> : vector<2x16xf32>
    %324 = vector.multi_reduction <add>, %323, %cst_101 [2] : vector<2x16x16xf32> to vector<2x16xf32>
    %325 = vector.shape_cast %324 : vector<2x16xf32> to vector<2x16x1xf32>
    %326 = tpu.reciprocal %325 {approx = true} : vector<2x16x1xf32> -> vector<2x16x1xf32>
    %327 = vector.broadcast %326 : vector<2x16x1xf32> to vector<2x16x16xf32>
    %328 = arith.mulf %323, %327 : vector<2x16x16xf32>
    %329 = arith.truncf %328 : vector<2x16x16xf32> to vector<2x16x16xbf16>
    "tpu.trace_start"() <{level = 10 : i32, message = "bqk,bkd->bqd"}> : () -> ()
    %cst_102 = arith.constant dense<0.000000e+00> : vector<2x16x32xf32>
    %330 = tpu.matmul %329, %315, %cst_102 {dimension_numbers = #tpu.dot_dimension_numbers<[2], [1], [1], [2], [0, 0, 0, 1, 1, 2], [0], [0]>} : vector<2x16x16xbf16>, vector<2x16x32xbf16>, vector<2x16x32xf32> -> vector<2x16x32xf32>
    "tpu.trace_stop"() : () -> ()
    %331 = tpu.concatenate %267, %288, %309, %330 in 2 : vector<2x16x32xf32>, vector<2x16x32xf32>, vector<2x16x32xf32>, vector<2x16x32xf32> -> vector<2x16x128xf32>
    %332 = vector.shape_cast %331 : vector<2x16x128xf32> to vector<32x128xf32>
    %333 = arith.truncf %332 : vector<32x128xf32> to vector<32x128xbf16>
    %c1_103 = arith.constant 1 : index
    %c0_104 = arith.constant 0 : index
    %c384_105 = arith.constant 384 : index
    %334 = vector.load %arg1[%c1_103, %c0_104, %c384_105] : memref<2x128x768xbf16, #tpu.memory_space<vmem>>, vector<1x128x128xbf16>
    %335 = vector.shape_cast %334 : vector<1x128x128xbf16> to vector<128x128xbf16>
    %c1_106 = arith.constant 1 : index
    %c3_107 = arith.constant 3 : index
    %c0_108 = arith.constant 0 : index
    %336 = vector.load %arg2[%c1_106, %c3_107, %c0_108] : memref<2x10x128xf32, #tpu.memory_space<vmem>>, vector<1x1x128xf32>
    %337 = vector.shape_cast %336 : vector<1x1x128xf32> to vector<1x128xf32>
    %cst_109 = arith.constant dense<0.000000e+00> : vector<32x128xf32>
    %338 = tpu.matmul %333, %335, %cst_109 {dimension_numbers = #tpu.dot_dimension_numbers<[1], [0], [0], [1], [0, 0, 1, 1], [], []>} : vector<32x128xbf16>, vector<128x128xbf16>, vector<32x128xf32> -> vector<32x128xf32>
    %339 = vector.broadcast %337 : vector<1x128xf32> to vector<32x128xf32>
    %340 = arith.addf %338, %339 : vector<32x128xf32>
    %341 = arith.addf %224, %340 : vector<32x128xf32>
    %c1_110 = arith.constant 1 : index
    %c6_111 = arith.constant 6 : index
    %c0_112 = arith.constant 0 : index
    %342 = vector.load %arg2[%c1_110, %c6_111, %c0_112] : memref<2x10x128xf32, #tpu.memory_space<vmem>>, vector<1x1x128xf32>
    %343 = vector.shape_cast %342 : vector<1x1x128xf32> to vector<1x128xf32>
    %c1_113 = arith.constant 1 : index
    %c7_114 = arith.constant 7 : index
    %c0_115 = arith.constant 0 : index
    %344 = vector.load %arg2[%c1_113, %c7_114, %c0_115] : memref<2x10x128xf32, #tpu.memory_space<vmem>>, vector<1x1x128xf32>
    %345 = vector.shape_cast %344 : vector<1x1x128xf32> to vector<1x128xf32>
    %cst_116 = arith.constant dense<0.000000e+00> : vector<32xf32>
    %346 = vector.multi_reduction <add>, %341, %cst_116 [1] : vector<32x128xf32> to vector<32xf32>
    %347 = vector.shape_cast %346 : vector<32xf32> to vector<32x1xf32>
    %cst_117 = arith.constant 3.125000e-02 : f32
    %348 = vector.broadcast %cst_117 : f32 to vector<32x1xf32>
    %349 = arith.mulf %347, %348 : vector<32x1xf32>
    %350 = vector.broadcast %349 : vector<32x1xf32> to vector<32x128xf32>
    %351 = arith.subf %341, %350 : vector<32x128xf32>
    %352 = vector.broadcast %4 : vector<1x128xf32> to vector<32x128xf32>
    %353 = arith.mulf %351, %352 : vector<32x128xf32>
    %354 = arith.mulf %353, %353 : vector<32x128xf32>
    %cst_118 = arith.constant dense<0.000000e+00> : vector<32xf32>
    %355 = vector.multi_reduction <add>, %354, %cst_118 [1] : vector<32x128xf32> to vector<32xf32>
    %356 = vector.shape_cast %355 : vector<32xf32> to vector<32x1xf32>
    %cst_119 = arith.constant 3.125000e-02 : f32
    %357 = vector.broadcast %cst_119 : f32 to vector<32x1xf32>
    %358 = arith.mulf %356, %357 : vector<32x1xf32>
    %cst_120 = arith.constant 9.99999974E-6 : f32
    %359 = vector.broadcast %cst_120 : f32 to vector<32x1xf32>
    %360 = arith.addf %358, %359 : vector<32x1xf32>
    %361 = math.rsqrt %360 : vector<32x1xf32>
    %362 = vector.broadcast %361 : vector<32x1xf32> to vector<32x128xf32>
    %363 = arith.mulf %353, %362 : vector<32x128xf32>
    %364 = vector.broadcast %343 : vector<1x128xf32> to vector<32x128xf32>
    %365 = arith.mulf %363, %364 : vector<32x128xf32>
    %366 = vector.broadcast %345 : vector<1x128xf32> to vector<32x128xf32>
    %367 = arith.addf %365, %366 : vector<32x128xf32>
    %368 = arith.truncf %367 : vector<32x128xf32> to vector<32x128xbf16>
    %c1_121 = arith.constant 1 : index
    %c0_122 = arith.constant 0 : index
    %c512_123 = arith.constant 512 : index
    %369 = vector.load %arg1[%c1_121, %c0_122, %c512_123] : memref<2x128x768xbf16, #tpu.memory_space<vmem>>, vector<1x128x128xbf16>
    %370 = vector.shape_cast %369 : vector<1x128x128xbf16> to vector<128x128xbf16>
    %c1_124 = arith.constant 1 : index
    %c4_125 = arith.constant 4 : index
    %c0_126 = arith.constant 0 : index
    %371 = vector.load %arg2[%c1_124, %c4_125, %c0_126] : memref<2x10x128xf32, #tpu.memory_space<vmem>>, vector<1x1x128xf32>
    %372 = vector.shape_cast %371 : vector<1x1x128xf32> to vector<1x128xf32>
    %cst_127 = arith.constant dense<0.000000e+00> : vector<32x128xf32>
    %373 = tpu.matmul %368, %370, %cst_127 {dimension_numbers = #tpu.dot_dimension_numbers<[1], [0], [0], [1], [0, 0, 1, 1], [], []>} : vector<32x128xbf16>, vector<128x128xbf16>, vector<32x128xf32> -> vector<32x128xf32>
    %374 = vector.broadcast %372 : vector<1x128xf32> to vector<32x128xf32>
    %375 = arith.addf %373, %374 : vector<32x128xf32>
    %cst_128 = arith.constant 5.000000e-01 : f32
    %376 = vector.broadcast %cst_128 : f32 to vector<32x128xf32>
    %377 = arith.mulf %376, %375 : vector<32x128xf32>
    %cst_129 = arith.constant 4.471500e-02 : f32
    %378 = vector.broadcast %cst_129 : f32 to vector<32x128xf32>
    %379 = arith.mulf %378, %375 : vector<32x128xf32>
    %380 = arith.mulf %379, %375 : vector<32x128xf32>
    %381 = arith.mulf %380, %375 : vector<32x128xf32>
    %382 = arith.addf %375, %381 : vector<32x128xf32>
    %cst_130 = arith.constant 0.797884583 : f32
    %383 = vector.broadcast %cst_130 : f32 to vector<32x128xf32>
    %384 = arith.mulf %383, %382 : vector<32x128xf32>
    %385 = math.tanh %384 : vector<32x128xf32>
    %cst_131 = arith.constant 1.000000e+00 : f32
    %386 = vector.broadcast %cst_131 : f32 to vector<32x128xf32>
    %387 = arith.addf %386, %385 : vector<32x128xf32>
    %388 = arith.mulf %377, %387 : vector<32x128xf32>
    %389 = arith.truncf %388 : vector<32x128xf32> to vector<32x128xbf16>
    %c1_132 = arith.constant 1 : index
    %c0_133 = arith.constant 0 : index
    %c640_134 = arith.constant 640 : index
    %390 = vector.load %arg1[%c1_132, %c0_133, %c640_134] : memref<2x128x768xbf16, #tpu.memory_space<vmem>>, vector<1x128x128xbf16>
    %391 = vector.shape_cast %390 : vector<1x128x128xbf16> to vector<128x128xbf16>
    %c1_135 = arith.constant 1 : index
    %c5_136 = arith.constant 5 : index
    %c0_137 = arith.constant 0 : index
    %392 = vector.load %arg2[%c1_135, %c5_136, %c0_137] : memref<2x10x128xf32, #tpu.memory_space<vmem>>, vector<1x1x128xf32>
    %393 = vector.shape_cast %392 : vector<1x1x128xf32> to vector<1x128xf32>
    %cst_138 = arith.constant dense<0.000000e+00> : vector<32x128xf32>
    %394 = tpu.matmul %389, %391, %cst_138 {dimension_numbers = #tpu.dot_dimension_numbers<[1], [0], [0], [1], [0, 0, 1, 1], [], []>} : vector<32x128xbf16>, vector<128x128xbf16>, vector<32x128xf32> -> vector<32x128xf32>
    %395 = vector.broadcast %393 : vector<1x128xf32> to vector<32x128xf32>
    %396 = arith.addf %394, %395 : vector<32x128xf32>
    %397 = arith.addf %367, %396 : vector<32x128xf32>
    %c1_139 = arith.constant 1 : index
    %c8_140 = arith.constant 8 : index
    %c0_141 = arith.constant 0 : index
    %398 = vector.load %arg2[%c1_139, %c8_140, %c0_141] : memref<2x10x128xf32, #tpu.memory_space<vmem>>, vector<1x1x128xf32>
    %399 = vector.shape_cast %398 : vector<1x1x128xf32> to vector<1x128xf32>
    %c1_142 = arith.constant 1 : index
    %c9_143 = arith.constant 9 : index
    %c0_144 = arith.constant 0 : index
    %400 = vector.load %arg2[%c1_142, %c9_143, %c0_144] : memref<2x10x128xf32, #tpu.memory_space<vmem>>, vector<1x1x128xf32>
    %401 = vector.shape_cast %400 : vector<1x1x128xf32> to vector<1x128xf32>
    %cst_145 = arith.constant dense<0.000000e+00> : vector<32xf32>
    %402 = vector.multi_reduction <add>, %397, %cst_145 [1] : vector<32x128xf32> to vector<32xf32>
    %403 = vector.shape_cast %402 : vector<32xf32> to vector<32x1xf32>
    %cst_146 = arith.constant 3.125000e-02 : f32
    %404 = vector.broadcast %cst_146 : f32 to vector<32x1xf32>
    %405 = arith.mulf %403, %404 : vector<32x1xf32>
    %406 = vector.broadcast %405 : vector<32x1xf32> to vector<32x128xf32>
    %407 = arith.subf %397, %406 : vector<32x128xf32>
    %408 = vector.broadcast %4 : vector<1x128xf32> to vector<32x128xf32>
    %409 = arith.mulf %407, %408 : vector<32x128xf32>
    %410 = arith.mulf %409, %409 : vector<32x128xf32>
    %cst_147 = arith.constant dense<0.000000e+00> : vector<32xf32>
    %411 = vector.multi_reduction <add>, %410, %cst_147 [1] : vector<32x128xf32> to vector<32xf32>
    %412 = vector.shape_cast %411 : vector<32xf32> to vector<32x1xf32>
    %cst_148 = arith.constant 3.125000e-02 : f32
    %413 = vector.broadcast %cst_148 : f32 to vector<32x1xf32>
    %414 = arith.mulf %412, %413 : vector<32x1xf32>
    %cst_149 = arith.constant 9.99999974E-6 : f32
    %415 = vector.broadcast %cst_149 : f32 to vector<32x1xf32>
    %416 = arith.addf %414, %415 : vector<32x1xf32>
    %417 = math.rsqrt %416 : vector<32x1xf32>
    %418 = vector.broadcast %417 : vector<32x1xf32> to vector<32x128xf32>
    %419 = arith.mulf %409, %418 : vector<32x128xf32>
    %420 = vector.broadcast %399 : vector<1x128xf32> to vector<32x128xf32>
    %421 = arith.mulf %419, %420 : vector<32x128xf32>
    %422 = vector.broadcast %401 : vector<1x128xf32> to vector<32x128xf32>
    %423 = arith.addf %421, %422 : vector<32x128xf32>
    %424 = vector.shape_cast %423 : vector<32x128xf32> to vector<2x16x128xf32>
    %425 = vector.extract_strided_slice %424 {offsets = [0, 0, 0], sizes = [2, 1, 128], strides = [1, 1, 1]} : vector<2x16x128xf32> to vector<2x1x128xf32>
    %426 = vector.shape_cast %425 : vector<2x1x128xf32> to vector<2x128xf32>
    %427 = arith.truncf %426 : vector<2x128xf32> to vector<2x128xbf16>
    %c0_150 = arith.constant 0 : index
    %c128 = arith.constant 128 : index
    %428 = vector.load %arg3[%c0_150, %c128] : memref<128x384xbf16, #tpu.memory_space<vmem>>, vector<128x128xbf16>
    %c2_151 = arith.constant 2 : index
    %c0_152 = arith.constant 0 : index
    %429 = vector.load %arg4[%c2_151, %c0_152] : memref<4x128xf32, #tpu.memory_space<vmem>>, vector<1x128xf32>
    %cst_153 = arith.constant dense<0.000000e+00> : vector<2x128xf32>
    %430 = tpu.matmul %427, %428, %cst_153 {dimension_numbers = #tpu.dot_dimension_numbers<[1], [0], [0], [1], [0, 0, 1, 1], [], []>} : vector<2x128xbf16>, vector<128x128xbf16>, vector<2x128xf32> -> vector<2x128xf32>
    %431 = vector.broadcast %429 : vector<1x128xf32> to vector<2x128xf32>
    %432 = arith.addf %430, %431 : vector<2x128xf32>
    %cst_154 = arith.constant 0.000000e+00 : f32
    %433 = vector.broadcast %cst_154 : f32 to vector<2x128xf32>
    %434 = arith.maximumf %432, %433 : vector<2x128xf32>
    %435 = arith.truncf %434 : vector<2x128xf32> to vector<2x128xbf16>
    %c0_155 = arith.constant 0 : index
    %c256 = arith.constant 256 : index
    %436 = vector.load %arg3[%c0_155, %c256] : memref<128x384xbf16, #tpu.memory_space<vmem>>, vector<128x128xbf16>
    %c3_156 = arith.constant 3 : index
    %c0_157 = arith.constant 0 : index
    %437 = vector.load %arg4[%c3_156, %c0_157] : memref<4x128xf32, #tpu.memory_space<vmem>>, vector<1x128xf32>
    %cst_158 = arith.constant dense<0.000000e+00> : vector<2x128xf32>
    %438 = tpu.matmul %435, %436, %cst_158 {dimension_numbers = #tpu.dot_dimension_numbers<[1], [0], [0], [1], [0, 0, 1, 1], [], []>} : vector<2x128xbf16>, vector<128x128xbf16>, vector<2x128xf32> -> vector<2x128xf32>
    %439 = vector.broadcast %437 : vector<1x128xf32> to vector<2x128xf32>
    %440 = arith.addf %438, %439 : vector<2x128xf32>
    %c0_159 = arith.constant 0 : index
    %c0_160 = arith.constant 0 : index
    %441 = vector.load %arg5[%c0_159, %c0_160] : memref<2x128xf32, #tpu.memory_space<vmem>>, vector<2x128xf32>
    tpu.vector_store %arg5[%c0_159, %c0_160], %440 {strides = array<i32>} : memref<2x128xf32, #tpu.memory_space<vmem>>, vector<2x128xf32>,
    return
  }
}

</mosaic_0001>

<llo_original>
// kernel: tpu_custom_call.1
$region0: #{tpu_custom_call.1}
  #allocation0 [shape = 'u32[]', space=smem, size = 0x4, offset = 0x4, fixed_abs, tag = 'smem constant byte address 0x4 - core index']
  #allocation1 [shape = 'u32[144,128]{1,0:T(1,128)}', space=vmem, size = 0x12000, scoped, tag = 'internal scratch']
  %s0 = inlined_call_operand.vmem [shape: f32[16,128], index: 0, kind: input, shape index: {}]
  %s1 = inlined_call_operand.hbm [shape: bf16[2,128,768], index: 1, kind: input, shape index: {}]
  %s2 = inlined_call_operand.vmem [shape: f32[2,10,128], index: 2, kind: input, shape index: {}]
  %s3 = inlined_call_operand.hbm [shape: bf16[128,384], index: 3, kind: input, shape index: {}]
  %s4 = inlined_call_operand.vmem [shape: f32[4,128], index: 4, kind: input, shape index: {}]
  %s5 = inlined_call_operand.hbm [shape: f32[2,128], index: 5, kind: output, shape index: {}]
  %s6 = sld [smem:[#allocation0]]
  $region38: #{tpu_custom_call.1} parent=0
    _
  %s8 = ssub.s32 1, %s6
  %s9 = scalar_select 0, %s8, %s6
  $region1: #{tpu_custom_call.1} parent=0
    #allocation2 [shape = 'u8[393216]{0}', space=vmem, size = 0x60000, scoped, tag = 'input window, operand 1, single buffered']
    #allocation3 [shape = 's32[1]{0}', space=sflag, size = 0x4, scoped, tag = 'scoped memory for tpu_custom_call.1']
    #allocation4 [shape = 's32[1]{0}', space=sflag, size = 0x4, scoped, tag = 'scoped memory for tpu_custom_call.1']
    #allocation5 [shape = 'u8[98304]{0}', space=vmem, size = 0x18000, scoped, tag = 'input window, operand 3, single buffered']
    #allocation6 [shape = 's32[1]{0}', space=sflag, size = 0x4, scoped, tag = 'scoped memory for tpu_custom_call.1']
    #allocation7 [shape = 'u8[1024]{0}', space=vmem, size = 0x400, scoped, tag = 'output window, operand 0, single buffered']
    %10 = vsyncpa [#allocation3], 0
    %11 = vsyncpa [#allocation6], 0
    %12 = vsyncpa [#allocation4], 0
    // Predicated region
    $region2: #{tpu_custom_call.1} parent=1 // pred_check
      _
    $region3: #{tpu_custom_call.1} parent=1 // pred_check_branch
      %14 = sbr.rel (0) target = $region5
    $region4: #{tpu_custom_call.1} parent=1 // pred_region
      _
    $region5: #{tpu_custom_call.1} parent=1 // pred_fallthru
      _
    // Predicated region
    $region6: #{tpu_custom_call.1} parent=1 // pred_check
      _
    $region7: #{tpu_custom_call.1} parent=1 // pred_check_branch
      %16 = sbr.rel (0) target = $region9
    $region8: #{tpu_custom_call.1} parent=1 // pred_region
      %s18 = ssub.s32 12288, 12288
      %19 = vsyncadd [#allocation3], %s18
      %s20 = sshll.u32 [#allocation2], 4
      %s21 = int_to_ptr.vmem [resolvable:$true] %s20
      %26 = dma.hbm_to_vmem [thread:$0]  %s1, 12288, %s21, [#allocation3], 384, 384, 24
    $region9: #{tpu_custom_call.1} parent=1 // pred_fallthru
      _
    // Predicated region
    $region10: #{tpu_custom_call.1} parent=1 // pred_check
      _
    $region11: #{tpu_custom_call.1} parent=1 // pred_check_branch
      %28 = sbr.rel (0) target = $region13
    $region12: #{tpu_custom_call.1} parent=1 // pred_region
      _
    $region13: #{tpu_custom_call.1} parent=1 // pred_fallthru
      _
    // Predicated region
    $region14: #{tpu_custom_call.1} parent=1 // pred_check
      _
    $region15: #{tpu_custom_call.1} parent=1 // pred_check_branch
      %30 = sbr.rel (0) target = $region17
    $region16: #{tpu_custom_call.1} parent=1 // pred_region
      %s32 = ssub.s32 3072, 3072
      %33 = vsyncadd [#allocation6], %s32
      %s34 = sshll.u32 [#allocation5], 4
      %s35 = int_to_ptr.vmem [resolvable:$true] %s34
      %40 = dma.hbm_to_vmem [thread:$0]  %s3, 3072, %s35, [#allocation6], 192, 192, 12
    $region17: #{tpu_custom_call.1} parent=1 // pred_fallthru
      _
    // Predicated region
    $region18: #{tpu_custom_call.1} parent=1 // pred_check
      _
    $region19: #{tpu_custom_call.1} parent=1 // pred_check_branch
      %42 = sbr.rel (0) target = $region21
    $region20: #{tpu_custom_call.1} parent=1 // pred_region
      _
    $region21: #{tpu_custom_call.1} parent=1 // pred_fallthru
      _
    // Predicated region
    $region22: #{tpu_custom_call.1} parent=1 // pred_check
      _
    $region23: #{tpu_custom_call.1} parent=1 // pred_check_branch
      %44 = sbr.rel (0) target = $region25
    $region24: #{tpu_custom_call.1} parent=1 // pred_region
      %45 = dma.done [#allocation3], 12288
    $region25: #{tpu_custom_call.1} parent=1 // pred_fallthru
      _
    // Predicated region
    $region26: #{tpu_custom_call.1} parent=1 // pred_check
      _
    $region27: #{tpu_custom_call.1} parent=1 // pred_check_branch
      %47 = sbr.rel (0) target = $region29
    $region28: #{tpu_custom_call.1} parent=1 // pred_region
      %48 = dma.done [#allocation6], 3072
    $region29: #{tpu_custom_call.1} parent=1 // pred_fallthru
      _
    %v50 = vlaneseq
    %v51 = vand.u32 %v50, 127
    %vm52 = vcmp.lt.s32.totalorder %v51, 32
    %v53 = vsel %vm52, 1, 0
    %v54 = vcvt.s32.f32 %v53
    %v55 = vld [vmem:[%s0] sm:$0xff]
    %v56 = vld [vmem:[%s0 + $0x8] sm:$0xff]
    %v57 = vpack.c.bf16 %v56, %v55
    %v58 = vld [vmem:[#allocation5] sm:$0xf]
    %v59 = vld [vmem:[#allocation5 + $0xc] sm:$0xf]
    %v60 = vld [vmem:[#allocation5 + $0x18] sm:$0xf]
    %v61 = vld [vmem:[#allocation5 + $0x24] sm:$0xf]
    %v62 = vld [vmem:[#allocation5 + $0x30] sm:$0xf]
    %v63 = vld [vmem:[#allocation5 + $0x3c] sm:$0xf]
    %v64 = vld [vmem:[#allocation5 + $0x48] sm:$0xf]
    %v65 = vld [vmem:[#allocation5 + $0x54] sm:$0xf]
    %v66 = vld [vmem:[#allocation5 + $0x60] sm:$0xf]
    %v67 = vld [vmem:[#allocation5 + $0x6c] sm:$0xf]
    %v68 = vld [vmem:[#allocation5 + $0x78] sm:$0xf]
    %v69 = vld [vmem:[#allocation5 + $0x84] sm:$0xf]
    %v70 = vld [vmem:[#allocation5 + $0x90] sm:$0xf]
    %v71 = vld [vmem:[#allocation5 + $0x9c] sm:$0xf]
    %v72 = vld [vmem:[#allocation5 + $0xa8] sm:$0xf]
    %v73 = vld [vmem:[#allocation5 + $0xb4] sm:$0xf]
    %v74 = vld [vmem:[%s4 + $0x1] sm:$0x1]
    %v75 = vlaneseq
    %v76 = vshrl.u32 %v75, 7
    %v77 = vsub.s32 0, %v76
    %v78 = vrot.slane %v74, %v77
    %v95 = vunpack.c.l.b16 %v58
    %v96 = vunpack.c.l.b16 %v59
    %v97 = vunpack.c.l.b16 %v60
    %v98 = vunpack.c.l.b16 %v61
    %v99 = vunpack.c.l.b16 %v62
    %v100 = vunpack.c.l.b16 %v63
    %v101 = vunpack.c.l.b16 %v64
    %v102 = vunpack.c.l.b16 %v65
    %v103 = vunpack.c.l.b16 %v66
    %v104 = vunpack.c.l.b16 %v67
    %v105 = vunpack.c.l.b16 %v68
    %v106 = vunpack.c.l.b16 %v69
    %v107 = vunpack.c.l.b16 %v70
    %v108 = vunpack.c.l.b16 %v71
    %v109 = vunpack.c.l.b16 %v72
    %v110 = vunpack.c.l.b16 %v73
    %v111 = vpack.c.b16 %v96, %v95
    %v112 = vpack.c.b16 %v98, %v97
    %v113 = vpack.c.b16 %v100, %v99
    %v114 = vpack.c.b16 %v102, %v101
    %v115 = vpack.c.b16 %v104, %v103
    %v116 = vpack.c.b16 %v106, %v105
    %v117 = vpack.c.b16 %v108, %v107
    %v118 = vpack.c.b16 %v110, %v109
    %127 = vmatprep.subr.bf16.mxu0 0
    %128 = vmatpush1.bf16.msra.mxu0 %v118
    %129 = vmatprep.subr.bf16.mxu0 0
    %130 = vmatpush1.bf16.msra.mxu0 %v117
    %131 = vmatprep.subr.bf16.mxu0 0
    %132 = vmatpush1.bf16.msra.mxu0 %v116
    %133 = vmatprep.subr.bf16.mxu0 0
    %134 = vmatpush1.bf16.msra.mxu0 %v115
    %135 = vmatprep.subr.bf16.mxu0 0
    %136 = vmatpush1.bf16.msra.mxu0 %v114
    %137 = vmatprep.subr.bf16.mxu0 0
    %138 = vmatpush1.bf16.msra.mxu0 %v113
    %139 = vmatprep.subr.bf16.mxu0 0
    %140 = vmatpush1.bf16.msra.mxu0 %v112
    %141 = vmatprep.subr.bf16.mxu0 0
    %142 = vmatpush1.bf16.msra.mxu0 %v111
    %143 = vmatprep.subr.bf16.mxu0 0
    %144 = vmatpush2.bf16.msra.mxu0 0
    %145 = vmatprep.subr.bf16.mxu0 0
    %146 = vmatpush2.bf16.msra.mxu0 0
    %147 = vmatprep.subr.bf16.mxu0 0
    %148 = vmatpush2.bf16.msra.mxu0 0
    %149 = vmatprep.subr.bf16.mxu0 0
    %150 = vmatpush2.bf16.msra.mxu0 0
    %151 = vmatprep.subr.bf16.mxu0 0
    %152 = vmatpush2.bf16.msra.mxu0 0
    %153 = vmatprep.subr.bf16.mxu0 0
    %154 = vmatpush2.bf16.msra.mxu0 0
    %155 = vmatprep.subr.bf16.mxu0 0
    %156 = vmatpush2.bf16.msra.mxu0 0
    %157 = vmatprep.subr.bf16.mxu0 0
    %158 = vmatpush2.bf16.msra.mxu0 0
    %159 = vmatprep.mubr.bf16.mxu0 0
    %160 = vmatmul.mubr.bf16.gmra.mxu0 %v57
    %v161 = vpop.f32.mrf.mxu0
    %v162 = vadd.f32 %v78, %v161
    %v163 = vpop.f32.mrf.mxu0
    %v164 = vpop.f32.mrf.mxu0
    %v165 = vadd.f32 %v78, %v164
    %v166 = vpop.f32.mrf.mxu0
    %167 = vdwg.mxu0
    %v168 = vld [vmem:[%s4] sm:$0x1]
    %v171 = vrot.slane %v162, 7
    %v172 = vrot.slane %v165, 7
    %vm175 = vcmask 1040384
    %v176 = vsel %vm175, %v168, %v171
    %v177 = vsel %vm175, %v168, %v172
    %v178 = vsel %vm175, %v171, 0.0
    %v179 = vsel %vm175, %v172, 0.0
    %vm180 = vcmp.lt.s32.totalorder %v51, 9
    %v181 = vsel %vm180, 0.0, -1e+30
    %v182 = vpack.c.bf16 %v178, %v176
    %v183 = vpack.c.bf16 %v179, %v177
    %v184 = vld [vmem:[#allocation2] sm:$0xff]
    %v185 = vld [vmem:[#allocation2 + $0x8] sm:$0xf]
    %v186 = vld [vmem:[#allocation2 + $0x18] sm:$0xff]
    %v187 = vld [vmem:[#allocation2 + $0x20] sm:$0xf]
    %v188 = vld [vmem:[#allocation2 + $0x30] sm:$0xff]
    %v189 = vld [vmem:[#allocation2 + $0x38] sm:$0xf]
    %v190 = vld [vmem:[#allocation2 + $0x48] sm:$0xff]
    %v191 = vld [vmem:[#allocation2 + $0x50] sm:$0xf]
    %v192 = vld [vmem:[#allocation2 + $0x60] sm:$0xff]
    %v193 = vld [vmem:[#allocation2 + $0x68] sm:$0xf]
    %v194 = vld [vmem:[#allocation2 + $0x78] sm:$0xff]
    %v195 = vld [vmem:[#allocation2 + $0x80] sm:$0xf]
    %v196 = vld [vmem:[#allocation2 + $0x90] sm:$0xff]
    %v197 = vld [vmem:[#allocation2 + $0x98] sm:$0xf]
    %v198 = vld [vmem:[#allocation2 + $0xa8] sm:$0xff]
    %v199 = vld [vmem:[#allocation2 + $0xb0] sm:$0xf]
    %v200 = vld [vmem:[#allocation2 + $0xc0] sm:$0xff]
    %v201 = vld [vmem:[#allocation2 + $0xc8] sm:$0xf]
    %v202 = vld [vmem:[#allocation2 + $0xd8] sm:$0xff]
    %v203 = vld [vmem:[#allocation2 + $0xe0] sm:$0xf]
    %v204 = vld [vmem:[#allocation2 + $0xf0] sm:$0xff]
    %v205 = vld [vmem:[#allocation2 + $0xf8] sm:$0xf]
    %v206 = vld [vmem:[#allocation2 + $0x108] sm:$0xff]
    %v207 = vld [vmem:[#allocation2 + $0x110] sm:$0xf]
    %v208 = vld [vmem:[#allocation2 + $0x120] sm:$0xff]
    %v209 = vld [vmem:[#allocation2 + $0x128] sm:$0xf]
    %v210 = vld [vmem:[#allocation2 + $0x138] sm:$0xff]
    %v211 = vld [vmem:[#allocation2 + $0x140] sm:$0xf]
    %v212 = vld [vmem:[#allocation2 + $0x150] sm:$0xff]
    %v213 = vld [vmem:[#allocation2 + $0x158] sm:$0xf]
    %v214 = vld [vmem:[#allocation2 + $0x168] sm:$0xff]
    %v215 = vld [vmem:[#allocation2 + $0x170] sm:$0xf]
    %v248 = vunpack.c.l.b16 %v184
    %v249 = vunpack.c.h.b16 %v184
    %v250 = vunpack.c.l.b16 %v185
    %v251 = vunpack.c.l.b16 %v186
    %v252 = vunpack.c.h.b16 %v186
    %v253 = vunpack.c.l.b16 %v187
    %v254 = vunpack.c.l.b16 %v188
    %v255 = vunpack.c.h.b16 %v188
    %v256 = vunpack.c.l.b16 %v189
    %v257 = vunpack.c.l.b16 %v190
    %v258 = vunpack.c.h.b16 %v190
    %v259 = vunpack.c.l.b16 %v191
    %v260 = vunpack.c.l.b16 %v192
    %v261 = vunpack.c.h.b16 %v192
    %v262 = vunpack.c.l.b16 %v193
    %v263 = vunpack.c.l.b16 %v194
    %v264 = vunpack.c.h.b16 %v194
    %v265 = vunpack.c.l.b16 %v195
    %v266 = vunpack.c.l.b16 %v196
    %v267 = vunpack.c.h.b16 %v196
    %v268 = vunpack.c.l.b16 %v197
    %v269 = vunpack.c.l.b16 %v198
    %v270 = vunpack.c.h.b16 %v198
    %v271 = vunpack.c.l.b16 %v199
    %v272 = vunpack.c.l.b16 %v200
    %v273 = vunpack.c.h.b16 %v200
    %v274 = vunpack.c.l.b16 %v201
    %v275 = vunpack.c.l.b16 %v202
    %v276 = vunpack.c.h.b16 %v202
    %v277 = vunpack.c.l.b16 %v203
    %v278 = vunpack.c.l.b16 %v204
    %v279 = vunpack.c.h.b16 %v204
    %v280 = vunpack.c.l.b16 %v205
    %v281 = vunpack.c.l.b16 %v206
    %v282 = vunpack.c.h.b16 %v206
    %v283 = vunpack.c.l.b16 %v207
    %v284 = vunpack.c.l.b16 %v208
    %v285 = vunpack.c.h.b16 %v208
    %v286 = vunpack.c.l.b16 %v209
    %v287 = vunpack.c.l.b16 %v210
    %v288 = vunpack.c.h.b16 %v210
    %v289 = vunpack.c.l.b16 %v211
    %v290 = vunpack.c.l.b16 %v212
    %v291 = vunpack.c.h.b16 %v212
    %v292 = vunpack.c.l.b16 %v213
    %v293 = vunpack.c.l.b16 %v214
    %v294 = vunpack.c.h.b16 %v214
    %v295 = vunpack.c.l.b16 %v215
    %v296 = vpack.c.b16 %v251, %v248
    %v297 = vpack.c.b16 %v252, %v249
    %v298 = vpack.c.b16 %v253, %v250
    %v299 = vpack.c.b16 %v257, %v254
    %v300 = vpack.c.b16 %v258, %v255
    %v301 = vpack.c.b16 %v259, %v256
    %v302 = vpack.c.b16 %v263, %v260
    %v303 = vpack.c.b16 %v264, %v261
    %v304 = vpack.c.b16 %v265, %v262
    %v305 = vpack.c.b16 %v269, %v266
    %v306 = vpack.c.b16 %v270, %v267
    %v307 = vpack.c.b16 %v271, %v268
    %v308 = vpack.c.b16 %v275, %v272
    %v309 = vpack.c.b16 %v276, %v273
    %v310 = vpack.c.b16 %v277, %v274
    %v311 = vpack.c.b16 %v281, %v278
    %v312 = vpack.c.b16 %v282, %v279
    %v313 = vpack.c.b16 %v283, %v280
    %v314 = vpack.c.b16 %v287, %v284
    %v315 = vpack.c.b16 %v288, %v285
    %v316 = vpack.c.b16 %v289, %v286
    %v317 = vpack.c.b16 %v293, %v290
    %v318 = vpack.c.b16 %v294, %v291
    %v319 = vpack.c.b16 %v295, %v292
    %344 = vmatprep.subr.bf16.mxu0 %v318
    %345 = vmatpush1.bf16.msra.mxu0 %v317
    %346 = vmatprep.subr.bf16.mxu0 %v315
    %347 = vmatpush1.bf16.msra.mxu0 %v314
    %348 = vmatprep.subr.bf16.mxu0 %v312
    %349 = vmatpush1.bf16.msra.mxu0 %v311
    %350 = vmatprep.subr.bf16.mxu0 %v309
    %351 = vmatpush1.bf16.msra.mxu0 %v308
    %352 = vmatprep.subr.bf16.mxu0 %v306
    %353 = vmatpush1.bf16.msra.mxu0 %v305
    %354 = vmatprep.subr.bf16.mxu0 %v303
    %355 = vmatpush1.bf16.msra.mxu0 %v302
    %356 = vmatprep.subr.bf16.mxu0 %v300
    %357 = vmatpush1.bf16.msra.mxu0 %v299
    %358 = vmatprep.subr.bf16.mxu0 %v297
    %359 = vmatpush1.bf16.msra.mxu0 %v296
    %360 = vmatprep.subr.bf16.mxu0 0
    %361 = vmatpush2.bf16.msra.mxu0 0
    %362 = vmatprep.subr.bf16.mxu0 0
    %363 = vmatpush2.bf16.msra.mxu0 0
    %364 = vmatprep.subr.bf16.mxu0 0
    %365 = vmatpush2.bf16.msra.mxu0 0
    %366 = vmatprep.subr.bf16.mxu0 0
    %367 = vmatpush2.bf16.msra.mxu0 0
    %368 = vmatprep.subr.bf16.mxu0 0
    %369 = vmatpush2.bf16.msra.mxu0 0
    %370 = vmatprep.subr.bf16.mxu0 0
    %371 = vmatpush2.bf16.msra.mxu0 0
    %372 = vmatprep.subr.bf16.mxu0 0
    %373 = vmatpush2.bf16.msra.mxu0 0
    %374 = vmatprep.subr.bf16.mxu0 0
    %375 = vmatpush2.bf16.msra.mxu0 0
    %376 = vmatprep.mubr.bf16.mxu0 0
    %377 = vmatmul.mubr.bf16.gmra.mxu0 %v182
    %v378 = vpop.f32.mrf.mxu0
    %v379 = vadd.f32 0.0, %v378
    %v380 = vpop.f32.mrf.mxu0
    %v381 = vadd.f32 0.0, %v380
    %v382 = vpop.f32.mrf.mxu0
    %v383 = vadd.f32 0.0, %v382
    %v384 = vpop.f32.mrf.mxu0
    %v385 = vadd.f32 0.0, %v384
    %386 = vmatprep.mubr.bf16.mxu0 0
    %387 = vmatmul.mubr.bf16.gmra.mxu0 %v183
    %v388 = vpop.f32.mrf.mxu0
    %v389 = vadd.f32 0.0, %v388
    %v390 = vpop.f32.mrf.mxu0
    %v391 = vadd.f32 0.0, %v390
    %v392 = vpop.f32.mrf.mxu0
    %v393 = vadd.f32 0.0, %v392
    %v394 = vpop.f32.mrf.mxu0
    %v395 = vadd.f32 0.0, %v394
    %396 = vdwg.mxu0
    %397 = vmatprep.subr.bf16.mxu0 0
    %398 = vmatpush1.bf16.msra.mxu0 %v319
    %399 = vmatprep.subr.bf16.mxu0 0
    %400 = vmatpush1.bf16.msra.mxu0 %v316
    %401 = vmatprep.subr.bf16.mxu0 0
    %402 = vmatpush1.bf16.msra.mxu0 %v313
    %403 = vmatprep.subr.bf16.mxu0 0
    %404 = vmatpush1.bf16.msra.mxu0 %v310
    %405 = vmatprep.subr.bf16.mxu0 0
    %406 = vmatpush1.bf16.msra.mxu0 %v307
    %407 = vmatprep.subr.bf16.mxu0 0
    %408 = vmatpush1.bf16.msra.mxu0 %v304
    %409 = vmatprep.subr.bf16.mxu0 0
    %410 = vmatpush1.bf16.msra.mxu0 %v301
    %411 = vmatprep.subr.bf16.mxu0 0
    %412 = vmatpush1.bf16.msra.mxu0 %v298
    %413 = vmatprep.subr.bf16.mxu0 0
    %414 = vmatpush2.bf16.msra.mxu0 0
    %415 = vmatprep.subr.bf16.mxu0 0
    %416 = vmatpush2.bf16.msra.mxu0 0
    %417 = vmatprep.subr.bf16.mxu0 0
    %418 = vmatpush2.bf16.msra.mxu0 0
    %419 = vmatprep.subr.bf16.mxu0 0
    %420 = vmatpush2.bf16.msra.mxu0 0
    %421 = vmatprep.subr.bf16.mxu0 0
    %422 = vmatpush2.bf16.msra.mxu0 0
    %423 = vmatprep.subr.bf16.mxu0 0
    %424 = vmatpush2.bf16.msra.mxu0 0
    %425 = vmatprep.subr.bf16.mxu0 0
    %426 = vmatpush2.bf16.msra.mxu0 0
    %427 = vmatprep.subr.bf16.mxu0 0
    %428 = vmatpush2.bf16.msra.mxu0 0
    %429 = vmatprep.mubr.bf16.mxu0 0
    %430 = vmatmul.mubr.bf16.gmra.mxu0 %v182
    %v431 = vpop.f32.mrf.mxu0
    %v432 = vadd.f32 0.0, %v431
    %v433 = vpop.f32.mrf.mxu0
    %v434 = vpop.f32.mrf.mxu0
    %v435 = vadd.f32 0.0, %v434
    %v436 = vpop.f32.mrf.mxu0
    %437 = vmatprep.mubr.bf16.mxu0 0
    %438 = vmatmul.mubr.bf16.gmra.mxu0 %v183
    %v439 = vpop.f32.mrf.mxu0
    %v440 = vadd.f32 0.0, %v439
    %v441 = vpop.f32.mrf.mxu0
    %v442 = vpop.f32.mrf.mxu0
    %v443 = vadd.f32 0.0, %v442
    %v444 = vpop.f32.mrf.mxu0
    %445 = vdwg.mxu0
    %v446 = vld [vmem:[%s2] sm:$0x1]
    %v447 = vlaneseq
    %v448 = vshrl.u32 %v447, 7
    %v449 = vsub.s32 0, %v448
    %v450 = vrot.slane %v446, %v449
    %v451 = vadd.f32 %v379, %v450
    %v452 = vadd.f32 %v383, %v450
    %v453 = vadd.f32 %v389, %v450
    %v454 = vadd.f32 %v393, %v450
    %v455 = vpack.c.bf16 %v452, %v451
    %v456 = vpack.c.bf16 %v454, %v453
    %v457 = vld [vmem:[%s2 + $0x1] sm:$0x1]
    %v458 = vlaneseq
    %v459 = vshrl.u32 %v458, 7
    %v460 = vsub.s32 0, %v459
    %v461 = vrot.slane %v457, %v460
    %v462 = vadd.f32 %v381, %v461
    %v463 = vadd.f32 %v385, %v461
    %v464 = vadd.f32 %v391, %v461
    %v465 = vadd.f32 %v395, %v461
    %v466 = vpack.c.bf16 %v463, %v462
    %v467 = vpack.c.bf16 %v465, %v464
    %v468 = vld [vmem:[%s2 + $0x2] sm:$0x1]
    %v469 = vlaneseq
    %v470 = vshrl.u32 %v469, 7
    %v471 = vsub.s32 0, %v470
    %v472 = vrot.slane %v468, %v471
    %v473 = vadd.f32 %v432, %v472
    %v474 = vadd.f32 %v435, %v472
    %v475 = vadd.f32 %v440, %v472
    %v476 = vadd.f32 %v443, %v472
    %v477 = vpack.c.bf16 %v474, %v473
    %v478 = vpack.c.bf16 %v476, %v475
    %vm479 = vcmask 261120
    %v481 = vsel %vm479, %v455, 0
    %v484 = vsel %vm479, %v466, 0
    %486 = vmatprep.subr.bf16.mxu0 0
    %487 = vmatpush1.bf16.xpose.msra.mxu0 0
    %488 = vmatprep.subr.bf16.mxu0 0
    %489 = vmatpush1.bf16.xpose.msra.mxu0 0
    %490 = vmatprep.subr.bf16.mxu0 0
    %491 = vmatpush1.bf16.xpose.msra.mxu0 0
    %492 = vmatprep.subr.bf16.mxu0 0
    %493 = vmatpush1.bf16.xpose.msra.mxu0 0
    %494 = vmatprep.subr.bf16.mxu0 0
    %495 = vmatpush1.bf16.xpose.msra.mxu0 0
    %496 = vmatprep.subr.bf16.mxu0 0
    %497 = vmatpush1.bf16.xpose.msra.mxu0 0
    %498 = vmatprep.subr.bf16.mxu0 0
    %499 = vmatpush1.bf16.xpose.msra.mxu0 0
    %500 = vmatprep.subr.bf16.mxu0 0
    %501 = vmatpush1.bf16.xpose.msra.mxu0 %v484
    %502 = vmatprep.subr.bf16.mxu0 0
    %503 = vmatpush2.bf16.xpose.msra.mxu0 0
    %504 = vmatprep.subr.bf16.mxu0 0
    %505 = vmatpush2.bf16.xpose.msra.mxu0 0
    %506 = vmatprep.subr.bf16.mxu0 0
    %507 = vmatpush2.bf16.xpose.msra.mxu0 0
    %508 = vmatprep.subr.bf16.mxu0 0
    %509 = vmatpush2.bf16.xpose.msra.mxu0 0
    %510 = vmatprep.subr.bf16.mxu0 0
    %511 = vmatpush2.bf16.xpose.msra.mxu0 0
    %512 = vmatprep.subr.bf16.mxu0 0
    %513 = vmatpush2.bf16.xpose.msra.mxu0 0
    %514 = vmatprep.subr.bf16.mxu0 0
    %515 = vmatpush2.bf16.xpose.msra.mxu0 0
    %516 = vmatprep.subr.bf16.mxu0 0
    %517 = vmatpush2.bf16.xpose.msra.mxu0 0
    %518 = vmatprep.mubr.bf16.mxu0 0
    %519 = vmatmul.mubr.bf16.gmra.mxu0 %v481
    %v520 = vpop.f32.mrf.mxu0
    %v521 = vadd.f32 %v181, %v520
    %v522 = vpop.f32.mrf.mxu0
    %v523 = vpop.f32.mrf.mxu0
    %v524 = vadd.f32 %v181, %v523
    %v525 = vpop.f32.mrf.mxu0
    %526 = vdwg.mxu0
    %v528 = vsel %vm479, %v456, 0
    %v531 = vsel %vm479, %v467, 0
    %533 = vmatprep.subr.bf16.mxu0 0
    %534 = vmatpush1.bf16.xpose.msra.mxu0 0
    %535 = vmatprep.subr.bf16.mxu0 0
    %536 = vmatpush1.bf16.xpose.msra.mxu0 0
    %537 = vmatprep.subr.bf16.mxu0 0
    %538 = vmatpush1.bf16.xpose.msra.mxu0 0
    %539 = vmatprep.subr.bf16.mxu0 0
    %540 = vmatpush1.bf16.xpose.msra.mxu0 0
    %541 = vmatprep.subr.bf16.mxu0 0
    %542 = vmatpush1.bf16.xpose.msra.mxu0 0
    %543 = vmatprep.subr.bf16.mxu0 0
    %544 = vmatpush1.bf16.xpose.msra.mxu0 0
    %545 = vmatprep.subr.bf16.mxu0 0
    %546 = vmatpush1.bf16.xpose.msra.mxu0 0
    %547 = vmatprep.subr.bf16.mxu0 0
    %548 = vmatpush1.bf16.xpose.msra.mxu0 %v531
    %549 = vmatprep.subr.bf16.mxu0 0
    %550 = vmatpush2.bf16.xpose.msra.mxu0 0
    %551 = vmatprep.subr.bf16.mxu0 0
    %552 = vmatpush2.bf16.xpose.msra.mxu0 0
    %553 = vmatprep.subr.bf16.mxu0 0
    %554 = vmatpush2.bf16.xpose.msra.mxu0 0
    %555 = vmatprep.subr.bf16.mxu0 0
    %556 = vmatpush2.bf16.xpose.msra.mxu0 0
    %557 = vmatprep.subr.bf16.mxu0 0
    %558 = vmatpush2.bf16.xpose.msra.mxu0 0
    %559 = vmatprep.subr.bf16.mxu0 0
    %560 = vmatpush2.bf16.xpose.msra.mxu0 0
    %561 = vmatprep.subr.bf16.mxu0 0
    %562 = vmatpush2.bf16.xpose.msra.mxu0 0
    %563 = vmatprep.subr.bf16.mxu0 0
    %564 = vmatpush2.bf16.xpose.msra.mxu0 0
    %565 = vmatprep.mubr.bf16.mxu0 0
    %566 = vmatmul.mubr.bf16.gmra.mxu0 %v528
    %v567 = vpop.f32.mrf.mxu0
    %v568 = vadd.f32 %v181, %v567
    %v569 = vpop.f32.mrf.mxu0
    %v570 = vpop.f32.mrf.mxu0
    %v571 = vadd.f32 %v181, %v570
    %v572 = vpop.f32.mrf.mxu0
    %573 = vdwg.mxu0
    %vm574 = vcmask 130048
    %v575 = vsel %vm574, %v521, -inf
    %576 = vmax.xlane.f32.xlu0 %v575
    %v577 = vpop.xlane.xlu0 %576
    %v578 = vsel %vm574, %v524, -inf
    %579 = vmax.xlane.f32.xlu0 %v578
    %v580 = vpop.xlane.xlu0 %579
    %v581 = vsel %vm574, %v568, -inf
    %582 = vmax.xlane.f32.xlu0 %v581
    %v583 = vpop.xlane.xlu0 %582
    %v584 = vsel %vm574, %v571, -inf
    %585 = vmax.xlane.f32.xlu0 %v584
    %v586 = vpop.xlane.xlu0 %585
    %v587 = vsub.f32 %v521, %v577
    %v588 = vsub.f32 %v524, %v580
    %v589 = vsub.f32 %v568, %v583
    %v590 = vsub.f32 %v571, %v586
    %v591 = vmul.f32 %v587, 1.442695
    %v592 = vpow.pop %v591
    %v593 = vmul.f32 %v588, 1.442695
    %v594 = vpow.pop %v593
    %v595 = vmul.f32 %v589, 1.442695
    %v596 = vpow.pop %v595
    %v597 = vmul.f32 %v590, 1.442695
    %v598 = vpow.pop %v597
    %v599 = vsel %vm574, %v592, 0.0
    %600 = vadd.xlane.f32.xlu0 %v599
    %v601 = vpop.xlane.xlu0 %600
    %v602 = vsel %vm574, %v594, 0.0
    %603 = vadd.xlane.f32.xlu0 %v602
    %v604 = vpop.xlane.xlu0 %603
    %v605 = vsel %vm574, %v596, 0.0
    %606 = vadd.xlane.f32.xlu0 %v605
    %v607 = vpop.xlane.xlu0 %606
    %v608 = vsel %vm574, %v598, 0.0
    %609 = vadd.xlane.f32.xlu0 %v608
    %v610 = vpop.xlane.xlu0 %609
    %v611 = vrcp.pop %v601
    %v612 = vrcp.pop %v604
    %v613 = vrcp.pop %v607
    %v614 = vrcp.pop %v610
    %v615 = vmul.f32 %v592, %v611
    %v616 = vmul.f32 %v594, %v612
    %v617 = vmul.f32 %v596, %v613
    %v618 = vmul.f32 %v598, %v614
    %v619 = vpack.c.bf16 %v616, %v615
    %v620 = vpack.c.bf16 %v618, %v617
    %v622 = vsel %vm574, %v619, 0
    %624 = vmatprep.subr.bf16.mxu0 0
    %625 = vmatpush1.bf16.msra.mxu0 0
    %626 = vmatprep.subr.bf16.mxu0 0
    %627 = vmatpush1.bf16.msra.mxu0 0
    %628 = vmatprep.subr.bf16.mxu0 0
    %629 = vmatpush1.bf16.msra.mxu0 0
    %630 = vmatprep.subr.bf16.mxu0 0
    %631 = vmatpush1.bf16.msra.mxu0 0
    %632 = vmatprep.subr.bf16.mxu0 0
    %633 = vmatpush1.bf16.msra.mxu0 0
    %634 = vmatprep.subr.bf16.mxu0 0
    %635 = vmatpush1.bf16.msra.mxu0 0
    %636 = vmatprep.subr.bf16.mxu0 0
    %637 = vmatpush1.bf16.msra.mxu0 0
    %638 = vmatprep.subr.bf16.mxu0 0
    %639 = vmatpush1.bf16.msra.mxu0 %v477
    %640 = vmatprep.subr.bf16.mxu0 0
    %641 = vmatpush2.bf16.msra.mxu0 0
    %642 = vmatprep.subr.bf16.mxu0 0
    %643 = vmatpush2.bf16.msra.mxu0 0
    %644 = vmatprep.subr.bf16.mxu0 0
    %645 = vmatpush2.bf16.msra.mxu0 0
    %646 = vmatprep.subr.bf16.mxu0 0
    %647 = vmatpush2.bf16.msra.mxu0 0
    %648 = vmatprep.subr.bf16.mxu0 0
    %649 = vmatpush2.bf16.msra.mxu0 0
    %650 = vmatprep.subr.bf16.mxu0 0
    %651 = vmatpush2.bf16.msra.mxu0 0
    %652 = vmatprep.subr.bf16.mxu0 0
    %653 = vmatpush2.bf16.msra.mxu0 0
    %654 = vmatprep.subr.bf16.mxu0 0
    %655 = vmatpush2.bf16.msra.mxu0 0
    %656 = vmatprep.mubr.bf16.mxu0 0
    %657 = vmatmul.mubr.bf16.gmra.mxu0 %v622
    %v658 = vpop.f32.mrf.mxu0
    %v659 = vadd.f32 0.0, %v658
    %v660 = vpop.f32.mrf.mxu0
    %v661 = vpop.f32.mrf.mxu0
    %v662 = vadd.f32 0.0, %v661
    %v663 = vpop.f32.mrf.mxu0
    %664 = vdwg.mxu0
    %v666 = vsel %vm574, %v620, 0
    %668 = vmatprep.subr.bf16.mxu0 0
    %669 = vmatpush1.bf16.msra.mxu0 0
    %670 = vmatprep.subr.bf16.mxu0 0
    %671 = vmatpush1.bf16.msra.mxu0 0
    %672 = vmatprep.subr.bf16.mxu0 0
    %673 = vmatpush1.bf16.msra.mxu0 0
    %674 = vmatprep.subr.bf16.mxu0 0
    %675 = vmatpush1.bf16.msra.mxu0 0
    %676 = vmatprep.subr.bf16.mxu0 0
    %677 = vmatpush1.bf16.msra.mxu0 0
    %678 = vmatprep.subr.bf16.mxu0 0
    %679 = vmatpush1.bf16.msra.mxu0 0
    %680 = vmatprep.subr.bf16.mxu0 0
    %681 = vmatpush1.bf16.msra.mxu0 0
    %682 = vmatprep.subr.bf16.mxu0 0
    %683 = vmatpush1.bf16.msra.mxu0 %v478
    %684 = vmatprep.subr.bf16.mxu0 0
    %685 = vmatpush2.bf16.msra.mxu0 0
    %686 = vmatprep.subr.bf16.mxu0 0
    %687 = vmatpush2.bf16.msra.mxu0 0
    %688 = vmatprep.subr.bf16.mxu0 0
    %689 = vmatpush2.bf16.msra.mxu0 0
    %690 = vmatprep.subr.bf16.mxu0 0
    %691 = vmatpush2.bf16.msra.mxu0 0
    %692 = vmatprep.subr.bf16.mxu0 0
    %693 = vmatpush2.bf16.msra.mxu0 0
    %694 = vmatprep.subr.bf16.mxu0 0
    %695 = vmatpush2.bf16.msra.mxu0 0
    %696 = vmatprep.subr.bf16.mxu0 0
    %697 = vmatpush2.bf16.msra.mxu0 0
    %698 = vmatprep.subr.bf16.mxu0 0
    %699 = vmatpush2.bf16.msra.mxu0 0
    %700 = vmatprep.mubr.bf16.mxu0 0
    %701 = vmatmul.mubr.bf16.gmra.mxu0 %v666
    %v702 = vpop.f32.mrf.mxu0
    %v703 = vadd.f32 0.0, %v702
    %v704 = vpop.f32.mrf.mxu0
    %v705 = vpop.f32.mrf.mxu0
    %v706 = vadd.f32 0.0, %v705
    %v707 = vpop.f32.mrf.mxu0
    %708 = vdwg.mxu0
    %710 = vrot.lane.b32.xlu0 %v455, 96
    %v711 = vpop.permute.xlu0 %710
    %713 = vrot.lane.b32.xlu0 %v466, 96
    %v714 = vpop.permute.xlu0 %713
    %v716 = vsel %vm479, %v711, 0
    %v719 = vsel %vm479, %v714, 0
    %721 = vmatprep.subr.bf16.mxu0 0
    %722 = vmatpush1.bf16.xpose.msra.mxu0 0
    %723 = vmatprep.subr.bf16.mxu0 0
    %724 = vmatpush1.bf16.xpose.msra.mxu0 0
    %725 = vmatprep.subr.bf16.mxu0 0
    %726 = vmatpush1.bf16.xpose.msra.mxu0 0
    %727 = vmatprep.subr.bf16.mxu0 0
    %728 = vmatpush1.bf16.xpose.msra.mxu0 0
    %729 = vmatprep.subr.bf16.mxu0 0
    %730 = vmatpush1.bf16.xpose.msra.mxu0 0
    %731 = vmatprep.subr.bf16.mxu0 0
    %732 = vmatpush1.bf16.xpose.msra.mxu0 0
    %733 = vmatprep.subr.bf16.mxu0 0
    %734 = vmatpush1.bf16.xpose.msra.mxu0 0
    %735 = vmatprep.subr.bf16.mxu0 0
    %736 = vmatpush1.bf16.xpose.msra.mxu0 %v719
    %737 = vmatprep.subr.bf16.mxu0 0
    %738 = vmatpush2.bf16.xpose.msra.mxu0 0
    %739 = vmatprep.subr.bf16.mxu0 0
    %740 = vmatpush2.bf16.xpose.msra.mxu0 0
    %741 = vmatprep.subr.bf16.mxu0 0
    %742 = vmatpush2.bf16.xpose.msra.mxu0 0
    %743 = vmatprep.subr.bf16.mxu0 0
    %744 = vmatpush2.bf16.xpose.msra.mxu0 0
    %745 = vmatprep.subr.bf16.mxu0 0
    %746 = vmatpush2.bf16.xpose.msra.mxu0 0
    %747 = vmatprep.subr.bf16.mxu0 0
    %748 = vmatpush2.bf16.xpose.msra.mxu0 0
    %749 = vmatprep.subr.bf16.mxu0 0
    %750 = vmatpush2.bf16.xpose.msra.mxu0 0
    %751 = vmatprep.subr.bf16.mxu0 0
    %752 = vmatpush2.bf16.xpose.msra.mxu0 0
    %753 = vmatprep.mubr.bf16.mxu0 0
    %754 = vmatmul.mubr.bf16.gmra.mxu0 %v716
    %v755 = vpop.f32.mrf.mxu0
    %v756 = vadd.f32 %v181, %v755
    %v757 = vpop.f32.mrf.mxu0
    %v758 = vpop.f32.mrf.mxu0
    %v759 = vadd.f32 %v181, %v758
    %v760 = vpop.f32.mrf.mxu0
    %761 = vdwg.mxu0
    %763 = vrot.lane.b32.xlu0 %v456, 96
    %v764 = vpop.permute.xlu0 %763
    %766 = vrot.lane.b32.xlu0 %v467, 96
    %v767 = vpop.permute.xlu0 %766
    %v769 = vsel %vm479, %v764, 0
    %v772 = vsel %vm479, %v767, 0
    %774 = vmatprep.subr.bf16.mxu0 0
    %775 = vmatpush1.bf16.xpose.msra.mxu0 0
    %776 = vmatprep.subr.bf16.mxu0 0
    %777 = vmatpush1.bf16.xpose.msra.mxu0 0
    %778 = vmatprep.subr.bf16.mxu0 0
    %779 = vmatpush1.bf16.xpose.msra.mxu0 0
    %780 = vmatprep.subr.bf16.mxu0 0
    %781 = vmatpush1.bf16.xpose.msra.mxu0 0
    %782 = vmatprep.subr.bf16.mxu0 0
    %783 = vmatpush1.bf16.xpose.msra.mxu0 0
    %784 = vmatprep.subr.bf16.mxu0 0
    %785 = vmatpush1.bf16.xpose.msra.mxu0 0
    %786 = vmatprep.subr.bf16.mxu0 0
    %787 = vmatpush1.bf16.xpose.msra.mxu0 0
    %788 = vmatprep.subr.bf16.mxu0 0
    %789 = vmatpush1.bf16.xpose.msra.mxu0 %v772
    %790 = vmatprep.subr.bf16.mxu0 0
    %791 = vmatpush2.bf16.xpose.msra.mxu0 0
    %792 = vmatprep.subr.bf16.mxu0 0
    %793 = vmatpush2.bf16.xpose.msra.mxu0 0
    %794 = vmatprep.subr.bf16.mxu0 0
    %795 = vmatpush2.bf16.xpose.msra.mxu0 0
    %796 = vmatprep.subr.bf16.mxu0 0
    %797 = vmatpush2.bf16.xpose.msra.mxu0 0
    %798 = vmatprep.subr.bf16.mxu0 0
    %799 = vmatpush2.bf16.xpose.msra.mxu0 0
    %800 = vmatprep.subr.bf16.mxu0 0
    %801 = vmatpush2.bf16.xpose.msra.mxu0 0
    %802 = vmatprep.subr.bf16.mxu0 0
    %803 = vmatpush2.bf16.xpose.msra.mxu0 0
    %804 = vmatprep.subr.bf16.mxu0 0
    %805 = vmatpush2.bf16.xpose.msra.mxu0 0
    %806 = vmatprep.mubr.bf16.mxu0 0
    %807 = vmatmul.mubr.bf16.gmra.mxu0 %v769
    %v808 = vpop.f32.mrf.mxu0
    %v809 = vadd.f32 %v181, %v808
    %v810 = vpop.f32.mrf.mxu0
    %v811 = vpop.f32.mrf.mxu0
    %v812 = vadd.f32 %v181, %v811
    %v813 = vpop.f32.mrf.mxu0
    %814 = vdwg.mxu0
    %v815 = vsel %vm574, %v756, -inf
    %816 = vmax.xlane.f32.xlu0 %v815
    %v817 = vpop.xlane.xlu0 %816
    %v818 = vsel %vm574, %v759, -inf
    %819 = vmax.xlane.f32.xlu0 %v818
    %v820 = vpop.xlane.xlu0 %819
    %v821 = vsel %vm574, %v809, -inf
    %822 = vmax.xlane.f32.xlu0 %v821
    %v823 = vpop.xlane.xlu0 %822
    %v824 = vsel %vm574, %v812, -inf
    %825 = vmax.xlane.f32.xlu0 %v824
    %v826 = vpop.xlane.xlu0 %825
    %v827 = vsub.f32 %v756, %v817
    %v828 = vsub.f32 %v759, %v820
    %v829 = vsub.f32 %v809, %v823
    %v830 = vsub.f32 %v812, %v826
    %v831 = vmul.f32 %v827, 1.442695
    %v832 = vpow.pop %v831
    %v833 = vmul.f32 %v828, 1.442695
    %v834 = vpow.pop %v833
    %v835 = vmul.f32 %v829, 1.442695
    %v836 = vpow.pop %v835
    %v837 = vmul.f32 %v830, 1.442695
    %v838 = vpow.pop %v837
    %v839 = vsel %vm574, %v832, 0.0
    %840 = vadd.xlane.f32.xlu0 %v839
    %v841 = vpop.xlane.xlu0 %840
    %v842 = vsel %vm574, %v834, 0.0
    %843 = vadd.xlane.f32.xlu0 %v842
    %v844 = vpop.xlane.xlu0 %843
    %v845 = vsel %vm574, %v836, 0.0
    %846 = vadd.xlane.f32.xlu0 %v845
    %v847 = vpop.xlane.xlu0 %846
    %v848 = vsel %vm574, %v838, 0.0
    %849 = vadd.xlane.f32.xlu0 %v848
    %v850 = vpop.xlane.xlu0 %849
    %v851 = vrcp.pop %v841
    %v852 = vrcp.pop %v844
    %v853 = vrcp.pop %v847
    %v854 = vrcp.pop %v850
    %v855 = vmul.f32 %v832, %v851
    %v856 = vmul.f32 %v834, %v852
    %v857 = vmul.f32 %v836, %v853
    %v858 = vmul.f32 %v838, %v854
    %v859 = vpack.c.bf16 %v856, %v855
    %v860 = vpack.c.bf16 %v858, %v857
    %862 = vrot.lane.b32.xlu0 %v477, 96
    %v863 = vpop.permute.xlu0 %862
    %v866 = vsel %vm574, %v859, 0
    %868 = vmatprep.subr.bf16.mxu0 0
    %869 = vmatpush1.bf16.msra.mxu0 0
    %870 = vmatprep.subr.bf16.mxu0 0
    %871 = vmatpush1.bf16.msra.mxu0 0
    %872 = vmatprep.subr.bf16.mxu0 0
    %873 = vmatpush1.bf16.msra.mxu0 0
    %874 = vmatprep.subr.bf16.mxu0 0
    %875 = vmatpush1.bf16.msra.mxu0 0
    %876 = vmatprep.subr.bf16.mxu0 0
    %877 = vmatpush1.bf16.msra.mxu0 0
    %878 = vmatprep.subr.bf16.mxu0 0
    %879 = vmatpush1.bf16.msra.mxu0 0
    %880 = vmatprep.subr.bf16.mxu0 0
    %881 = vmatpush1.bf16.msra.mxu0 0
    %882 = vmatprep.subr.bf16.mxu0 0
    %883 = vmatpush1.bf16.msra.mxu0 %v863
    %884 = vmatprep.subr.bf16.mxu0 0
    %885 = vmatpush2.bf16.msra.mxu0 0
    %886 = vmatprep.subr.bf16.mxu0 0
    %887 = vmatpush2.bf16.msra.mxu0 0
    %888 = vmatprep.subr.bf16.mxu0 0
    %889 = vmatpush2.bf16.msra.mxu0 0
    %890 = vmatprep.subr.bf16.mxu0 0
    %891 = vmatpush2.bf16.msra.mxu0 0
    %892 = vmatprep.subr.bf16.mxu0 0
    %893 = vmatpush2.bf16.msra.mxu0 0
    %894 = vmatprep.subr.bf16.mxu0 0
    %895 = vmatpush2.bf16.msra.mxu0 0
    %896 = vmatprep.subr.bf16.mxu0 0
    %897 = vmatpush2.bf16.msra.mxu0 0
    %898 = vmatprep.subr.bf16.mxu0 0
    %899 = vmatpush2.bf16.msra.mxu0 0
    %900 = vmatprep.mubr.bf16.mxu0 0
    %901 = vmatmul.mubr.bf16.gmra.mxu0 %v866
    %v902 = vpop.f32.mrf.mxu0
    %v903 = vadd.f32 0.0, %v902
    %v904 = vpop.f32.mrf.mxu0
    %v905 = vpop.f32.mrf.mxu0
    %v906 = vadd.f32 0.0, %v905
    %v907 = vpop.f32.mrf.mxu0
    %908 = vdwg.mxu0
    %910 = vrot.lane.b32.xlu0 %v478, 96
    %v911 = vpop.permute.xlu0 %910
    %v914 = vsel %vm574, %v860, 0
    %916 = vmatprep.subr.bf16.mxu0 0
    %917 = vmatpush1.bf16.msra.mxu0 0
    %918 = vmatprep.subr.bf16.mxu0 0
    %919 = vmatpush1.bf16.msra.mxu0 0
    %920 = vmatprep.subr.bf16.mxu0 0
    %921 = vmatpush1.bf16.msra.mxu0 0
    %922 = vmatprep.subr.bf16.mxu0 0
    %923 = vmatpush1.bf16.msra.mxu0 0
    %924 = vmatprep.subr.bf16.mxu0 0
    %925 = vmatpush1.bf16.msra.mxu0 0
    %926 = vmatprep.subr.bf16.mxu0 0
    %927 = vmatpush1.bf16.msra.mxu0 0
    %928 = vmatprep.subr.bf16.mxu0 0
    %929 = vmatpush1.bf16.msra.mxu0 0
    %930 = vmatprep.subr.bf16.mxu0 0
    %931 = vmatpush1.bf16.msra.mxu0 %v911
    %932 = vmatprep.subr.bf16.mxu0 0
    %933 = vmatpush2.bf16.msra.mxu0 0
    %934 = vmatprep.subr.bf16.mxu0 0
    %935 = vmatpush2.bf16.msra.mxu0 0
    %936 = vmatprep.subr.bf16.mxu0 0
    %937 = vmatpush2.bf16.msra.mxu0 0
    %938 = vmatprep.subr.bf16.mxu0 0
    %939 = vmatpush2.bf16.msra.mxu0 0
    %940 = vmatprep.subr.bf16.mxu0 0
    %941 = vmatpush2.bf16.msra.mxu0 0
    %942 = vmatprep.subr.bf16.mxu0 0
    %943 = vmatpush2.bf16.msra.mxu0 0
    %944 = vmatprep.subr.bf16.mxu0 0
    %945 = vmatpush2.bf16.msra.mxu0 0
    %946 = vmatprep.subr.bf16.mxu0 0
    %947 = vmatpush2.bf16.msra.mxu0 0
    %948 = vmatprep.mubr.bf16.mxu0 0
    %949 = vmatmul.mubr.bf16.gmra.mxu0 %v914
    %v950 = vpop.f32.mrf.mxu0
    %v951 = vadd.f32 0.0, %v950
    %v952 = vpop.f32.mrf.mxu0
    %v953 = vpop.f32.mrf.mxu0
    %v954 = vadd.f32 0.0, %v953
    %v955 = vpop.f32.mrf.mxu0
    %956 = vdwg.mxu0
    %957 = vrot.lane.b32.xlu0 %v455, 64
    %v958 = vpop.permute.xlu0 %957
    %959 = vrot.lane.b32.xlu0 %v466, 64
    %v960 = vpop.permute.xlu0 %959
    %v962 = vsel %vm479, %v958, 0
    %v965 = vsel %vm479, %v960, 0
    %967 = vmatprep.subr.bf16.mxu0 0
    %968 = vmatpush1.bf16.xpose.msra.mxu0 0
    %969 = vmatprep.subr.bf16.mxu0 0
    %970 = vmatpush1.bf16.xpose.msra.mxu0 0
    %971 = vmatprep.subr.bf16.mxu0 0
    %972 = vmatpush1.bf16.xpose.msra.mxu0 0
    %973 = vmatprep.subr.bf16.mxu0 0
    %974 = vmatpush1.bf16.xpose.msra.mxu0 0
    %975 = vmatprep.subr.bf16.mxu0 0
    %976 = vmatpush1.bf16.xpose.msra.mxu0 0
    %977 = vmatprep.subr.bf16.mxu0 0
    %978 = vmatpush1.bf16.xpose.msra.mxu0 0
    %979 = vmatprep.subr.bf16.mxu0 0
    %980 = vmatpush1.bf16.xpose.msra.mxu0 0
    %981 = vmatprep.subr.bf16.mxu0 0
    %982 = vmatpush1.bf16.xpose.msra.mxu0 %v965
    %983 = vmatprep.subr.bf16.mxu0 0
    %984 = vmatpush2.bf16.xpose.msra.mxu0 0
    %985 = vmatprep.subr.bf16.mxu0 0
    %986 = vmatpush2.bf16.xpose.msra.mxu0 0
    %987 = vmatprep.subr.bf16.mxu0 0
    %988 = vmatpush2.bf16.xpose.msra.mxu0 0
    %989 = vmatprep.subr.bf16.mxu0 0
    %990 = vmatpush2.bf16.xpose.msra.mxu0 0
    %991 = vmatprep.subr.bf16.mxu0 0
    %992 = vmatpush2.bf16.xpose.msra.mxu0 0
    %993 = vmatprep.subr.bf16.mxu0 0
    %994 = vmatpush2.bf16.xpose.msra.mxu0 0
    %995 = vmatprep.subr.bf16.mxu0 0
    %996 = vmatpush2.bf16.xpose.msra.mxu0 0
    %997 = vmatprep.subr.bf16.mxu0 0
    %998 = vmatpush2.bf16.xpose.msra.mxu0 0
    %999 = vmatprep.mubr.bf16.mxu0 0
    %1000 = vmatmul.mubr.bf16.gmra.mxu0 %v962
    %v1001 = vpop.f32.mrf.mxu0
    %v1002 = vadd.f32 %v181, %v1001
    %v1003 = vpop.f32.mrf.mxu0
    %v1004 = vpop.f32.mrf.mxu0
    %v1005 = vadd.f32 %v181, %v1004
    %v1006 = vpop.f32.mrf.mxu0
    %1007 = vdwg.mxu0
    %1008 = vrot.lane.b32.xlu0 %v456, 64
    %v1009 = vpop.permute.xlu0 %1008
    %1010 = vrot.lane.b32.xlu0 %v467, 64
    %v1011 = vpop.permute.xlu0 %1010
    %v1013 = vsel %vm479, %v1009, 0
    %v1016 = vsel %vm479, %v1011, 0
    %1018 = vmatprep.subr.bf16.mxu0 0
    %1019 = vmatpush1.bf16.xpose.msra.mxu0 0
    %1020 = vmatprep.subr.bf16.mxu0 0
    %1021 = vmatpush1.bf16.xpose.msra.mxu0 0
    %1022 = vmatprep.subr.bf16.mxu0 0
    %1023 = vmatpush1.bf16.xpose.msra.mxu0 0
    %1024 = vmatprep.subr.bf16.mxu0 0
    %1025 = vmatpush1.bf16.xpose.msra.mxu0 0
    %1026 = vmatprep.subr.bf16.mxu0 0
    %1027 = vmatpush1.bf16.xpose.msra.mxu0 0
    %1028 = vmatprep.subr.bf16.mxu0 0
    %1029 = vmatpush1.bf16.xpose.msra.mxu0 0
    %1030 = vmatprep.subr.bf16.mxu0 0
    %1031 = vmatpush1.bf16.xpose.msra.mxu0 0
    %1032 = vmatprep.subr.bf16.mxu0 0
    %1033 = vmatpush1.bf16.xpose.msra.mxu0 %v1016
    %1034 = vmatprep.subr.bf16.mxu0 0
    %1035 = vmatpush2.bf16.xpose.msra.mxu0 0
    %1036 = vmatprep.subr.bf16.mxu0 0
    %1037 = vmatpush2.bf16.xpose.msra.mxu0 0
    %1038 = vmatprep.subr.bf16.mxu0 0
    %1039 = vmatpush2.bf16.xpose.msra.mxu0 0
    %1040 = vmatprep.subr.bf16.mxu0 0
    %1041 = vmatpush2.bf16.xpose.msra.mxu0 0
    %1042 = vmatprep.subr.bf16.mxu0 0
    %1043 = vmatpush2.bf16.xpose.msra.mxu0 0
    %1044 = vmatprep.subr.bf16.mxu0 0
    %1045 = vmatpush2.bf16.xpose.msra.mxu0 0
    %1046 = vmatprep.subr.bf16.mxu0 0
    %1047 = vmatpush2.bf16.xpose.msra.mxu0 0
    %1048 = vmatprep.subr.bf16.mxu0 0
    %1049 = vmatpush2.bf16.xpose.msra.mxu0 0
    %1050 = vmatprep.mubr.bf16.mxu0 0
    %1051 = vmatmul.mubr.bf16.gmra.mxu0 %v1013
    %v1052 = vpop.f32.mrf.mxu0
    %v1053 = vadd.f32 %v181, %v1052
    %v1054 = vpop.f32.mrf.mxu0
    %v1055 = vpop.f32.mrf.mxu0
    %v1056 = vadd.f32 %v181, %v1055
    %v1057 = vpop.f32.mrf.mxu0
    %1058 = vdwg.mxu0
    %v1059 = vsel %vm574, %v1002, -inf
    %1060 = vmax.xlane.f32.xlu0 %v1059
    %v1061 = vpop.xlane.xlu0 %1060
    %v1062 = vsel %vm574, %v1005, -inf
    %1063 = vmax.xlane.f32.xlu0 %v1062
    %v1064 = vpop.xlane.xlu0 %1063
    %v1065 = vsel %vm574, %v1053, -inf
    %1066 = vmax.xlane.f32.xlu0 %v1065
    %v1067 = vpop.xlane.xlu0 %1066
    %v1068 = vsel %vm574, %v1056, -inf
    %1069 = vmax.xlane.f32.xlu0 %v1068
    %v1070 = vpop.xlane.xlu0 %1069
    %v1071 = vsub.f32 %v1002, %v1061
    %v1072 = vsub.f32 %v1005, %v1064
    %v1073 = vsub.f32 %v1053, %v1067
    %v1074 = vsub.f32 %v1056, %v1070
    %v1075 = vmul.f32 %v1071, 1.442695
    %v1076 = vpow.pop %v1075
    %v1077 = vmul.f32 %v1072, 1.442695
    %v1078 = vpow.pop %v1077
    %v1079 = vmul.f32 %v1073, 1.442695
    %v1080 = vpow.pop %v1079
    %v1081 = vmul.f32 %v1074, 1.442695
    %v1082 = vpow.pop %v1081
    %v1083 = vsel %vm574, %v1076, 0.0
    %1084 = vadd.xlane.f32.xlu0 %v1083
    %v1085 = vpop.xlane.xlu0 %1084
    %v1086 = vsel %vm574, %v1078, 0.0
    %1087 = vadd.xlane.f32.xlu0 %v1086
    %v1088 = vpop.xlane.xlu0 %1087
    %v1089 = vsel %vm574, %v1080, 0.0
    %1090 = vadd.xlane.f32.xlu0 %v1089
    %v1091 = vpop.xlane.xlu0 %1090
    %v1092 = vsel %vm574, %v1082, 0.0
    %1093 = vadd.xlane.f32.xlu0 %v1092
    %v1094 = vpop.xlane.xlu0 %1093
    %v1095 = vrcp.pop %v1085
    %v1096 = vrcp.pop %v1088
    %v1097 = vrcp.pop %v1091
    %v1098 = vrcp.pop %v1094
    %v1099 = vmul.f32 %v1076, %v1095
    %v1100 = vmul.f32 %v1078, %v1096
    %v1101 = vmul.f32 %v1080, %v1097
    %v1102 = vmul.f32 %v1082, %v1098
    %v1103 = vpack.c.bf16 %v1100, %v1099
    %v1104 = vpack.c.bf16 %v1102, %v1101
    %1105 = vrot.lane.b32.xlu0 %v477, 64
    %v1106 = vpop.permute.xlu0 %1105
    %v1109 = vsel %vm574, %v1103, 0
    %1111 = vmatprep.subr.bf16.mxu0 0
    %1112 = vmatpush1.bf16.msra.mxu0 0
    %1113 = vmatprep.subr.bf16.mxu0 0
    %1114 = vmatpush1.bf16.msra.mxu0 0
    %1115 = vmatprep.subr.bf16.mxu0 0
    %1116 = vmatpush1.bf16.msra.mxu0 0
    %1117 = vmatprep.subr.bf16.mxu0 0
    %1118 = vmatpush1.bf16.msra.mxu0 0
    %1119 = vmatprep.subr.bf16.mxu0 0
    %1120 = vmatpush1.bf16.msra.mxu0 0
    %1121 = vmatprep.subr.bf16.mxu0 0
    %1122 = vmatpush1.bf16.msra.mxu0 0
    %1123 = vmatprep.subr.bf16.mxu0 0
    %1124 = vmatpush1.bf16.msra.mxu0 0
    %1125 = vmatprep.subr.bf16.mxu0 0
    %1126 = vmatpush1.bf16.msra.mxu0 %v1106
    %1127 = vmatprep.subr.bf16.mxu0 0
    %1128 = vmatpush2.bf16.msra.mxu0 0
    %1129 = vmatprep.subr.bf16.mxu0 0
    %1130 = vmatpush2.bf16.msra.mxu0 0
    %1131 = vmatprep.subr.bf16.mxu0 0
    %1132 = vmatpush2.bf16.msra.mxu0 0
    %1133 = vmatprep.subr.bf16.mxu0 0
    %1134 = vmatpush2.bf16.msra.mxu0 0
    %1135 = vmatprep.subr.bf16.mxu0 0
    %1136 = vmatpush2.bf16.msra.mxu0 0
    %1137 = vmatprep.subr.bf16.mxu0 0
    %1138 = vmatpush2.bf16.msra.mxu0 0
    %1139 = vmatprep.subr.bf16.mxu0 0
    %1140 = vmatpush2.bf16.msra.mxu0 0
    %1141 = vmatprep.subr.bf16.mxu0 0
    %1142 = vmatpush2.bf16.msra.mxu0 0
    %1143 = vmatprep.mubr.bf16.mxu0 0
    %1144 = vmatmul.mubr.bf16.gmra.mxu0 %v1109
    %v1145 = vpop.f32.mrf.mxu0
    %v1146 = vadd.f32 0.0, %v1145
    %v1147 = vpop.f32.mrf.mxu0
    %v1148 = vpop.f32.mrf.mxu0
    %v1149 = vadd.f32 0.0, %v1148
    %v1150 = vpop.f32.mrf.mxu0
    %1151 = vdwg.mxu0
    %1152 = vrot.lane.b32.xlu0 %v478, 64
    %v1153 = vpop.permute.xlu0 %1152
    %v1156 = vsel %vm574, %v1104, 0
    %1158 = vmatprep.subr.bf16.mxu0 0
    %1159 = vmatpush1.bf16.msra.mxu0 0
    %1160 = vmatprep.subr.bf16.mxu0 0
    %1161 = vmatpush1.bf16.msra.mxu0 0
    %1162 = vmatprep.subr.bf16.mxu0 0
    %1163 = vmatpush1.bf16.msra.mxu0 0
    %1164 = vmatprep.subr.bf16.mxu0 0
    %1165 = vmatpush1.bf16.msra.mxu0 0
    %1166 = vmatprep.subr.bf16.mxu0 0
    %1167 = vmatpush1.bf16.msra.mxu0 0
    %1168 = vmatprep.subr.bf16.mxu0 0
    %1169 = vmatpush1.bf16.msra.mxu0 0
    %1170 = vmatprep.subr.bf16.mxu0 0
    %1171 = vmatpush1.bf16.msra.mxu0 0
    %1172 = vmatprep.subr.bf16.mxu0 0
    %1173 = vmatpush1.bf16.msra.mxu0 %v1153
    %1174 = vmatprep.subr.bf16.mxu0 0
    %1175 = vmatpush2.bf16.msra.mxu0 0
    %1176 = vmatprep.subr.bf16.mxu0 0
    %1177 = vmatpush2.bf16.msra.mxu0 0
    %1178 = vmatprep.subr.bf16.mxu0 0
    %1179 = vmatpush2.bf16.msra.mxu0 0
    %1180 = vmatprep.subr.bf16.mxu0 0
    %1181 = vmatpush2.bf16.msra.mxu0 0
    %1182 = vmatprep.subr.bf16.mxu0 0
    %1183 = vmatpush2.bf16.msra.mxu0 0
    %1184 = vmatprep.subr.bf16.mxu0 0
    %1185 = vmatpush2.bf16.msra.mxu0 0
    %1186 = vmatprep.subr.bf16.mxu0 0
    %1187 = vmatpush2.bf16.msra.mxu0 0
    %1188 = vmatprep.subr.bf16.mxu0 0
    %1189 = vmatpush2.bf16.msra.mxu0 0
    %1190 = vmatprep.mubr.bf16.mxu0 0
    %1191 = vmatmul.mubr.bf16.gmra.mxu0 %v1156
    %v1192 = vpop.f32.mrf.mxu0
    %v1193 = vadd.f32 0.0, %v1192
    %v1194 = vpop.f32.mrf.mxu0
    %v1195 = vpop.f32.mrf.mxu0
    %v1196 = vadd.f32 0.0, %v1195
    %v1197 = vpop.f32.mrf.mxu0
    %1198 = vdwg.mxu0
    %1199 = vrot.lane.b32.xlu0 %v455, 32
    %v1200 = vpop.permute.xlu0 %1199
    %1201 = vrot.lane.b32.xlu0 %v466, 32
    %v1202 = vpop.permute.xlu0 %1201
    %v1204 = vsel %vm479, %v1200, 0
    %v1207 = vsel %vm479, %v1202, 0
    %1209 = vmatprep.subr.bf16.mxu0 0
    %1210 = vmatpush1.bf16.xpose.msra.mxu0 0
    %1211 = vmatprep.subr.bf16.mxu0 0
    %1212 = vmatpush1.bf16.xpose.msra.mxu0 0
    %1213 = vmatprep.subr.bf16.mxu0 0
    %1214 = vmatpush1.bf16.xpose.msra.mxu0 0
    %1215 = vmatprep.subr.bf16.mxu0 0
    %1216 = vmatpush1.bf16.xpose.msra.mxu0 0
    %1217 = vmatprep.subr.bf16.mxu0 0
    %1218 = vmatpush1.bf16.xpose.msra.mxu0 0
    %1219 = vmatprep.subr.bf16.mxu0 0
    %1220 = vmatpush1.bf16.xpose.msra.mxu0 0
    %1221 = vmatprep.subr.bf16.mxu0 0
    %1222 = vmatpush1.bf16.xpose.msra.mxu0 0
    %1223 = vmatprep.subr.bf16.mxu0 0
    %1224 = vmatpush1.bf16.xpose.msra.mxu0 %v1207
    %1225 = vmatprep.subr.bf16.mxu0 0
    %1226 = vmatpush2.bf16.xpose.msra.mxu0 0
    %1227 = vmatprep.subr.bf16.mxu0 0
    %1228 = vmatpush2.bf16.xpose.msra.mxu0 0
    %1229 = vmatprep.subr.bf16.mxu0 0
    %1230 = vmatpush2.bf16.xpose.msra.mxu0 0
    %1231 = vmatprep.subr.bf16.mxu0 0
    %1232 = vmatpush2.bf16.xpose.msra.mxu0 0
    %1233 = vmatprep.subr.bf16.mxu0 0
    %1234 = vmatpush2.bf16.xpose.msra.mxu0 0
    %1235 = vmatprep.subr.bf16.mxu0 0
    %1236 = vmatpush2.bf16.xpose.msra.mxu0 0
    %1237 = vmatprep.subr.bf16.mxu0 0
    %1238 = vmatpush2.bf16.xpose.msra.mxu0 0
    %1239 = vmatprep.subr.bf16.mxu0 0
    %1240 = vmatpush2.bf16.xpose.msra.mxu0 0
    %1241 = vmatprep.mubr.bf16.mxu0 0
    %1242 = vmatmul.mubr.bf16.gmra.mxu0 %v1204
    %v1243 = vpop.f32.mrf.mxu0
    %v1244 = vadd.f32 %v181, %v1243
    %v1245 = vpop.f32.mrf.mxu0
    %v1246 = vpop.f32.mrf.mxu0
    %v1247 = vadd.f32 %v181, %v1246
    %v1248 = vpop.f32.mrf.mxu0
    %1249 = vdwg.mxu0
    %1250 = vrot.lane.b32.xlu0 %v456, 32
    %v1251 = vpop.permute.xlu0 %1250
    %1252 = vrot.lane.b32.xlu0 %v467, 32
    %v1253 = vpop.permute.xlu0 %1252
    %v1255 = vsel %vm479, %v1251, 0
    %v1258 = vsel %vm479, %v1253, 0
    %1260 = vmatprep.subr.bf16.mxu0 0
    %1261 = vmatpush1.bf16.xpose.msra.mxu0 0
    %1262 = vmatprep.subr.bf16.mxu0 0
    %1263 = vmatpush1.bf16.xpose.msra.mxu0 0
    %1264 = vmatprep.subr.bf16.mxu0 0
    %1265 = vmatpush1.bf16.xpose.msra.mxu0 0
    %1266 = vmatprep.subr.bf16.mxu0 0
    %1267 = vmatpush1.bf16.xpose.msra.mxu0 0
    %1268 = vmatprep.subr.bf16.mxu0 0
    %1269 = vmatpush1.bf16.xpose.msra.mxu0 0
    %1270 = vmatprep.subr.bf16.mxu0 0
    %1271 = vmatpush1.bf16.xpose.msra.mxu0 0
    %1272 = vmatprep.subr.bf16.mxu0 0
    %1273 = vmatpush1.bf16.xpose.msra.mxu0 0
    %1274 = vmatprep.subr.bf16.mxu0 0
    %1275 = vmatpush1.bf16.xpose.msra.mxu0 %v1258
    %1276 = vmatprep.subr.bf16.mxu0 0
    %1277 = vmatpush2.bf16.xpose.msra.mxu0 0
    %1278 = vmatprep.subr.bf16.mxu0 0
    %1279 = vmatpush2.bf16.xpose.msra.mxu0 0
    %1280 = vmatprep.subr.bf16.mxu0 0
    %1281 = vmatpush2.bf16.xpose.msra.mxu0 0
    %1282 = vmatprep.subr.bf16.mxu0 0
    %1283 = vmatpush2.bf16.xpose.msra.mxu0 0
    %1284 = vmatprep.subr.bf16.mxu0 0
    %1285 = vmatpush2.bf16.xpose.msra.mxu0 0
    %1286 = vmatprep.subr.bf16.mxu0 0
    %1287 = vmatpush2.bf16.xpose.msra.mxu0 0
    %1288 = vmatprep.subr.bf16.mxu0 0
    %1289 = vmatpush2.bf16.xpose.msra.mxu0 0
    %1290 = vmatprep.subr.bf16.mxu0 0
    %1291 = vmatpush2.bf16.xpose.msra.mxu0 0
    %1292 = vmatprep.mubr.bf16.mxu0 0
    %1293 = vmatmul.mubr.bf16.gmra.mxu0 %v1255
    %v1294 = vpop.f32.mrf.mxu0
    %v1295 = vadd.f32 %v181, %v1294
    %v1296 = vpop.f32.mrf.mxu0
    %v1297 = vpop.f32.mrf.mxu0
    %v1298 = vadd.f32 %v181, %v1297
    %v1299 = vpop.f32.mrf.mxu0
    %1300 = vdwg.mxu0
    %v1301 = vsel %vm574, %v1244, -inf
    %1302 = vmax.xlane.f32.xlu0 %v1301
    %v1303 = vpop.xlane.xlu0 %1302
    %v1304 = vsel %vm574, %v1247, -inf
    %1305 = vmax.xlane.f32.xlu0 %v1304
    %v1306 = vpop.xlane.xlu0 %1305
    %v1307 = vsel %vm574, %v1295, -inf
    %1308 = vmax.xlane.f32.xlu0 %v1307
    %v1309 = vpop.xlane.xlu0 %1308
    %v1310 = vsel %vm574, %v1298, -inf
    %1311 = vmax.xlane.f32.xlu0 %v1310
    %v1312 = vpop.xlane.xlu0 %1311
    %v1313 = vsub.f32 %v1244, %v1303
    %v1314 = vsub.f32 %v1247, %v1306
    %v1315 = vsub.f32 %v1295, %v1309
    %v1316 = vsub.f32 %v1298, %v1312
    %v1317 = vmul.f32 %v1313, 1.442695
    %v1318 = vpow.pop %v1317
    %v1319 = vmul.f32 %v1314, 1.442695
    %v1320 = vpow.pop %v1319
    %v1321 = vmul.f32 %v1315, 1.442695
    %v1322 = vpow.pop %v1321
    %v1323 = vmul.f32 %v1316, 1.442695
    %v1324 = vpow.pop %v1323
    %v1325 = vsel %vm574, %v1318, 0.0
    %1326 = vadd.xlane.f32.xlu0 %v1325
    %v1327 = vpop.xlane.xlu0 %1326
    %v1328 = vsel %vm574, %v1320, 0.0
    %1329 = vadd.xlane.f32.xlu0 %v1328
    %v1330 = vpop.xlane.xlu0 %1329
    %v1331 = vsel %vm574, %v1322, 0.0
    %1332 = vadd.xlane.f32.xlu0 %v1331
    %v1333 = vpop.xlane.xlu0 %1332
    %v1334 = vsel %vm574, %v1324, 0.0
    %1335 = vadd.xlane.f32.xlu0 %v1334
    %v1336 = vpop.xlane.xlu0 %1335
    %v1337 = vrcp.pop %v1327
    %v1338 = vrcp.pop %v1330
    %v1339 = vrcp.pop %v1333
    %v1340 = vrcp.pop %v1336
    %v1341 = vmul.f32 %v1318, %v1337
    %v1342 = vmul.f32 %v1320, %v1338
    %v1343 = vmul.f32 %v1322, %v1339
    %v1344 = vmul.f32 %v1324, %v1340
    %v1345 = vpack.c.bf16 %v1342, %v1341
    %v1346 = vpack.c.bf16 %v1344, %v1343
    %1347 = vrot.lane.b32.xlu0 %v477, 32
    %v1348 = vpop.permute.xlu0 %1347
    %v1351 = vsel %vm574, %v1345, 0
    %1353 = vmatprep.subr.bf16.mxu0 0
    %1354 = vmatpush1.bf16.msra.mxu0 0
    %1355 = vmatprep.subr.bf16.mxu0 0
    %1356 = vmatpush1.bf16.msra.mxu0 0
    %1357 = vmatprep.subr.bf16.mxu0 0
    %1358 = vmatpush1.bf16.msra.mxu0 0
    %1359 = vmatprep.subr.bf16.mxu0 0
    %1360 = vmatpush1.bf16.msra.mxu0 0
    %1361 = vmatprep.subr.bf16.mxu0 0
    %1362 = vmatpush1.bf16.msra.mxu0 0
    %1363 = vmatprep.subr.bf16.mxu0 0
    %1364 = vmatpush1.bf16.msra.mxu0 0
    %1365 = vmatprep.subr.bf16.mxu0 0
    %1366 = vmatpush1.bf16.msra.mxu0 0
    %1367 = vmatprep.subr.bf16.mxu0 0
    %1368 = vmatpush1.bf16.msra.mxu0 %v1348
    %1369 = vmatprep.subr.bf16.mxu0 0
    %1370 = vmatpush2.bf16.msra.mxu0 0
    %1371 = vmatprep.subr.bf16.mxu0 0
    %1372 = vmatpush2.bf16.msra.mxu0 0
    %1373 = vmatprep.subr.bf16.mxu0 0
    %1374 = vmatpush2.bf16.msra.mxu0 0
    %1375 = vmatprep.subr.bf16.mxu0 0
    %1376 = vmatpush2.bf16.msra.mxu0 0
    %1377 = vmatprep.subr.bf16.mxu0 0
    %1378 = vmatpush2.bf16.msra.mxu0 0
    %1379 = vmatprep.subr.bf16.mxu0 0
    %1380 = vmatpush2.bf16.msra.mxu0 0
    %1381 = vmatprep.subr.bf16.mxu0 0
    %1382 = vmatpush2.bf16.msra.mxu0 0
    %1383 = vmatprep.subr.bf16.mxu0 0
    %1384 = vmatpush2.bf16.msra.mxu0 0
    %1385 = vmatprep.mubr.bf16.mxu0 0
    %1386 = vmatmul.mubr.bf16.gmra.mxu0 %v1351
    %v1387 = vpop.f32.mrf.mxu0
    %v1388 = vadd.f32 0.0, %v1387
    %v1389 = vpop.f32.mrf.mxu0
    %v1390 = vpop.f32.mrf.mxu0
    %v1391 = vadd.f32 0.0, %v1390
    %v1392 = vpop.f32.mrf.mxu0
    %1393 = vdwg.mxu0
    %1394 = vrot.lane.b32.xlu0 %v478, 32
    %v1395 = vpop.permute.xlu0 %1394
    %v1398 = vsel %vm574, %v1346, 0
    %1400 = vmatprep.subr.bf16.mxu0 0
    %1401 = vmatpush1.bf16.msra.mxu0 0
    %1402 = vmatprep.subr.bf16.mxu0 0
    %1403 = vmatpush1.bf16.msra.mxu0 0
    %1404 = vmatprep.subr.bf16.mxu0 0
    %1405 = vmatpush1.bf16.msra.mxu0 0
    %1406 = vmatprep.subr.bf16.mxu0 0
    %1407 = vmatpush1.bf16.msra.mxu0 0
    %1408 = vmatprep.subr.bf16.mxu0 0
    %1409 = vmatpush1.bf16.msra.mxu0 0
    %1410 = vmatprep.subr.bf16.mxu0 0
    %1411 = vmatpush1.bf16.msra.mxu0 0
    %1412 = vmatprep.subr.bf16.mxu0 0
    %1413 = vmatpush1.bf16.msra.mxu0 0
    %1414 = vmatprep.subr.bf16.mxu0 0
    %1415 = vmatpush1.bf16.msra.mxu0 %v1395
    %1416 = vmatprep.subr.bf16.mxu0 0
    %1417 = vmatpush2.bf16.msra.mxu0 0
    %1418 = vmatprep.subr.bf16.mxu0 0
    %1419 = vmatpush2.bf16.msra.mxu0 0
    %1420 = vmatprep.subr.bf16.mxu0 0
    %1421 = vmatpush2.bf16.msra.mxu0 0
    %1422 = vmatprep.subr.bf16.mxu0 0
    %1423 = vmatpush2.bf16.msra.mxu0 0
    %1424 = vmatprep.subr.bf16.mxu0 0
    %1425 = vmatpush2.bf16.msra.mxu0 0
    %1426 = vmatprep.subr.bf16.mxu0 0
    %1427 = vmatpush2.bf16.msra.mxu0 0
    %1428 = vmatprep.subr.bf16.mxu0 0
    %1429 = vmatpush2.bf16.msra.mxu0 0
    %1430 = vmatprep.subr.bf16.mxu0 0
    %1431 = vmatpush2.bf16.msra.mxu0 0
    %1432 = vmatprep.mubr.bf16.mxu0 0
    %1433 = vmatmul.mubr.bf16.gmra.mxu0 %v1398
    %v1434 = vpop.f32.mrf.mxu0
    %v1435 = vadd.f32 0.0, %v1434
    %v1436 = vpop.f32.mrf.mxu0
    %v1437 = vpop.f32.mrf.mxu0
    %v1438 = vadd.f32 0.0, %v1437
    %v1439 = vpop.f32.mrf.mxu0
    %1440 = vdwg.mxu0
    %1445 = vrot.lane.b32.xlu0 %v903, 32
    %v1446 = vpop.permute.xlu0 %1445
    %1447 = vrot.lane.b32.xlu0 %v906, 32
    %v1448 = vpop.permute.xlu0 %1447
    %1449 = vrot.lane.b32.xlu0 %v951, 32
    %v1450 = vpop.permute.xlu0 %1449
    %1451 = vrot.lane.b32.xlu0 %v954, 32
    %v1452 = vpop.permute.xlu0 %1451
    %1461 = vrot.lane.b32.xlu0 %v1146, 64
    %v1462 = vpop.permute.xlu0 %1461
    %1463 = vrot.lane.b32.xlu0 %v1149, 64
    %v1464 = vpop.permute.xlu0 %1463
    %1465 = vrot.lane.b32.xlu0 %v1193, 64
    %v1466 = vpop.permute.xlu0 %1465
    %1467 = vrot.lane.b32.xlu0 %v1196, 64
    %v1468 = vpop.permute.xlu0 %1467
    %1477 = vrot.lane.b32.xlu0 %v1388, 96
    %v1478 = vpop.permute.xlu0 %1477
    %1479 = vrot.lane.b32.xlu0 %v1391, 96
    %v1480 = vpop.permute.xlu0 %1479
    %1481 = vrot.lane.b32.xlu0 %v1435, 96
    %v1482 = vpop.permute.xlu0 %1481
    %1483 = vrot.lane.b32.xlu0 %v1438, 96
    %v1484 = vpop.permute.xlu0 %1483
    %v1489 = vsel %vm479, %v659, %v1446
    %v1490 = vsel %vm479, %v662, %v1448
    %v1491 = vsel %vm479, %v703, %v1450
    %v1492 = vsel %vm479, %v706, %v1452
    %vm1493 = vcmask 523264
    %v1494 = vsel %vm1493, %v1489, %v1462
    %v1495 = vsel %vm1493, %v1490, %v1464
    %v1496 = vsel %vm1493, %v1491, %v1466
    %v1497 = vsel %vm1493, %v1492, %v1468
    %vm1498 = vcmask 785408
    %v1499 = vsel %vm1498, %v1494, %v1478
    %v1500 = vsel %vm1498, %v1495, %v1480
    %v1501 = vsel %vm1498, %v1496, %v1482
    %v1502 = vsel %vm1498, %v1497, %v1484
    %v1503 = vpack.c.bf16 %v1500, %v1499
    %v1504 = vpack.c.bf16 %v1502, %v1501
    %v1505 = vld [vmem:[#allocation2 + $0xc] sm:$0xf]
    %v1506 = vld [vmem:[#allocation2 + $0x24] sm:$0xf]
    %v1507 = vld [vmem:[#allocation2 + $0x3c] sm:$0xf]
    %v1508 = vld [vmem:[#allocation2 + $0x54] sm:$0xf]
    %v1509 = vld [vmem:[#allocation2 + $0x6c] sm:$0xf]
    %v1510 = vld [vmem:[#allocation2 + $0x84] sm:$0xf]
    %v1511 = vld [vmem:[#allocation2 + $0x9c] sm:$0xf]
    %v1512 = vld [vmem:[#allocation2 + $0xb4] sm:$0xf]
    %v1513 = vld [vmem:[#allocation2 + $0xcc] sm:$0xf]
    %v1514 = vld [vmem:[#allocation2 + $0xe4] sm:$0xf]
    %v1515 = vld [vmem:[#allocation2 + $0xfc] sm:$0xf]
    %v1516 = vld [vmem:[#allocation2 + $0x114] sm:$0xf]
    %v1517 = vld [vmem:[#allocation2 + $0x12c] sm:$0xf]
    %v1518 = vld [vmem:[#allocation2 + $0x144] sm:$0xf]
    %v1519 = vld [vmem:[#allocation2 + $0x15c] sm:$0xf]
    %v1520 = vld [vmem:[#allocation2 + $0x174] sm:$0xf]
    %v1521 = vld [vmem:[%s2 + $0x3] sm:$0x1]
    %v1522 = vlaneseq
    %v1523 = vshrl.u32 %v1522, 7
    %v1524 = vsub.s32 0, %v1523
    %v1525 = vrot.slane %v1521, %v1524
    %v1542 = vunpack.c.l.b16 %v1505
    %v1543 = vunpack.c.l.b16 %v1506
    %v1544 = vunpack.c.l.b16 %v1507
    %v1545 = vunpack.c.l.b16 %v1508
    %v1546 = vunpack.c.l.b16 %v1509
    %v1547 = vunpack.c.l.b16 %v1510
    %v1548 = vunpack.c.l.b16 %v1511
    %v1549 = vunpack.c.l.b16 %v1512
    %v1550 = vunpack.c.l.b16 %v1513
    %v1551 = vunpack.c.l.b16 %v1514
    %v1552 = vunpack.c.l.b16 %v1515
    %v1553 = vunpack.c.l.b16 %v1516
    %v1554 = vunpack.c.l.b16 %v1517
    %v1555 = vunpack.c.l.b16 %v1518
    %v1556 = vunpack.c.l.b16 %v1519
    %v1557 = vunpack.c.l.b16 %v1520
    %v1558 = vpack.c.b16 %v1543, %v1542
    %v1559 = vpack.c.b16 %v1545, %v1544
    %v1560 = vpack.c.b16 %v1547, %v1546
    %v1561 = vpack.c.b16 %v1549, %v1548
    %v1562 = vpack.c.b16 %v1551, %v1550
    %v1563 = vpack.c.b16 %v1553, %v1552
    %v1564 = vpack.c.b16 %v1555, %v1554
    %v1565 = vpack.c.b16 %v1557, %v1556
    %1574 = vmatprep.subr.bf16.mxu0 0
    %1575 = vmatpush1.bf16.msra.mxu0 %v1565
    %1576 = vmatprep.subr.bf16.mxu0 0
    %1577 = vmatpush1.bf16.msra.mxu0 %v1564
    %1578 = vmatprep.subr.bf16.mxu0 0
    %1579 = vmatpush1.bf16.msra.mxu0 %v1563
    %1580 = vmatprep.subr.bf16.mxu0 0
    %1581 = vmatpush1.bf16.msra.mxu0 %v1562
    %1582 = vmatprep.subr.bf16.mxu0 0
    %1583 = vmatpush1.bf16.msra.mxu0 %v1561
    %1584 = vmatprep.subr.bf16.mxu0 0
    %1585 = vmatpush1.bf16.msra.mxu0 %v1560
    %1586 = vmatprep.subr.bf16.mxu0 0
    %1587 = vmatpush1.bf16.msra.mxu0 %v1559
    %1588 = vmatprep.subr.bf16.mxu0 0
    %1589 = vmatpush1.bf16.msra.mxu0 %v1558
    %1590 = vmatprep.subr.bf16.mxu0 0
    %1591 = vmatpush2.bf16.msra.mxu0 0
    %1592 = vmatprep.subr.bf16.mxu0 0
    %1593 = vmatpush2.bf16.msra.mxu0 0
    %1594 = vmatprep.subr.bf16.mxu0 0
    %1595 = vmatpush2.bf16.msra.mxu0 0
    %1596 = vmatprep.subr.bf16.mxu0 0
    %1597 = vmatpush2.bf16.msra.mxu0 0
    %1598 = vmatprep.subr.bf16.mxu0 0
    %1599 = vmatpush2.bf16.msra.mxu0 0
    %1600 = vmatprep.subr.bf16.mxu0 0
    %1601 = vmatpush2.bf16.msra.mxu0 0
    %1602 = vmatprep.subr.bf16.mxu0 0
    %1603 = vmatpush2.bf16.msra.mxu0 0
    %1604 = vmatprep.subr.bf16.mxu0 0
    %1605 = vmatpush2.bf16.msra.mxu0 0
    %1606 = vmatprep.mubr.bf16.mxu0 0
    %1607 = vmatmul.mubr.bf16.gmra.mxu0 %v1503
    %v1608 = vpop.f32.mrf.mxu0
    %v1609 = vadd.f32 %v1525, %v1608
    %v1610 = vpop.f32.mrf.mxu0
    %v1611 = vpop.f32.mrf.mxu0
    %v1612 = vadd.f32 %v1525, %v1611
    %v1613 = vpop.f32.mrf.mxu0
    %1614 = vmatprep.mubr.bf16.mxu0 0
    %1615 = vmatmul.mubr.bf16.gmra.mxu0 %v1504
    %v1616 = vpop.f32.mrf.mxu0
    %v1617 = vadd.f32 %v1525, %v1616
    %v1618 = vpop.f32.mrf.mxu0
    %v1619 = vpop.f32.mrf.mxu0
    %v1620 = vadd.f32 %v1525, %v1619
    %v1621 = vpop.f32.mrf.mxu0
    %1622 = vdwg.mxu0
    %v1623 = vadd.f32 %v176, %v1609
    %v1624 = vadd.f32 %v178, %v1612
    %v1625 = vadd.f32 %v177, %v1617
    %v1626 = vadd.f32 %v179, %v1620
    %v1627 = vld [vmem:[%s2 + $0x6] sm:$0x1]
    %v1628 = vld [vmem:[%s2 + $0x7] sm:$0x1]
    %1629 = vadd.xlane.f32.xlu0 %v1623
    %v1630 = vpop.xlane.xlu0 %1629
    %1631 = vadd.xlane.f32.xlu0 %v1624
    %v1632 = vpop.xlane.xlu0 %1631
    %1633 = vadd.xlane.f32.xlu0 %v1625
    %v1634 = vpop.xlane.xlu0 %1633
    %1635 = vadd.xlane.f32.xlu0 %v1626
    %v1636 = vpop.xlane.xlu0 %1635
    %v1637 = vmul.f32 %v1630, 0.03125
    %v1638 = vmul.f32 %v1632, 0.03125
    %v1639 = vmul.f32 %v1634, 0.03125
    %v1640 = vmul.f32 %v1636, 0.03125
    %v1641 = vsub.f32 %v1623, %v1637
    %v1642 = vsub.f32 %v1624, %v1638
    %v1643 = vsub.f32 %v1625, %v1639
    %v1644 = vsub.f32 %v1626, %v1640
    %v1645 = vmul.f32 %v1641, %v54
    %v1646 = vmul.f32 %v1642, %v54
    %v1647 = vmul.f32 %v1643, %v54
    %v1648 = vmul.f32 %v1644, %v54
    %v1649 = vmul.f32 %v1645, %v1645
    %v1650 = vmul.f32 %v1646, %v1646
    %v1651 = vmul.f32 %v1647, %v1647
    %v1652 = vmul.f32 %v1648, %v1648
    %1653 = vadd.xlane.f32.xlu0 %v1649
    %v1654 = vpop.xlane.xlu0 %1653
    %1655 = vadd.xlane.f32.xlu0 %v1650
    %v1656 = vpop.xlane.xlu0 %1655
    %1657 = vadd.xlane.f32.xlu0 %v1651
    %v1658 = vpop.xlane.xlu0 %1657
    %1659 = vadd.xlane.f32.xlu0 %v1652
    %v1660 = vpop.xlane.xlu0 %1659
    %v1661 = vmul.f32 %v1654, 0.03125
    %v1662 = vmul.f32 %v1656, 0.03125
    %v1663 = vmul.f32 %v1658, 0.03125
    %v1664 = vmul.f32 %v1660, 0.03125
    %v1665 = vadd.f32 %v1661, 1e-05
    %v1666 = vadd.f32 %v1662, 1e-05
    %v1667 = vadd.f32 %v1663, 1e-05
    %v1668 = vadd.f32 %v1664, 1e-05
    %v1669 = vrsqrt.pop %v1665
    %v1670 = vrsqrt.pop %v1666
    %v1671 = vrsqrt.pop %v1667
    %v1672 = vrsqrt.pop %v1668
    %v1673 = vmul.f32 %v1645, %v1669
    %v1674 = vmul.f32 %v1646, %v1670
    %v1675 = vmul.f32 %v1647, %v1671
    %v1676 = vmul.f32 %v1648, %v1672
    %v1677 = vlaneseq
    %v1678 = vshrl.u32 %v1677, 7
    %v1679 = vsub.s32 0, %v1678
    %v1680 = vrot.slane %v1627, %v1679
    %v1681 = vmul.f32 %v1673, %v1680
    %v1682 = vmul.f32 %v1674, %v1680
    %v1683 = vmul.f32 %v1675, %v1680
    %v1684 = vmul.f32 %v1676, %v1680
    %v1685 = vlaneseq
    %v1686 = vshrl.u32 %v1685, 7
    %v1687 = vsub.s32 0, %v1686
    %v1688 = vrot.slane %v1628, %v1687
    %v1689 = vadd.f32 %v1681, %v1688
    %v1690 = vadd.f32 %v1682, %v1688
    %v1691 = vadd.f32 %v1683, %v1688
    %v1692 = vadd.f32 %v1684, %v1688
    %v1693 = vpack.c.bf16 %v1690, %v1689
    %v1694 = vpack.c.bf16 %v1692, %v1691
    %v1695 = vld [vmem:[#allocation2 + $0x10] sm:$0xf]
    %v1696 = vld [vmem:[#allocation2 + $0x28] sm:$0xf]
    %v1697 = vld [vmem:[#allocation2 + $0x40] sm:$0xf]
    %v1698 = vld [vmem:[#allocation2 + $0x58] sm:$0xf]
    %v1699 = vld [vmem:[#allocation2 + $0x70] sm:$0xf]
    %v1700 = vld [vmem:[#allocation2 + $0x88] sm:$0xf]
    %v1701 = vld [vmem:[#allocation2 + $0xa0] sm:$0xf]
    %v1702 = vld [vmem:[#allocation2 + $0xb8] sm:$0xf]
    %v1703 = vld [vmem:[#allocation2 + $0xd0] sm:$0xf]
    %v1704 = vld [vmem:[#allocation2 + $0xe8] sm:$0xf]
    %v1705 = vld [vmem:[#allocation2 + $0x100] sm:$0xf]
    %v1706 = vld [vmem:[#allocation2 + $0x118] sm:$0xf]
    %v1707 = vld [vmem:[#allocation2 + $0x130] sm:$0xf]
    %v1708 = vld [vmem:[#allocation2 + $0x148] sm:$0xf]
    %v1709 = vld [vmem:[#allocation2 + $0x160] sm:$0xf]
    %v1710 = vld [vmem:[#allocation2 + $0x178] sm:$0xf]
    %v1711 = vld [vmem:[%s2 + $0x4] sm:$0x1]
    %v1712 = vlaneseq
    %v1713 = vshrl.u32 %v1712, 7
    %v1714 = vsub.s32 0, %v1713
    %v1715 = vrot.slane %v1711, %v1714
    %v1732 = vunpack.c.l.b16 %v1695
    %v1733 = vunpack.c.l.b16 %v1696
    %v1734 = vunpack.c.l.b16 %v1697
    %v1735 = vunpack.c.l.b16 %v1698
    %v1736 = vunpack.c.l.b16 %v1699
    %v1737 = vunpack.c.l.b16 %v1700
    %v1738 = vunpack.c.l.b16 %v1701
    %v1739 = vunpack.c.l.b16 %v1702
    %v1740 = vunpack.c.l.b16 %v1703
    %v1741 = vunpack.c.l.b16 %v1704
    %v1742 = vunpack.c.l.b16 %v1705
    %v1743 = vunpack.c.l.b16 %v1706
    %v1744 = vunpack.c.l.b16 %v1707
    %v1745 = vunpack.c.l.b16 %v1708
    %v1746 = vunpack.c.l.b16 %v1709
    %v1747 = vunpack.c.l.b16 %v1710
    %v1748 = vpack.c.b16 %v1733, %v1732
    %v1749 = vpack.c.b16 %v1735, %v1734
    %v1750 = vpack.c.b16 %v1737, %v1736
    %v1751 = vpack.c.b16 %v1739, %v1738
    %v1752 = vpack.c.b16 %v1741, %v1740
    %v1753 = vpack.c.b16 %v1743, %v1742
    %v1754 = vpack.c.b16 %v1745, %v1744
    %v1755 = vpack.c.b16 %v1747, %v1746
    %1764 = vmatprep.subr.bf16.mxu0 0
    %1765 = vmatpush1.bf16.msra.mxu0 %v1755
    %1766 = vmatprep.subr.bf16.mxu0 0
    %1767 = vmatpush1.bf16.msra.mxu0 %v1754
    %1768 = vmatprep.subr.bf16.mxu0 0
    %1769 = vmatpush1.bf16.msra.mxu0 %v1753
    %1770 = vmatprep.subr.bf16.mxu0 0
    %1771 = vmatpush1.bf16.msra.mxu0 %v1752
    %1772 = vmatprep.subr.bf16.mxu0 0
    %1773 = vmatpush1.bf16.msra.mxu0 %v1751
    %1774 = vmatprep.subr.bf16.mxu0 0
    %1775 = vmatpush1.bf16.msra.mxu0 %v1750
    %1776 = vmatprep.subr.bf16.mxu0 0
    %1777 = vmatpush1.bf16.msra.mxu0 %v1749
    %1778 = vmatprep.subr.bf16.mxu0 0
    %1779 = vmatpush1.bf16.msra.mxu0 %v1748
    %1780 = vmatprep.subr.bf16.mxu0 0
    %1781 = vmatpush2.bf16.msra.mxu0 0
    %1782 = vmatprep.subr.bf16.mxu0 0
    %1783 = vmatpush2.bf16.msra.mxu0 0
    %1784 = vmatprep.subr.bf16.mxu0 0
    %1785 = vmatpush2.bf16.msra.mxu0 0
    %1786 = vmatprep.subr.bf16.mxu0 0
    %1787 = vmatpush2.bf16.msra.mxu0 0
    %1788 = vmatprep.subr.bf16.mxu0 0
    %1789 = vmatpush2.bf16.msra.mxu0 0
    %1790 = vmatprep.subr.bf16.mxu0 0
    %1791 = vmatpush2.bf16.msra.mxu0 0
    %1792 = vmatprep.subr.bf16.mxu0 0
    %1793 = vmatpush2.bf16.msra.mxu0 0
    %1794 = vmatprep.subr.bf16.mxu0 0
    %1795 = vmatpush2.bf16.msra.mxu0 0
    %1796 = vmatprep.mubr.bf16.mxu0 0
    %1797 = vmatmul.mubr.bf16.gmra.mxu0 %v1693
    %v1798 = vpop.f32.mrf.mxu0
    %v1799 = vadd.f32 %v1715, %v1798
    %v1800 = vpop.f32.mrf.mxu0
    %v1801 = vpop.f32.mrf.mxu0
    %v1802 = vadd.f32 %v1715, %v1801
    %v1803 = vpop.f32.mrf.mxu0
    %1804 = vmatprep.mubr.bf16.mxu0 0
    %1805 = vmatmul.mubr.bf16.gmra.mxu0 %v1694
    %v1806 = vpop.f32.mrf.mxu0
    %v1807 = vadd.f32 %v1715, %v1806
    %v1808 = vpop.f32.mrf.mxu0
    %v1809 = vpop.f32.mrf.mxu0
    %v1810 = vadd.f32 %v1715, %v1809
    %v1811 = vpop.f32.mrf.mxu0
    %1812 = vdwg.mxu0
    %v1813 = vmul.f32 %v1799, 0.5
    %v1814 = vmul.f32 %v1802, 0.5
    %v1815 = vmul.f32 %v1807, 0.5
    %v1816 = vmul.f32 %v1810, 0.5
    %v1817 = vmul.f32 %v1799, 0.044715
    %v1818 = vmul.f32 %v1802, 0.044715
    %v1819 = vmul.f32 %v1807, 0.044715
    %v1820 = vmul.f32 %v1810, 0.044715
    %v1821 = vmul.f32 %v1817, %v1799
    %v1822 = vmul.f32 %v1818, %v1802
    %v1823 = vmul.f32 %v1819, %v1807
    %v1824 = vmul.f32 %v1820, %v1810
    %v1825 = vmul.f32 %v1821, %v1799
    %v1826 = vmul.f32 %v1822, %v1802
    %v1827 = vmul.f32 %v1823, %v1807
    %v1828 = vmul.f32 %v1824, %v1810
    %v1829 = vadd.f32 %v1799, %v1825
    %v1830 = vadd.f32 %v1802, %v1826
    %v1831 = vadd.f32 %v1807, %v1827
    %v1832 = vadd.f32 %v1810, %v1828
    %v1833 = vmul.f32 %v1829, 0.7978846
    %v1834 = vmul.f32 %v1830, 0.7978846
    %v1835 = vmul.f32 %v1831, 0.7978846
    %v1836 = vmul.f32 %v1832, 0.7978846
    %v1837 = vtanh.pop %v1833
    %v1838 = vtanh.pop %v1834
    %v1839 = vtanh.pop %v1835
    %v1840 = vtanh.pop %v1836
    %v1841 = vadd.f32 %v1837, 1.0
    %v1842 = vadd.f32 %v1838, 1.0
    %v1843 = vadd.f32 %v1839, 1.0
    %v1844 = vadd.f32 %v1840, 1.0
    %v1845 = vmul.f32 %v1813, %v1841
    %v1846 = vmul.f32 %v1814, %v1842
    %v1847 = vmul.f32 %v1815, %v1843
    %v1848 = vmul.f32 %v1816, %v1844
    %v1849 = vpack.c.bf16 %v1846, %v1845
    %v1850 = vpack.c.bf16 %v1848, %v1847
    %v1851 = vld [vmem:[#allocation2 + $0x14] sm:$0xf]
    %v1852 = vld [vmem:[#allocation2 + $0x2c] sm:$0xf]
    %v1853 = vld [vmem:[#allocation2 + $0x44] sm:$0xf]
    %v1854 = vld [vmem:[#allocation2 + $0x5c] sm:$0xf]
    %v1855 = vld [vmem:[#allocation2 + $0x74] sm:$0xf]
    %v1856 = vld [vmem:[#allocation2 + $0x8c] sm:$0xf]
    %v1857 = vld [vmem:[#allocation2 + $0xa4] sm:$0xf]
    %v1858 = vld [vmem:[#allocation2 + $0xbc] sm:$0xf]
    %v1859 = vld [vmem:[#allocation2 + $0xd4] sm:$0xf]
    %v1860 = vld [vmem:[#allocation2 + $0xec] sm:$0xf]
    %v1861 = vld [vmem:[#allocation2 + $0x104] sm:$0xf]
    %v1862 = vld [vmem:[#allocation2 + $0x11c] sm:$0xf]
    %v1863 = vld [vmem:[#allocation2 + $0x134] sm:$0xf]
    %v1864 = vld [vmem:[#allocation2 + $0x14c] sm:$0xf]
    %v1865 = vld [vmem:[#allocation2 + $0x164] sm:$0xf]
    %v1866 = vld [vmem:[#allocation2 + $0x17c] sm:$0xf]
    %v1867 = vld [vmem:[%s2 + $0x5] sm:$0x1]
    %v1868 = vlaneseq
    %v1869 = vshrl.u32 %v1868, 7
    %v1870 = vsub.s32 0, %v1869
    %v1871 = vrot.slane %v1867, %v1870
    %v1888 = vunpack.c.l.b16 %v1851
    %v1889 = vunpack.c.l.b16 %v1852
    %v1890 = vunpack.c.l.b16 %v1853
    %v1891 = vunpack.c.l.b16 %v1854
    %v1892 = vunpack.c.l.b16 %v1855
    %v1893 = vunpack.c.l.b16 %v1856
    %v1894 = vunpack.c.l.b16 %v1857
    %v1895 = vunpack.c.l.b16 %v1858
    %v1896 = vunpack.c.l.b16 %v1859
    %v1897 = vunpack.c.l.b16 %v1860
    %v1898 = vunpack.c.l.b16 %v1861
    %v1899 = vunpack.c.l.b16 %v1862
    %v1900 = vunpack.c.l.b16 %v1863
    %v1901 = vunpack.c.l.b16 %v1864
    %v1902 = vunpack.c.l.b16 %v1865
    %v1903 = vunpack.c.l.b16 %v1866
    %v1904 = vpack.c.b16 %v1889, %v1888
    %v1905 = vpack.c.b16 %v1891, %v1890
    %v1906 = vpack.c.b16 %v1893, %v1892
    %v1907 = vpack.c.b16 %v1895, %v1894
    %v1908 = vpack.c.b16 %v1897, %v1896
    %v1909 = vpack.c.b16 %v1899, %v1898
    %v1910 = vpack.c.b16 %v1901, %v1900
    %v1911 = vpack.c.b16 %v1903, %v1902
    %1920 = vmatprep.subr.bf16.mxu0 0
    %1921 = vmatpush1.bf16.msra.mxu0 %v1911
    %1922 = vmatprep.subr.bf16.mxu0 0
    %1923 = vmatpush1.bf16.msra.mxu0 %v1910
    %1924 = vmatprep.subr.bf16.mxu0 0
    %1925 = vmatpush1.bf16.msra.mxu0 %v1909
    %1926 = vmatprep.subr.bf16.mxu0 0
    %1927 = vmatpush1.bf16.msra.mxu0 %v1908
    %1928 = vmatprep.subr.bf16.mxu0 0
    %1929 = vmatpush1.bf16.msra.mxu0 %v1907
    %1930 = vmatprep.subr.bf16.mxu0 0
    %1931 = vmatpush1.bf16.msra.mxu0 %v1906
    %1932 = vmatprep.subr.bf16.mxu0 0
    %1933 = vmatpush1.bf16.msra.mxu0 %v1905
    %1934 = vmatprep.subr.bf16.mxu0 0
    %1935 = vmatpush1.bf16.msra.mxu0 %v1904
    %1936 = vmatprep.subr.bf16.mxu0 0
    %1937 = vmatpush2.bf16.msra.mxu0 0
    %1938 = vmatprep.subr.bf16.mxu0 0
    %1939 = vmatpush2.bf16.msra.mxu0 0
    %1940 = vmatprep.subr.bf16.mxu0 0
    %1941 = vmatpush2.bf16.msra.mxu0 0
    %1942 = vmatprep.subr.bf16.mxu0 0
    %1943 = vmatpush2.bf16.msra.mxu0 0
    %1944 = vmatprep.subr.bf16.mxu0 0
    %1945 = vmatpush2.bf16.msra.mxu0 0
    %1946 = vmatprep.subr.bf16.mxu0 0
    %1947 = vmatpush2.bf16.msra.mxu0 0
    %1948 = vmatprep.subr.bf16.mxu0 0
    %1949 = vmatpush2.bf16.msra.mxu0 0
    %1950 = vmatprep.subr.bf16.mxu0 0
    %1951 = vmatpush2.bf16.msra.mxu0 0
    %1952 = vmatprep.mubr.bf16.mxu0 0
    %1953 = vmatmul.mubr.bf16.gmra.mxu0 %v1849
    %v1954 = vpop.f32.mrf.mxu0
    %v1955 = vadd.f32 %v1871, %v1954
    %v1956 = vpop.f32.mrf.mxu0
    %v1957 = vpop.f32.mrf.mxu0
    %v1958 = vadd.f32 %v1871, %v1957
    %v1959 = vpop.f32.mrf.mxu0
    %1960 = vmatprep.mubr.bf16.mxu0 0
    %1961 = vmatmul.mubr.bf16.gmra.mxu0 %v1850
    %v1962 = vpop.f32.mrf.mxu0
    %v1963 = vadd.f32 %v1871, %v1962
    %v1964 = vpop.f32.mrf.mxu0
    %v1965 = vpop.f32.mrf.mxu0
    %v1966 = vadd.f32 %v1871, %v1965
    %v1967 = vpop.f32.mrf.mxu0
    %1968 = vdwg.mxu0
    %v1969 = vadd.f32 %v1689, %v1955
    %v1970 = vadd.f32 %v1690, %v1958
    %v1971 = vadd.f32 %v1691, %v1963
    %v1972 = vadd.f32 %v1692, %v1966
    %v1973 = vld [vmem:[%s2 + $0x8] sm:$0x1]
    %v1974 = vld [vmem:[%s2 + $0x9] sm:$0x1]
    %1975 = vadd.xlane.f32.xlu0 %v1969
    %v1976 = vpop.xlane.xlu0 %1975
    %1977 = vadd.xlane.f32.xlu0 %v1970
    %v1978 = vpop.xlane.xlu0 %1977
    %1979 = vadd.xlane.f32.xlu0 %v1971
    %v1980 = vpop.xlane.xlu0 %1979
    %1981 = vadd.xlane.f32.xlu0 %v1972
    %v1982 = vpop.xlane.xlu0 %1981
    %v1983 = vmul.f32 %v1976, 0.03125
    %v1984 = vmul.f32 %v1978, 0.03125
    %v1985 = vmul.f32 %v1980, 0.03125
    %v1986 = vmul.f32 %v1982, 0.03125
    %v1987 = vsub.f32 %v1969, %v1983
    %v1988 = vsub.f32 %v1970, %v1984
    %v1989 = vsub.f32 %v1971, %v1985
    %v1990 = vsub.f32 %v1972, %v1986
    %v1991 = vmul.f32 %v1987, %v54
    %v1992 = vmul.f32 %v1988, %v54
    %v1993 = vmul.f32 %v1989, %v54
    %v1994 = vmul.f32 %v1990, %v54
    %v1995 = vmul.f32 %v1991, %v1991
    %v1996 = vmul.f32 %v1992, %v1992
    %v1997 = vmul.f32 %v1993, %v1993
    %v1998 = vmul.f32 %v1994, %v1994
    %1999 = vadd.xlane.f32.xlu0 %v1995
    %v2000 = vpop.xlane.xlu0 %1999
    %2001 = vadd.xlane.f32.xlu0 %v1996
    %v2002 = vpop.xlane.xlu0 %2001
    %2003 = vadd.xlane.f32.xlu0 %v1997
    %v2004 = vpop.xlane.xlu0 %2003
    %2005 = vadd.xlane.f32.xlu0 %v1998
    %v2006 = vpop.xlane.xlu0 %2005
    %v2007 = vmul.f32 %v2000, 0.03125
    %v2008 = vmul.f32 %v2002, 0.03125
    %v2009 = vmul.f32 %v2004, 0.03125
    %v2010 = vmul.f32 %v2006, 0.03125
    %v2011 = vadd.f32 %v2007, 1e-05
    %v2012 = vadd.f32 %v2008, 1e-05
    %v2013 = vadd.f32 %v2009, 1e-05
    %v2014 = vadd.f32 %v2010, 1e-05
    %v2015 = vrsqrt.pop %v2011
    %v2016 = vrsqrt.pop %v2012
    %v2017 = vrsqrt.pop %v2013
    %v2018 = vrsqrt.pop %v2014
    %v2019 = vmul.f32 %v1991, %v2015
    %v2020 = vmul.f32 %v1992, %v2016
    %v2021 = vmul.f32 %v1993, %v2017
    %v2022 = vmul.f32 %v1994, %v2018
    %v2023 = vlaneseq
    %v2024 = vshrl.u32 %v2023, 7
    %v2025 = vsub.s32 0, %v2024
    %v2026 = vrot.slane %v1973, %v2025
    %v2027 = vmul.f32 %v2019, %v2026
    %v2028 = vmul.f32 %v2020, %v2026
    %v2029 = vmul.f32 %v2021, %v2026
    %v2030 = vmul.f32 %v2022, %v2026
    %v2031 = vlaneseq
    %v2032 = vshrl.u32 %v2031, 7
    %v2033 = vsub.s32 0, %v2032
    %v2034 = vrot.slane %v1974, %v2033
    %v2035 = vadd.f32 %v2027, %v2034
    %v2036 = vadd.f32 %v2028, %v2034
    %v2037 = vadd.f32 %v2029, %v2034
    %v2038 = vadd.f32 %v2030, %v2034
    %v2039 = vpack.c.bf16 %v2036, %v2035
    %v2040 = vpack.c.bf16 %v2038, %v2037
    %s2041 = scalar_lea.vmem [#allocation2], 384
    %v2042 = vld [vmem:[%s2041] sm:$0xff]
    %v2043 = vld [vmem:[%s2041 + $0x8] sm:$0xf]
    %v2044 = vld [vmem:[%s2041 + $0x18] sm:$0xff]
    %v2045 = vld [vmem:[%s2041 + $0x20] sm:$0xf]
    %v2046 = vld [vmem:[%s2041 + $0x30] sm:$0xff]
    %v2047 = vld [vmem:[%s2041 + $0x38] sm:$0xf]
    %v2048 = vld [vmem:[%s2041 + $0x48] sm:$0xff]
    %v2049 = vld [vmem:[%s2041 + $0x50] sm:$0xf]
    %v2050 = vld [vmem:[%s2041 + $0x60] sm:$0xff]
    %v2051 = vld [vmem:[%s2041 + $0x68] sm:$0xf]
    %v2052 = vld [vmem:[%s2041 + $0x78] sm:$0xff]
    %v2053 = vld [vmem:[%s2041 + $0x80] sm:$0xf]
    %v2054 = vld [vmem:[%s2041 + $0x90] sm:$0xff]
    %v2055 = vld [vmem:[%s2041 + $0x98] sm:$0xf]
    %v2056 = vld [vmem:[%s2041 + $0xa8] sm:$0xff]
    %v2057 = vld [vmem:[%s2041 + $0xb0] sm:$0xf]
    %v2058 = vld [vmem:[%s2041 + $0xc0] sm:$0xff]
    %v2059 = vld [vmem:[%s2041 + $0xc8] sm:$0xf]
    %v2060 = vld [vmem:[%s2041 + $0xd8] sm:$0xff]
    %v2061 = vld [vmem:[%s2041 + $0xe0] sm:$0xf]
    %v2062 = vld [vmem:[%s2041 + $0xf0] sm:$0xff]
    %v2063 = vld [vmem:[%s2041 + $0xf8] sm:$0xf]
    %v2064 = vld [vmem:[%s2041 + $0x108] sm:$0xff]
    %v2065 = vld [vmem:[%s2041 + $0x110] sm:$0xf]
    %v2066 = vld [vmem:[%s2041 + $0x120] sm:$0xff]
    %v2067 = vld [vmem:[%s2041 + $0x128] sm:$0xf]
    %v2068 = vld [vmem:[%s2041 + $0x138] sm:$0xff]
    %v2069 = vld [vmem:[%s2041 + $0x140] sm:$0xf]
    %v2070 = vld [vmem:[%s2041 + $0x150] sm:$0xff]
    %v2071 = vld [vmem:[%s2041 + $0x158] sm:$0xf]
    %v2072 = vld [vmem:[%s2041 + $0x168] sm:$0xff]
    %v2073 = vld [vmem:[%s2041 + $0x170] sm:$0xf]
    %v2106 = vunpack.c.l.b16 %v2042
    %v2107 = vunpack.c.h.b16 %v2042
    %v2108 = vunpack.c.l.b16 %v2043
    %v2109 = vunpack.c.l.b16 %v2044
    %v2110 = vunpack.c.h.b16 %v2044
    %v2111 = vunpack.c.l.b16 %v2045
    %v2112 = vunpack.c.l.b16 %v2046
    %v2113 = vunpack.c.h.b16 %v2046
    %v2114 = vunpack.c.l.b16 %v2047
    %v2115 = vunpack.c.l.b16 %v2048
    %v2116 = vunpack.c.h.b16 %v2048
    %v2117 = vunpack.c.l.b16 %v2049
    %v2118 = vunpack.c.l.b16 %v2050
    %v2119 = vunpack.c.h.b16 %v2050
    %v2120 = vunpack.c.l.b16 %v2051
    %v2121 = vunpack.c.l.b16 %v2052
    %v2122 = vunpack.c.h.b16 %v2052
    %v2123 = vunpack.c.l.b16 %v2053
    %v2124 = vunpack.c.l.b16 %v2054
    %v2125 = vunpack.c.h.b16 %v2054
    %v2126 = vunpack.c.l.b16 %v2055
    %v2127 = vunpack.c.l.b16 %v2056
    %v2128 = vunpack.c.h.b16 %v2056
    %v2129 = vunpack.c.l.b16 %v2057
    %v2130 = vunpack.c.l.b16 %v2058
    %v2131 = vunpack.c.h.b16 %v2058
    %v2132 = vunpack.c.l.b16 %v2059
    %v2133 = vunpack.c.l.b16 %v2060
    %v2134 = vunpack.c.h.b16 %v2060
    %v2135 = vunpack.c.l.b16 %v2061
    %v2136 = vunpack.c.l.b16 %v2062
    %v2137 = vunpack.c.h.b16 %v2062
    %v2138 = vunpack.c.l.b16 %v2063
    %v2139 = vunpack.c.l.b16 %v2064
    %v2140 = vunpack.c.h.b16 %v2064
    %v2141 = vunpack.c.l.b16 %v2065
    %v2142 = vunpack.c.l.b16 %v2066
    %v2143 = vunpack.c.h.b16 %v2066
    %v2144 = vunpack.c.l.b16 %v2067
    %v2145 = vunpack.c.l.b16 %v2068
    %v2146 = vunpack.c.h.b16 %v2068
    %v2147 = vunpack.c.l.b16 %v2069
    %v2148 = vunpack.c.l.b16 %v2070
    %v2149 = vunpack.c.h.b16 %v2070
    %v2150 = vunpack.c.l.b16 %v2071
    %v2151 = vunpack.c.l.b16 %v2072
    %v2152 = vunpack.c.h.b16 %v2072
    %v2153 = vunpack.c.l.b16 %v2073
    %v2154 = vpack.c.b16 %v2109, %v2106
    %v2155 = vpack.c.b16 %v2110, %v2107
    %v2156 = vpack.c.b16 %v2111, %v2108
    %v2157 = vpack.c.b16 %v2115, %v2112
    %v2158 = vpack.c.b16 %v2116, %v2113
    %v2159 = vpack.c.b16 %v2117, %v2114
    %v2160 = vpack.c.b16 %v2121, %v2118
    %v2161 = vpack.c.b16 %v2122, %v2119
    %v2162 = vpack.c.b16 %v2123, %v2120
    %v2163 = vpack.c.b16 %v2127, %v2124
    %v2164 = vpack.c.b16 %v2128, %v2125
    %v2165 = vpack.c.b16 %v2129, %v2126
    %v2166 = vpack.c.b16 %v2133, %v2130
    %v2167 = vpack.c.b16 %v2134, %v2131
    %v2168 = vpack.c.b16 %v2135, %v2132
    %v2169 = vpack.c.b16 %v2139, %v2136
    %v2170 = vpack.c.b16 %v2140, %v2137
    %v2171 = vpack.c.b16 %v2141, %v2138
    %v2172 = vpack.c.b16 %v2145, %v2142
    %v2173 = vpack.c.b16 %v2146, %v2143
    %v2174 = vpack.c.b16 %v2147, %v2144
    %v2175 = vpack.c.b16 %v2151, %v2148
    %v2176 = vpack.c.b16 %v2152, %v2149
    %v2177 = vpack.c.b16 %v2153, %v2150
    %2202 = vmatprep.subr.bf16.mxu0 %v2176
    %2203 = vmatpush1.bf16.msra.mxu0 %v2175
    %2204 = vmatprep.subr.bf16.mxu0 %v2173
    %2205 = vmatpush1.bf16.msra.mxu0 %v2172
    %2206 = vmatprep.subr.bf16.mxu0 %v2170
    %2207 = vmatpush1.bf16.msra.mxu0 %v2169
    %2208 = vmatprep.subr.bf16.mxu0 %v2167
    %2209 = vmatpush1.bf16.msra.mxu0 %v2166
    %2210 = vmatprep.subr.bf16.mxu0 %v2164
    %2211 = vmatpush1.bf16.msra.mxu0 %v2163
    %2212 = vmatprep.subr.bf16.mxu0 %v2161
    %2213 = vmatpush1.bf16.msra.mxu0 %v2160
    %2214 = vmatprep.subr.bf16.mxu0 %v2158
    %2215 = vmatpush1.bf16.msra.mxu0 %v2157
    %2216 = vmatprep.subr.bf16.mxu0 %v2155
    %2217 = vmatpush1.bf16.msra.mxu0 %v2154
    %2218 = vmatprep.subr.bf16.mxu0 0
    %2219 = vmatpush2.bf16.msra.mxu0 0
    %2220 = vmatprep.subr.bf16.mxu0 0
    %2221 = vmatpush2.bf16.msra.mxu0 0
    %2222 = vmatprep.subr.bf16.mxu0 0
    %2223 = vmatpush2.bf16.msra.mxu0 0
    %2224 = vmatprep.subr.bf16.mxu0 0
    %2225 = vmatpush2.bf16.msra.mxu0 0
    %2226 = vmatprep.subr.bf16.mxu0 0
    %2227 = vmatpush2.bf16.msra.mxu0 0
    %2228 = vmatprep.subr.bf16.mxu0 0
    %2229 = vmatpush2.bf16.msra.mxu0 0
    %2230 = vmatprep.subr.bf16.mxu0 0
    %2231 = vmatpush2.bf16.msra.mxu0 0
    %2232 = vmatprep.subr.bf16.mxu0 0
    %2233 = vmatpush2.bf16.msra.mxu0 0
    %2234 = vmatprep.mubr.bf16.mxu0 0
    %2235 = vmatmul.mubr.bf16.gmra.mxu0 %v2039
    %v2236 = vpop.f32.mrf.mxu0
    %v2237 = vadd.f32 0.0, %v2236
    %v2238 = vpop.f32.mrf.mxu0
    %v2239 = vadd.f32 0.0, %v2238
    %v2240 = vpop.f32.mrf.mxu0
    %v2241 = vadd.f32 0.0, %v2240
    %v2242 = vpop.f32.mrf.mxu0
    %v2243 = vadd.f32 0.0, %v2242
    %2244 = vmatprep.mubr.bf16.mxu0 0
    %2245 = vmatmul.mubr.bf16.gmra.mxu0 %v2040
    %v2246 = vpop.f32.mrf.mxu0
    %v2247 = vadd.f32 0.0, %v2246
    %v2248 = vpop.f32.mrf.mxu0
    %v2249 = vadd.f32 0.0, %v2248
    %v2250 = vpop.f32.mrf.mxu0
    %v2251 = vadd.f32 0.0, %v2250
    %v2252 = vpop.f32.mrf.mxu0
    %v2253 = vadd.f32 0.0, %v2252
    %2254 = vdwg.mxu0
    %2255 = vmatprep.subr.bf16.mxu0 0
    %2256 = vmatpush1.bf16.msra.mxu0 %v2177
    %2257 = vmatprep.subr.bf16.mxu0 0
    %2258 = vmatpush1.bf16.msra.mxu0 %v2174
    %2259 = vmatprep.subr.bf16.mxu0 0
    %2260 = vmatpush1.bf16.msra.mxu0 %v2171
    %2261 = vmatprep.subr.bf16.mxu0 0
    %2262 = vmatpush1.bf16.msra.mxu0 %v2168
    %2263 = vmatprep.subr.bf16.mxu0 0
    %2264 = vmatpush1.bf16.msra.mxu0 %v2165
    %2265 = vmatprep.subr.bf16.mxu0 0
    %2266 = vmatpush1.bf16.msra.mxu0 %v2162
    %2267 = vmatprep.subr.bf16.mxu0 0
    %2268 = vmatpush1.bf16.msra.mxu0 %v2159
    %2269 = vmatprep.subr.bf16.mxu0 0
    %2270 = vmatpush1.bf16.msra.mxu0 %v2156
    %2271 = vmatprep.subr.bf16.mxu0 0
    %2272 = vmatpush2.bf16.msra.mxu0 0
    %2273 = vmatprep.subr.bf16.mxu0 0
    %2274 = vmatpush2.bf16.msra.mxu0 0
    %2275 = vmatprep.subr.bf16.mxu0 0
    %2276 = vmatpush2.bf16.msra.mxu0 0
    %2277 = vmatprep.subr.bf16.mxu0 0
    %2278 = vmatpush2.bf16.msra.mxu0 0
    %2279 = vmatprep.subr.bf16.mxu0 0
    %2280 = vmatpush2.bf16.msra.mxu0 0
    %2281 = vmatprep.subr.bf16.mxu0 0
    %2282 = vmatpush2.bf16.msra.mxu0 0
    %2283 = vmatprep.subr.bf16.mxu0 0
    %2284 = vmatpush2.bf16.msra.mxu0 0
    %2285 = vmatprep.subr.bf16.mxu0 0
    %2286 = vmatpush2.bf16.msra.mxu0 0
    %2287 = vmatprep.mubr.bf16.mxu0 0
    %2288 = vmatmul.mubr.bf16.gmra.mxu0 %v2039
    %v2289 = vpop.f32.mrf.mxu0
    %v2290 = vadd.f32 0.0, %v2289
    %v2291 = vpop.f32.mrf.mxu0
    %v2292 = vpop.f32.mrf.mxu0
    %v2293 = vadd.f32 0.0, %v2292
    %v2294 = vpop.f32.mrf.mxu0
    %2295 = vmatprep.mubr.bf16.mxu0 0
    %2296 = vmatmul.mubr.bf16.gmra.mxu0 %v2040
    %v2297 = vpop.f32.mrf.mxu0
    %v2298 = vadd.f32 0.0, %v2297
    %v2299 = vpop.f32.mrf.mxu0
    %v2300 = vpop.f32.mrf.mxu0
    %v2301 = vadd.f32 0.0, %v2300
    %v2302 = vpop.f32.mrf.mxu0
    %2303 = vdwg.mxu0
    %s2304 = scalar_lea.vmem %s2, 16
    %v2305 = vld [vmem:[%s2304] sm:$0x1]
    %v2306 = vlaneseq
    %v2307 = vshrl.u32 %v2306, 7
    %v2308 = vsub.s32 0, %v2307
    %v2309 = vrot.slane %v2305, %v2308
    %v2310 = vadd.f32 %v2237, %v2309
    %v2311 = vadd.f32 %v2241, %v2309
    %v2312 = vadd.f32 %v2247, %v2309
    %v2313 = vadd.f32 %v2251, %v2309
    %v2314 = vpack.c.bf16 %v2311, %v2310
    %v2315 = vpack.c.bf16 %v2313, %v2312
    %v2316 = vld [vmem:[%s2304 + $0x1] sm:$0x1]
    %v2317 = vlaneseq
    %v2318 = vshrl.u32 %v2317, 7
    %v2319 = vsub.s32 0, %v2318
    %v2320 = vrot.slane %v2316, %v2319
    %v2321 = vadd.f32 %v2239, %v2320
    %v2322 = vadd.f32 %v2243, %v2320
    %v2323 = vadd.f32 %v2249, %v2320
    %v2324 = vadd.f32 %v2253, %v2320
    %v2325 = vpack.c.bf16 %v2322, %v2321
    %v2326 = vpack.c.bf16 %v2324, %v2323
    %v2327 = vld [vmem:[%s2304 + $0x2] sm:$0x1]
    %v2328 = vlaneseq
    %v2329 = vshrl.u32 %v2328, 7
    %v2330 = vsub.s32 0, %v2329
    %v2331 = vrot.slane %v2327, %v2330
    %v2332 = vadd.f32 %v2290, %v2331
    %v2333 = vadd.f32 %v2293, %v2331
    %v2334 = vadd.f32 %v2298, %v2331
    %v2335 = vadd.f32 %v2301, %v2331
    %v2336 = vpack.c.bf16 %v2333, %v2332
    %v2337 = vpack.c.bf16 %v2335, %v2334
    %v2339 = vsel %vm479, %v2314, 0
    %v2342 = vsel %vm479, %v2325, 0
    %2344 = vmatprep.subr.bf16.mxu0 0
    %2345 = vmatpush1.bf16.xpose.msra.mxu0 0
    %2346 = vmatprep.subr.bf16.mxu0 0
    %2347 = vmatpush1.bf16.xpose.msra.mxu0 0
    %2348 = vmatprep.subr.bf16.mxu0 0
    %2349 = vmatpush1.bf16.xpose.msra.mxu0 0
    %2350 = vmatprep.subr.bf16.mxu0 0
    %2351 = vmatpush1.bf16.xpose.msra.mxu0 0
    %2352 = vmatprep.subr.bf16.mxu0 0
    %2353 = vmatpush1.bf16.xpose.msra.mxu0 0
    %2354 = vmatprep.subr.bf16.mxu0 0
    %2355 = vmatpush1.bf16.xpose.msra.mxu0 0
    %2356 = vmatprep.subr.bf16.mxu0 0
    %2357 = vmatpush1.bf16.xpose.msra.mxu0 0
    %2358 = vmatprep.subr.bf16.mxu0 0
    %2359 = vmatpush1.bf16.xpose.msra.mxu0 %v2342
    %2360 = vmatprep.subr.bf16.mxu0 0
    %2361 = vmatpush2.bf16.xpose.msra.mxu0 0
    %2362 = vmatprep.subr.bf16.mxu0 0
    %2363 = vmatpush2.bf16.xpose.msra.mxu0 0
    %2364 = vmatprep.subr.bf16.mxu0 0
    %2365 = vmatpush2.bf16.xpose.msra.mxu0 0
    %2366 = vmatprep.subr.bf16.mxu0 0
    %2367 = vmatpush2.bf16.xpose.msra.mxu0 0
    %2368 = vmatprep.subr.bf16.mxu0 0
    %2369 = vmatpush2.bf16.xpose.msra.mxu0 0
    %2370 = vmatprep.subr.bf16.mxu0 0
    %2371 = vmatpush2.bf16.xpose.msra.mxu0 0
    %2372 = vmatprep.subr.bf16.mxu0 0
    %2373 = vmatpush2.bf16.xpose.msra.mxu0 0
    %2374 = vmatprep.subr.bf16.mxu0 0
    %2375 = vmatpush2.bf16.xpose.msra.mxu0 0
    %2376 = vmatprep.mubr.bf16.mxu0 0
    %2377 = vmatmul.mubr.bf16.gmra.mxu0 %v2339
    %v2378 = vpop.f32.mrf.mxu0
    %v2379 = vadd.f32 %v181, %v2378
    %v2380 = vpop.f32.mrf.mxu0
    %v2381 = vpop.f32.mrf.mxu0
    %v2382 = vadd.f32 %v181, %v2381
    %v2383 = vpop.f32.mrf.mxu0
    %2384 = vdwg.mxu0
    %v2386 = vsel %vm479, %v2315, 0
    %v2389 = vsel %vm479, %v2326, 0
    %2391 = vmatprep.subr.bf16.mxu0 0
    %2392 = vmatpush1.bf16.xpose.msra.mxu0 0
    %2393 = vmatprep.subr.bf16.mxu0 0
    %2394 = vmatpush1.bf16.xpose.msra.mxu0 0
    %2395 = vmatprep.subr.bf16.mxu0 0
    %2396 = vmatpush1.bf16.xpose.msra.mxu0 0
    %2397 = vmatprep.subr.bf16.mxu0 0
    %2398 = vmatpush1.bf16.xpose.msra.mxu0 0
    %2399 = vmatprep.subr.bf16.mxu0 0
    %2400 = vmatpush1.bf16.xpose.msra.mxu0 0
    %2401 = vmatprep.subr.bf16.mxu0 0
    %2402 = vmatpush1.bf16.xpose.msra.mxu0 0
    %2403 = vmatprep.subr.bf16.mxu0 0
    %2404 = vmatpush1.bf16.xpose.msra.mxu0 0
    %2405 = vmatprep.subr.bf16.mxu0 0
    %2406 = vmatpush1.bf16.xpose.msra.mxu0 %v2389
    %2407 = vmatprep.subr.bf16.mxu0 0
    %2408 = vmatpush2.bf16.xpose.msra.mxu0 0
    %2409 = vmatprep.subr.bf16.mxu0 0
    %2410 = vmatpush2.bf16.xpose.msra.mxu0 0
    %2411 = vmatprep.subr.bf16.mxu0 0
    %2412 = vmatpush2.bf16.xpose.msra.mxu0 0
    %2413 = vmatprep.subr.bf16.mxu0 0
    %2414 = vmatpush2.bf16.xpose.msra.mxu0 0
    %2415 = vmatprep.subr.bf16.mxu0 0
    %2416 = vmatpush2.bf16.xpose.msra.mxu0 0
    %2417 = vmatprep.subr.bf16.mxu0 0
    %2418 = vmatpush2.bf16.xpose.msra.mxu0 0
    %2419 = vmatprep.subr.bf16.mxu0 0
    %2420 = vmatpush2.bf16.xpose.msra.mxu0 0
    %2421 = vmatprep.subr.bf16.mxu0 0
    %2422 = vmatpush2.bf16.xpose.msra.mxu0 0
    %2423 = vmatprep.mubr.bf16.mxu0 0
    %2424 = vmatmul.mubr.bf16.gmra.mxu0 %v2386
    %v2425 = vpop.f32.mrf.mxu0
    %v2426 = vadd.f32 %v181, %v2425
    %v2427 = vpop.f32.mrf.mxu0
    %v2428 = vpop.f32.mrf.mxu0
    %v2429 = vadd.f32 %v181, %v2428
    %v2430 = vpop.f32.mrf.mxu0
    %2431 = vdwg.mxu0
    %v2432 = vsel %vm574, %v2379, -inf
    %2433 = vmax.xlane.f32.xlu0 %v2432
    %v2434 = vpop.xlane.xlu0 %2433
    %v2435 = vsel %vm574, %v2382, -inf
    %2436 = vmax.xlane.f32.xlu0 %v2435
    %v2437 = vpop.xlane.xlu0 %2436
    %v2438 = vsel %vm574, %v2426, -inf
    %2439 = vmax.xlane.f32.xlu0 %v2438
    %v2440 = vpop.xlane.xlu0 %2439
    %v2441 = vsel %vm574, %v2429, -inf
    %2442 = vmax.xlane.f32.xlu0 %v2441
    %v2443 = vpop.xlane.xlu0 %2442
    %v2444 = vsub.f32 %v2379, %v2434
    %v2445 = vsub.f32 %v2382, %v2437
    %v2446 = vsub.f32 %v2426, %v2440
    %v2447 = vsub.f32 %v2429, %v2443
    %v2448 = vmul.f32 %v2444, 1.442695
    %v2449 = vpow.pop %v2448
    %v2450 = vmul.f32 %v2445, 1.442695
    %v2451 = vpow.pop %v2450
    %v2452 = vmul.f32 %v2446, 1.442695
    %v2453 = vpow.pop %v2452
    %v2454 = vmul.f32 %v2447, 1.442695
    %v2455 = vpow.pop %v2454
    %v2456 = vsel %vm574, %v2449, 0.0
    %2457 = vadd.xlane.f32.xlu0 %v2456
    %v2458 = vpop.xlane.xlu0 %2457
    %v2459 = vsel %vm574, %v2451, 0.0
    %2460 = vadd.xlane.f32.xlu0 %v2459
    %v2461 = vpop.xlane.xlu0 %2460
    %v2462 = vsel %vm574, %v2453, 0.0
    %2463 = vadd.xlane.f32.xlu0 %v2462
    %v2464 = vpop.xlane.xlu0 %2463
    %v2465 = vsel %vm574, %v2455, 0.0
    %2466 = vadd.xlane.f32.xlu0 %v2465
    %v2467 = vpop.xlane.xlu0 %2466
    %v2468 = vrcp.pop %v2458
    %v2469 = vrcp.pop %v2461
    %v2470 = vrcp.pop %v2464
    %v2471 = vrcp.pop %v2467
    %v2472 = vmul.f32 %v2449, %v2468
    %v2473 = vmul.f32 %v2451, %v2469
    %v2474 = vmul.f32 %v2453, %v2470
    %v2475 = vmul.f32 %v2455, %v2471
    %v2476 = vpack.c.bf16 %v2473, %v2472
    %v2477 = vpack.c.bf16 %v2475, %v2474
    %v2479 = vsel %vm574, %v2476, 0
    %2481 = vmatprep.subr.bf16.mxu0 0
    %2482 = vmatpush1.bf16.msra.mxu0 0
    %2483 = vmatprep.subr.bf16.mxu0 0
    %2484 = vmatpush1.bf16.msra.mxu0 0
    %2485 = vmatprep.subr.bf16.mxu0 0
    %2486 = vmatpush1.bf16.msra.mxu0 0
    %2487 = vmatprep.subr.bf16.mxu0 0
    %2488 = vmatpush1.bf16.msra.mxu0 0
    %2489 = vmatprep.subr.bf16.mxu0 0
    %2490 = vmatpush1.bf16.msra.mxu0 0
    %2491 = vmatprep.subr.bf16.mxu0 0
    %2492 = vmatpush1.bf16.msra.mxu0 0
    %2493 = vmatprep.subr.bf16.mxu0 0
    %2494 = vmatpush1.bf16.msra.mxu0 0
    %2495 = vmatprep.subr.bf16.mxu0 0
    %2496 = vmatpush1.bf16.msra.mxu0 %v2336
    %2497 = vmatprep.subr.bf16.mxu0 0
    %2498 = vmatpush2.bf16.msra.mxu0 0
    %2499 = vmatprep.subr.bf16.mxu0 0
    %2500 = vmatpush2.bf16.msra.mxu0 0
    %2501 = vmatprep.subr.bf16.mxu0 0
    %2502 = vmatpush2.bf16.msra.mxu0 0
    %2503 = vmatprep.subr.bf16.mxu0 0
    %2504 = vmatpush2.bf16.msra.mxu0 0
    %2505 = vmatprep.subr.bf16.mxu0 0
    %2506 = vmatpush2.bf16.msra.mxu0 0
    %2507 = vmatprep.subr.bf16.mxu0 0
    %2508 = vmatpush2.bf16.msra.mxu0 0
    %2509 = vmatprep.subr.bf16.mxu0 0
    %2510 = vmatpush2.bf16.msra.mxu0 0
    %2511 = vmatprep.subr.bf16.mxu0 0
    %2512 = vmatpush2.bf16.msra.mxu0 0
    %2513 = vmatprep.mubr.bf16.mxu0 0
    %2514 = vmatmul.mubr.bf16.gmra.mxu0 %v2479
    %v2515 = vpop.f32.mrf.mxu0
    %v2516 = vadd.f32 0.0, %v2515
    %v2517 = vpop.f32.mrf.mxu0
    %v2518 = vpop.f32.mrf.mxu0
    %v2519 = vadd.f32 0.0, %v2518
    %v2520 = vpop.f32.mrf.mxu0
    %2521 = vdwg.mxu0
    %v2523 = vsel %vm574, %v2477, 0
    %2525 = vmatprep.subr.bf16.mxu0 0
    %2526 = vmatpush1.bf16.msra.mxu0 0
    %2527 = vmatprep.subr.bf16.mxu0 0
    %2528 = vmatpush1.bf16.msra.mxu0 0
    %2529 = vmatprep.subr.bf16.mxu0 0
    %2530 = vmatpush1.bf16.msra.mxu0 0
    %2531 = vmatprep.subr.bf16.mxu0 0
    %2532 = vmatpush1.bf16.msra.mxu0 0
    %2533 = vmatprep.subr.bf16.mxu0 0
    %2534 = vmatpush1.bf16.msra.mxu0 0
    %2535 = vmatprep.subr.bf16.mxu0 0
    %2536 = vmatpush1.bf16.msra.mxu0 0
    %2537 = vmatprep.subr.bf16.mxu0 0
    %2538 = vmatpush1.bf16.msra.mxu0 0
    %2539 = vmatprep.subr.bf16.mxu0 0
    %2540 = vmatpush1.bf16.msra.mxu0 %v2337
    %2541 = vmatprep.subr.bf16.mxu0 0
    %2542 = vmatpush2.bf16.msra.mxu0 0
    %2543 = vmatprep.subr.bf16.mxu0 0
    %2544 = vmatpush2.bf16.msra.mxu0 0
    %2545 = vmatprep.subr.bf16.mxu0 0
    %2546 = vmatpush2.bf16.msra.mxu0 0
    %2547 = vmatprep.subr.bf16.mxu0 0
    %2548 = vmatpush2.bf16.msra.mxu0 0
    %2549 = vmatprep.subr.bf16.mxu0 0
    %2550 = vmatpush2.bf16.msra.mxu0 0
    %2551 = vmatprep.subr.bf16.mxu0 0
    %2552 = vmatpush2.bf16.msra.mxu0 0
    %2553 = vmatprep.subr.bf16.mxu0 0
    %2554 = vmatpush2.bf16.msra.mxu0 0
    %2555 = vmatprep.subr.bf16.mxu0 0
    %2556 = vmatpush2.bf16.msra.mxu0 0
    %2557 = vmatprep.mubr.bf16.mxu0 0
    %2558 = vmatmul.mubr.bf16.gmra.mxu0 %v2523
    %v2559 = vpop.f32.mrf.mxu0
    %v2560 = vadd.f32 0.0, %v2559
    %v2561 = vpop.f32.mrf.mxu0
    %v2562 = vpop.f32.mrf.mxu0
    %v2563 = vadd.f32 0.0, %v2562
    %v2564 = vpop.f32.mrf.mxu0
    %2565 = vdwg.mxu0
    %2567 = vrot.lane.b32.xlu0 %v2314, 96
    %v2568 = vpop.permute.xlu0 %2567
    %2570 = vrot.lane.b32.xlu0 %v2325, 96
    %v2571 = vpop.permute.xlu0 %2570
    %v2573 = vsel %vm479, %v2568, 0
    %v2576 = vsel %vm479, %v2571, 0
    %2578 = vmatprep.subr.bf16.mxu0 0
    %2579 = vmatpush1.bf16.xpose.msra.mxu0 0
    %2580 = vmatprep.subr.bf16.mxu0 0
    %2581 = vmatpush1.bf16.xpose.msra.mxu0 0
    %2582 = vmatprep.subr.bf16.mxu0 0
    %2583 = vmatpush1.bf16.xpose.msra.mxu0 0
    %2584 = vmatprep.subr.bf16.mxu0 0
    %2585 = vmatpush1.bf16.xpose.msra.mxu0 0
    %2586 = vmatprep.subr.bf16.mxu0 0
    %2587 = vmatpush1.bf16.xpose.msra.mxu0 0
    %2588 = vmatprep.subr.bf16.mxu0 0
    %2589 = vmatpush1.bf16.xpose.msra.mxu0 0
    %2590 = vmatprep.subr.bf16.mxu0 0
    %2591 = vmatpush1.bf16.xpose.msra.mxu0 0
    %2592 = vmatprep.subr.bf16.mxu0 0
    %2593 = vmatpush1.bf16.xpose.msra.mxu0 %v2576
    %2594 = vmatprep.subr.bf16.mxu0 0
    %2595 = vmatpush2.bf16.xpose.msra.mxu0 0
    %2596 = vmatprep.subr.bf16.mxu0 0
    %2597 = vmatpush2.bf16.xpose.msra.mxu0 0
    %2598 = vmatprep.subr.bf16.mxu0 0
    %2599 = vmatpush2.bf16.xpose.msra.mxu0 0
    %2600 = vmatprep.subr.bf16.mxu0 0
    %2601 = vmatpush2.bf16.xpose.msra.mxu0 0
    %2602 = vmatprep.subr.bf16.mxu0 0
    %2603 = vmatpush2.bf16.xpose.msra.mxu0 0
    %2604 = vmatprep.subr.bf16.mxu0 0
    %2605 = vmatpush2.bf16.xpose.msra.mxu0 0
    %2606 = vmatprep.subr.bf16.mxu0 0
    %2607 = vmatpush2.bf16.xpose.msra.mxu0 0
    %2608 = vmatprep.subr.bf16.mxu0 0
    %2609 = vmatpush2.bf16.xpose.msra.mxu0 0
    %2610 = vmatprep.mubr.bf16.mxu0 0
    %2611 = vmatmul.mubr.bf16.gmra.mxu0 %v2573
    %v2612 = vpop.f32.mrf.mxu0
    %v2613 = vadd.f32 %v181, %v2612
    %v2614 = vpop.f32.mrf.mxu0
    %v2615 = vpop.f32.mrf.mxu0
    %v2616 = vadd.f32 %v181, %v2615
    %v2617 = vpop.f32.mrf.mxu0
    %2618 = vdwg.mxu0
    %2620 = vrot.lane.b32.xlu0 %v2315, 96
    %v2621 = vpop.permute.xlu0 %2620
    %2623 = vrot.lane.b32.xlu0 %v2326, 96
    %v2624 = vpop.permute.xlu0 %2623
    %v2626 = vsel %vm479, %v2621, 0
    %v2629 = vsel %vm479, %v2624, 0
    %2631 = vmatprep.subr.bf16.mxu0 0
    %2632 = vmatpush1.bf16.xpose.msra.mxu0 0
    %2633 = vmatprep.subr.bf16.mxu0 0
    %2634 = vmatpush1.bf16.xpose.msra.mxu0 0
    %2635 = vmatprep.subr.bf16.mxu0 0
    %2636 = vmatpush1.bf16.xpose.msra.mxu0 0
    %2637 = vmatprep.subr.bf16.mxu0 0
    %2638 = vmatpush1.bf16.xpose.msra.mxu0 0
    %2639 = vmatprep.subr.bf16.mxu0 0
    %2640 = vmatpush1.bf16.xpose.msra.mxu0 0
    %2641 = vmatprep.subr.bf16.mxu0 0
    %2642 = vmatpush1.bf16.xpose.msra.mxu0 0
    %2643 = vmatprep.subr.bf16.mxu0 0
    %2644 = vmatpush1.bf16.xpose.msra.mxu0 0
    %2645 = vmatprep.subr.bf16.mxu0 0
    %2646 = vmatpush1.bf16.xpose.msra.mxu0 %v2629
    %2647 = vmatprep.subr.bf16.mxu0 0
    %2648 = vmatpush2.bf16.xpose.msra.mxu0 0
    %2649 = vmatprep.subr.bf16.mxu0 0
    %2650 = vmatpush2.bf16.xpose.msra.mxu0 0
    %2651 = vmatprep.subr.bf16.mxu0 0
    %2652 = vmatpush2.bf16.xpose.msra.mxu0 0
    %2653 = vmatprep.subr.bf16.mxu0 0
    %2654 = vmatpush2.bf16.xpose.msra.mxu0 0
    %2655 = vmatprep.subr.bf16.mxu0 0
    %2656 = vmatpush2.bf16.xpose.msra.mxu0 0
    %2657 = vmatprep.subr.bf16.mxu0 0
    %2658 = vmatpush2.bf16.xpose.msra.mxu0 0
    %2659 = vmatprep.subr.bf16.mxu0 0
    %2660 = vmatpush2.bf16.xpose.msra.mxu0 0
    %2661 = vmatprep.subr.bf16.mxu0 0
    %2662 = vmatpush2.bf16.xpose.msra.mxu0 0
    %2663 = vmatprep.mubr.bf16.mxu0 0
    %2664 = vmatmul.mubr.bf16.gmra.mxu0 %v2626
    %v2665 = vpop.f32.mrf.mxu0
    %v2666 = vadd.f32 %v181, %v2665
    %v2667 = vpop.f32.mrf.mxu0
    %v2668 = vpop.f32.mrf.mxu0
    %v2669 = vadd.f32 %v181, %v2668
    %v2670 = vpop.f32.mrf.mxu0
    %2671 = vdwg.mxu0
    %v2672 = vsel %vm574, %v2613, -inf
    %2673 = vmax.xlane.f32.xlu0 %v2672
    %v2674 = vpop.xlane.xlu0 %2673
    %v2675 = vsel %vm574, %v2616, -inf
    %2676 = vmax.xlane.f32.xlu0 %v2675
    %v2677 = vpop.xlane.xlu0 %2676
    %v2678 = vsel %vm574, %v2666, -inf
    %2679 = vmax.xlane.f32.xlu0 %v2678
    %v2680 = vpop.xlane.xlu0 %2679
    %v2681 = vsel %vm574, %v2669, -inf
    %2682 = vmax.xlane.f32.xlu0 %v2681
    %v2683 = vpop.xlane.xlu0 %2682
    %v2684 = vsub.f32 %v2613, %v2674
    %v2685 = vsub.f32 %v2616, %v2677
    %v2686 = vsub.f32 %v2666, %v2680
    %v2687 = vsub.f32 %v2669, %v2683
    %v2688 = vmul.f32 %v2684, 1.442695
    %v2689 = vpow.pop %v2688
    %v2690 = vmul.f32 %v2685, 1.442695
    %v2691 = vpow.pop %v2690
    %v2692 = vmul.f32 %v2686, 1.442695
    %v2693 = vpow.pop %v2692
    %v2694 = vmul.f32 %v2687, 1.442695
    %v2695 = vpow.pop %v2694
    %v2696 = vsel %vm574, %v2689, 0.0
    %2697 = vadd.xlane.f32.xlu0 %v2696
    %v2698 = vpop.xlane.xlu0 %2697
    %v2699 = vsel %vm574, %v2691, 0.0
    %2700 = vadd.xlane.f32.xlu0 %v2699
    %v2701 = vpop.xlane.xlu0 %2700
    %v2702 = vsel %vm574, %v2693, 0.0
    %2703 = vadd.xlane.f32.xlu0 %v2702
    %v2704 = vpop.xlane.xlu0 %2703
    %v2705 = vsel %vm574, %v2695, 0.0
    %2706 = vadd.xlane.f32.xlu0 %v2705
    %v2707 = vpop.xlane.xlu0 %2706
    %v2708 = vrcp.pop %v2698
    %v2709 = vrcp.pop %v2701
    %v2710 = vrcp.pop %v2704
    %v2711 = vrcp.pop %v2707
    %v2712 = vmul.f32 %v2689, %v2708
    %v2713 = vmul.f32 %v2691, %v2709
    %v2714 = vmul.f32 %v2693, %v2710
    %v2715 = vmul.f32 %v2695, %v2711
    %v2716 = vpack.c.bf16 %v2713, %v2712
    %v2717 = vpack.c.bf16 %v2715, %v2714
    %2719 = vrot.lane.b32.xlu0 %v2336, 96
    %v2720 = vpop.permute.xlu0 %2719
    %v2723 = vsel %vm574, %v2716, 0
    %2725 = vmatprep.subr.bf16.mxu0 0
    %2726 = vmatpush1.bf16.msra.mxu0 0
    %2727 = vmatprep.subr.bf16.mxu0 0
    %2728 = vmatpush1.bf16.msra.mxu0 0
    %2729 = vmatprep.subr.bf16.mxu0 0
    %2730 = vmatpush1.bf16.msra.mxu0 0
    %2731 = vmatprep.subr.bf16.mxu0 0
    %2732 = vmatpush1.bf16.msra.mxu0 0
    %2733 = vmatprep.subr.bf16.mxu0 0
    %2734 = vmatpush1.bf16.msra.mxu0 0
    %2735 = vmatprep.subr.bf16.mxu0 0
    %2736 = vmatpush1.bf16.msra.mxu0 0
    %2737 = vmatprep.subr.bf16.mxu0 0
    %2738 = vmatpush1.bf16.msra.mxu0 0
    %2739 = vmatprep.subr.bf16.mxu0 0
    %2740 = vmatpush1.bf16.msra.mxu0 %v2720
    %2741 = vmatprep.subr.bf16.mxu0 0
    %2742 = vmatpush2.bf16.msra.mxu0 0
    %2743 = vmatprep.subr.bf16.mxu0 0
    %2744 = vmatpush2.bf16.msra.mxu0 0
    %2745 = vmatprep.subr.bf16.mxu0 0
    %2746 = vmatpush2.bf16.msra.mxu0 0
    %2747 = vmatprep.subr.bf16.mxu0 0
    %2748 = vmatpush2.bf16.msra.mxu0 0
    %2749 = vmatprep.subr.bf16.mxu0 0
    %2750 = vmatpush2.bf16.msra.mxu0 0
    %2751 = vmatprep.subr.bf16.mxu0 0
    %2752 = vmatpush2.bf16.msra.mxu0 0
    %2753 = vmatprep.subr.bf16.mxu0 0
    %2754 = vmatpush2.bf16.msra.mxu0 0
    %2755 = vmatprep.subr.bf16.mxu0 0
    %2756 = vmatpush2.bf16.msra.mxu0 0
    %2757 = vmatprep.mubr.bf16.mxu0 0
    %2758 = vmatmul.mubr.bf16.gmra.mxu0 %v2723
    %v2759 = vpop.f32.mrf.mxu0
    %v2760 = vadd.f32 0.0, %v2759
    %v2761 = vpop.f32.mrf.mxu0
    %v2762 = vpop.f32.mrf.mxu0
    %v2763 = vadd.f32 0.0, %v2762
    %v2764 = vpop.f32.mrf.mxu0
    %2765 = vdwg.mxu0
    %2767 = vrot.lane.b32.xlu0 %v2337, 96
    %v2768 = vpop.permute.xlu0 %2767
    %v2771 = vsel %vm574, %v2717, 0
    %2773 = vmatprep.subr.bf16.mxu0 0
    %2774 = vmatpush1.bf16.msra.mxu0 0
    %2775 = vmatprep.subr.bf16.mxu0 0
    %2776 = vmatpush1.bf16.msra.mxu0 0
    %2777 = vmatprep.subr.bf16.mxu0 0
    %2778 = vmatpush1.bf16.msra.mxu0 0
    %2779 = vmatprep.subr.bf16.mxu0 0
    %2780 = vmatpush1.bf16.msra.mxu0 0
    %2781 = vmatprep.subr.bf16.mxu0 0
    %2782 = vmatpush1.bf16.msra.mxu0 0
    %2783 = vmatprep.subr.bf16.mxu0 0
    %2784 = vmatpush1.bf16.msra.mxu0 0
    %2785 = vmatprep.subr.bf16.mxu0 0
    %2786 = vmatpush1.bf16.msra.mxu0 0
    %2787 = vmatprep.subr.bf16.mxu0 0
    %2788 = vmatpush1.bf16.msra.mxu0 %v2768
    %2789 = vmatprep.subr.bf16.mxu0 0
    %2790 = vmatpush2.bf16.msra.mxu0 0
    %2791 = vmatprep.subr.bf16.mxu0 0
    %2792 = vmatpush2.bf16.msra.mxu0 0
    %2793 = vmatprep.subr.bf16.mxu0 0
    %2794 = vmatpush2.bf16.msra.mxu0 0
    %2795 = vmatprep.subr.bf16.mxu0 0
    %2796 = vmatpush2.bf16.msra.mxu0 0
    %2797 = vmatprep.subr.bf16.mxu0 0
    %2798 = vmatpush2.bf16.msra.mxu0 0
    %2799 = vmatprep.subr.bf16.mxu0 0
    %2800 = vmatpush2.bf16.msra.mxu0 0
    %2801 = vmatprep.subr.bf16.mxu0 0
    %2802 = vmatpush2.bf16.msra.mxu0 0
    %2803 = vmatprep.subr.bf16.mxu0 0
    %2804 = vmatpush2.bf16.msra.mxu0 0
    %2805 = vmatprep.mubr.bf16.mxu0 0
    %2806 = vmatmul.mubr.bf16.gmra.mxu0 %v2771
    %v2807 = vpop.f32.mrf.mxu0
    %v2808 = vadd.f32 0.0, %v2807
    %v2809 = vpop.f32.mrf.mxu0
    %v2810 = vpop.f32.mrf.mxu0
    %v2811 = vadd.f32 0.0, %v2810
    %v2812 = vpop.f32.mrf.mxu0
    %2813 = vdwg.mxu0
    %2814 = vrot.lane.b32.xlu0 %v2314, 64
    %v2815 = vpop.permute.xlu0 %2814
    %2816 = vrot.lane.b32.xlu0 %v2325, 64
    %v2817 = vpop.permute.xlu0 %2816
    %v2819 = vsel %vm479, %v2815, 0
    %v2822 = vsel %vm479, %v2817, 0
    %2824 = vmatprep.subr.bf16.mxu0 0
    %2825 = vmatpush1.bf16.xpose.msra.mxu0 0
    %2826 = vmatprep.subr.bf16.mxu0 0
    %2827 = vmatpush1.bf16.xpose.msra.mxu0 0
    %2828 = vmatprep.subr.bf16.mxu0 0
    %2829 = vmatpush1.bf16.xpose.msra.mxu0 0
    %2830 = vmatprep.subr.bf16.mxu0 0
    %2831 = vmatpush1.bf16.xpose.msra.mxu0 0
    %2832 = vmatprep.subr.bf16.mxu0 0
    %2833 = vmatpush1.bf16.xpose.msra.mxu0 0
    %2834 = vmatprep.subr.bf16.mxu0 0
    %2835 = vmatpush1.bf16.xpose.msra.mxu0 0
    %2836 = vmatprep.subr.bf16.mxu0 0
    %2837 = vmatpush1.bf16.xpose.msra.mxu0 0
    %2838 = vmatprep.subr.bf16.mxu0 0
    %2839 = vmatpush1.bf16.xpose.msra.mxu0 %v2822
    %2840 = vmatprep.subr.bf16.mxu0 0
    %2841 = vmatpush2.bf16.xpose.msra.mxu0 0
    %2842 = vmatprep.subr.bf16.mxu0 0
    %2843 = vmatpush2.bf16.xpose.msra.mxu0 0
    %2844 = vmatprep.subr.bf16.mxu0 0
    %2845 = vmatpush2.bf16.xpose.msra.mxu0 0
    %2846 = vmatprep.subr.bf16.mxu0 0
    %2847 = vmatpush2.bf16.xpose.msra.mxu0 0
    %2848 = vmatprep.subr.bf16.mxu0 0
    %2849 = vmatpush2.bf16.xpose.msra.mxu0 0
    %2850 = vmatprep.subr.bf16.mxu0 0
    %2851 = vmatpush2.bf16.xpose.msra.mxu0 0
    %2852 = vmatprep.subr.bf16.mxu0 0
    %2853 = vmatpush2.bf16.xpose.msra.mxu0 0
    %2854 = vmatprep.subr.bf16.mxu0 0
    %2855 = vmatpush2.bf16.xpose.msra.mxu0 0
    %2856 = vmatprep.mubr.bf16.mxu0 0
    %2857 = vmatmul.mubr.bf16.gmra.mxu0 %v2819
    %v2858 = vpop.f32.mrf.mxu0
    %v2859 = vadd.f32 %v181, %v2858
    %v2860 = vpop.f32.mrf.mxu0
    %v2861 = vpop.f32.mrf.mxu0
    %v2862 = vadd.f32 %v181, %v2861
    %v2863 = vpop.f32.mrf.mxu0
    %2864 = vdwg.mxu0
    %2865 = vrot.lane.b32.xlu0 %v2315, 64
    %v2866 = vpop.permute.xlu0 %2865
    %2867 = vrot.lane.b32.xlu0 %v2326, 64
    %v2868 = vpop.permute.xlu0 %2867
    %v2870 = vsel %vm479, %v2866, 0
    %v2873 = vsel %vm479, %v2868, 0
    %2875 = vmatprep.subr.bf16.mxu0 0
    %2876 = vmatpush1.bf16.xpose.msra.mxu0 0
    %2877 = vmatprep.subr.bf16.mxu0 0
    %2878 = vmatpush1.bf16.xpose.msra.mxu0 0
    %2879 = vmatprep.subr.bf16.mxu0 0
    %2880 = vmatpush1.bf16.xpose.msra.mxu0 0
    %2881 = vmatprep.subr.bf16.mxu0 0
    %2882 = vmatpush1.bf16.xpose.msra.mxu0 0
    %2883 = vmatprep.subr.bf16.mxu0 0
    %2884 = vmatpush1.bf16.xpose.msra.mxu0 0
    %2885 = vmatprep.subr.bf16.mxu0 0
    %2886 = vmatpush1.bf16.xpose.msra.mxu0 0
    %2887 = vmatprep.subr.bf16.mxu0 0
    %2888 = vmatpush1.bf16.xpose.msra.mxu0 0
    %2889 = vmatprep.subr.bf16.mxu0 0
    %2890 = vmatpush1.bf16.xpose.msra.mxu0 %v2873
    %2891 = vmatprep.subr.bf16.mxu0 0
    %2892 = vmatpush2.bf16.xpose.msra.mxu0 0
    %2893 = vmatprep.subr.bf16.mxu0 0
    %2894 = vmatpush2.bf16.xpose.msra.mxu0 0
    %2895 = vmatprep.subr.bf16.mxu0 0
    %2896 = vmatpush2.bf16.xpose.msra.mxu0 0
    %2897 = vmatprep.subr.bf16.mxu0 0
    %2898 = vmatpush2.bf16.xpose.msra.mxu0 0
    %2899 = vmatprep.subr.bf16.mxu0 0
    %2900 = vmatpush2.bf16.xpose.msra.mxu0 0
    %2901 = vmatprep.subr.bf16.mxu0 0
    %2902 = vmatpush2.bf16.xpose.msra.mxu0 0
    %2903 = vmatprep.subr.bf16.mxu0 0
    %2904 = vmatpush2.bf16.xpose.msra.mxu0 0
    %2905 = vmatprep.subr.bf16.mxu0 0
    %2906 = vmatpush2.bf16.xpose.msra.mxu0 0
    %2907 = vmatprep.mubr.bf16.mxu0 0
    %2908 = vmatmul.mubr.bf16.gmra.mxu0 %v2870
    %v2909 = vpop.f32.mrf.mxu0
    %v2910 = vadd.f32 %v181, %v2909
    %v2911 = vpop.f32.mrf.mxu0
    %v2912 = vpop.f32.mrf.mxu0
    %v2913 = vadd.f32 %v181, %v2912
    %v2914 = vpop.f32.mrf.mxu0
    %2915 = vdwg.mxu0
    %v2916 = vsel %vm574, %v2859, -inf
    %2917 = vmax.xlane.f32.xlu0 %v2916
    %v2918 = vpop.xlane.xlu0 %2917
    %v2919 = vsel %vm574, %v2862, -inf
    %2920 = vmax.xlane.f32.xlu0 %v2919
    %v2921 = vpop.xlane.xlu0 %2920
    %v2922 = vsel %vm574, %v2910, -inf
    %2923 = vmax.xlane.f32.xlu0 %v2922
    %v2924 = vpop.xlane.xlu0 %2923
    %v2925 = vsel %vm574, %v2913, -inf
    %2926 = vmax.xlane.f32.xlu0 %v2925
    %v2927 = vpop.xlane.xlu0 %2926
    %v2928 = vsub.f32 %v2859, %v2918
    %v2929 = vsub.f32 %v2862, %v2921
    %v2930 = vsub.f32 %v2910, %v2924
    %v2931 = vsub.f32 %v2913, %v2927
    %v2932 = vmul.f32 %v2928, 1.442695
    %v2933 = vpow.pop %v2932
    %v2934 = vmul.f32 %v2929, 1.442695
    %v2935 = vpow.pop %v2934
    %v2936 = vmul.f32 %v2930, 1.442695
    %v2937 = vpow.pop %v2936
    %v2938 = vmul.f32 %v2931, 1.442695
    %v2939 = vpow.pop %v2938
    %v2940 = vsel %vm574, %v2933, 0.0
    %2941 = vadd.xlane.f32.xlu0 %v2940
    %v2942 = vpop.xlane.xlu0 %2941
    %v2943 = vsel %vm574, %v2935, 0.0
    %2944 = vadd.xlane.f32.xlu0 %v2943
    %v2945 = vpop.xlane.xlu0 %2944
    %v2946 = vsel %vm574, %v2937, 0.0
    %2947 = vadd.xlane.f32.xlu0 %v2946
    %v2948 = vpop.xlane.xlu0 %2947
    %v2949 = vsel %vm574, %v2939, 0.0
    %2950 = vadd.xlane.f32.xlu0 %v2949
    %v2951 = vpop.xlane.xlu0 %2950
    %v2952 = vrcp.pop %v2942
    %v2953 = vrcp.pop %v2945
    %v2954 = vrcp.pop %v2948
    %v2955 = vrcp.pop %v2951
    %v2956 = vmul.f32 %v2933, %v2952
    %v2957 = vmul.f32 %v2935, %v2953
    %v2958 = vmul.f32 %v2937, %v2954
    %v2959 = vmul.f32 %v2939, %v2955
    %v2960 = vpack.c.bf16 %v2957, %v2956
    %v2961 = vpack.c.bf16 %v2959, %v2958
    %2962 = vrot.lane.b32.xlu0 %v2336, 64
    %v2963 = vpop.permute.xlu0 %2962
    %v2966 = vsel %vm574, %v2960, 0
    %2968 = vmatprep.subr.bf16.mxu0 0
    %2969 = vmatpush1.bf16.msra.mxu0 0
    %2970 = vmatprep.subr.bf16.mxu0 0
    %2971 = vmatpush1.bf16.msra.mxu0 0
    %2972 = vmatprep.subr.bf16.mxu0 0
    %2973 = vmatpush1.bf16.msra.mxu0 0
    %2974 = vmatprep.subr.bf16.mxu0 0
    %2975 = vmatpush1.bf16.msra.mxu0 0
    %2976 = vmatprep.subr.bf16.mxu0 0
    %2977 = vmatpush1.bf16.msra.mxu0 0
    %2978 = vmatprep.subr.bf16.mxu0 0
    %2979 = vmatpush1.bf16.msra.mxu0 0
    %2980 = vmatprep.subr.bf16.mxu0 0
    %2981 = vmatpush1.bf16.msra.mxu0 0
    %2982 = vmatprep.subr.bf16.mxu0 0
    %2983 = vmatpush1.bf16.msra.mxu0 %v2963
    %2984 = vmatprep.subr.bf16.mxu0 0
    %2985 = vmatpush2.bf16.msra.mxu0 0
    %2986 = vmatprep.subr.bf16.mxu0 0
    %2987 = vmatpush2.bf16.msra.mxu0 0
    %2988 = vmatprep.subr.bf16.mxu0 0
    %2989 = vmatpush2.bf16.msra.mxu0 0
    %2990 = vmatprep.subr.bf16.mxu0 0
    %2991 = vmatpush2.bf16.msra.mxu0 0
    %2992 = vmatprep.subr.bf16.mxu0 0
    %2993 = vmatpush2.bf16.msra.mxu0 0
    %2994 = vmatprep.subr.bf16.mxu0 0
    %2995 = vmatpush2.bf16.msra.mxu0 0
    %2996 = vmatprep.subr.bf16.mxu0 0
    %2997 = vmatpush2.bf16.msra.mxu0 0
    %2998 = vmatprep.subr.bf16.mxu0 0
    %2999 = vmatpush2.bf16.msra.mxu0 0
    %3000 = vmatprep.mubr.bf16.mxu0 0
    %3001 = vmatmul.mubr.bf16.gmra.mxu0 %v2966
    %v3002 = vpop.f32.mrf.mxu0
    %v3003 = vadd.f32 0.0, %v3002
    %v3004 = vpop.f32.mrf.mxu0
    %v3005 = vpop.f32.mrf.mxu0
    %v3006 = vadd.f32 0.0, %v3005
    %v3007 = vpop.f32.mrf.mxu0
    %3008 = vdwg.mxu0
    %3009 = vrot.lane.b32.xlu0 %v2337, 64
    %v3010 = vpop.permute.xlu0 %3009
    %v3013 = vsel %vm574, %v2961, 0
    %3015 = vmatprep.subr.bf16.mxu0 0
    %3016 = vmatpush1.bf16.msra.mxu0 0
    %3017 = vmatprep.subr.bf16.mxu0 0
    %3018 = vmatpush1.bf16.msra.mxu0 0
    %3019 = vmatprep.subr.bf16.mxu0 0
    %3020 = vmatpush1.bf16.msra.mxu0 0
    %3021 = vmatprep.subr.bf16.mxu0 0
    %3022 = vmatpush1.bf16.msra.mxu0 0
    %3023 = vmatprep.subr.bf16.mxu0 0
    %3024 = vmatpush1.bf16.msra.mxu0 0
    %3025 = vmatprep.subr.bf16.mxu0 0
    %3026 = vmatpush1.bf16.msra.mxu0 0
    %3027 = vmatprep.subr.bf16.mxu0 0
    %3028 = vmatpush1.bf16.msra.mxu0 0
    %3029 = vmatprep.subr.bf16.mxu0 0
    %3030 = vmatpush1.bf16.msra.mxu0 %v3010
    %3031 = vmatprep.subr.bf16.mxu0 0
    %3032 = vmatpush2.bf16.msra.mxu0 0
    %3033 = vmatprep.subr.bf16.mxu0 0
    %3034 = vmatpush2.bf16.msra.mxu0 0
    %3035 = vmatprep.subr.bf16.mxu0 0
    %3036 = vmatpush2.bf16.msra.mxu0 0
    %3037 = vmatprep.subr.bf16.mxu0 0
    %3038 = vmatpush2.bf16.msra.mxu0 0
    %3039 = vmatprep.subr.bf16.mxu0 0
    %3040 = vmatpush2.bf16.msra.mxu0 0
    %3041 = vmatprep.subr.bf16.mxu0 0
    %3042 = vmatpush2.bf16.msra.mxu0 0
    %3043 = vmatprep.subr.bf16.mxu0 0
    %3044 = vmatpush2.bf16.msra.mxu0 0
    %3045 = vmatprep.subr.bf16.mxu0 0
    %3046 = vmatpush2.bf16.msra.mxu0 0
    %3047 = vmatprep.mubr.bf16.mxu0 0
    %3048 = vmatmul.mubr.bf16.gmra.mxu0 %v3013
    %v3049 = vpop.f32.mrf.mxu0
    %v3050 = vadd.f32 0.0, %v3049
    %v3051 = vpop.f32.mrf.mxu0
    %v3052 = vpop.f32.mrf.mxu0
    %v3053 = vadd.f32 0.0, %v3052
    %v3054 = vpop.f32.mrf.mxu0
    %3055 = vdwg.mxu0
    %3056 = vrot.lane.b32.xlu0 %v2314, 32
    %v3057 = vpop.permute.xlu0 %3056
    %3058 = vrot.lane.b32.xlu0 %v2325, 32
    %v3059 = vpop.permute.xlu0 %3058
    %v3061 = vsel %vm479, %v3057, 0
    %v3064 = vsel %vm479, %v3059, 0
    %3066 = vmatprep.subr.bf16.mxu0 0
    %3067 = vmatpush1.bf16.xpose.msra.mxu0 0
    %3068 = vmatprep.subr.bf16.mxu0 0
    %3069 = vmatpush1.bf16.xpose.msra.mxu0 0
    %3070 = vmatprep.subr.bf16.mxu0 0
    %3071 = vmatpush1.bf16.xpose.msra.mxu0 0
    %3072 = vmatprep.subr.bf16.mxu0 0
    %3073 = vmatpush1.bf16.xpose.msra.mxu0 0
    %3074 = vmatprep.subr.bf16.mxu0 0
    %3075 = vmatpush1.bf16.xpose.msra.mxu0 0
    %3076 = vmatprep.subr.bf16.mxu0 0
    %3077 = vmatpush1.bf16.xpose.msra.mxu0 0
    %3078 = vmatprep.subr.bf16.mxu0 0
    %3079 = vmatpush1.bf16.xpose.msra.mxu0 0
    %3080 = vmatprep.subr.bf16.mxu0 0
    %3081 = vmatpush1.bf16.xpose.msra.mxu0 %v3064
    %3082 = vmatprep.subr.bf16.mxu0 0
    %3083 = vmatpush2.bf16.xpose.msra.mxu0 0
    %3084 = vmatprep.subr.bf16.mxu0 0
    %3085 = vmatpush2.bf16.xpose.msra.mxu0 0
    %3086 = vmatprep.subr.bf16.mxu0 0
    %3087 = vmatpush2.bf16.xpose.msra.mxu0 0
    %3088 = vmatprep.subr.bf16.mxu0 0
    %3089 = vmatpush2.bf16.xpose.msra.mxu0 0
    %3090 = vmatprep.subr.bf16.mxu0 0
    %3091 = vmatpush2.bf16.xpose.msra.mxu0 0
    %3092 = vmatprep.subr.bf16.mxu0 0
    %3093 = vmatpush2.bf16.xpose.msra.mxu0 0
    %3094 = vmatprep.subr.bf16.mxu0 0
    %3095 = vmatpush2.bf16.xpose.msra.mxu0 0
    %3096 = vmatprep.subr.bf16.mxu0 0
    %3097 = vmatpush2.bf16.xpose.msra.mxu0 0
    %3098 = vmatprep.mubr.bf16.mxu0 0
    %3099 = vmatmul.mubr.bf16.gmra.mxu0 %v3061
    %v3100 = vpop.f32.mrf.mxu0
    %v3101 = vadd.f32 %v181, %v3100
    %v3102 = vpop.f32.mrf.mxu0
    %v3103 = vpop.f32.mrf.mxu0
    %v3104 = vadd.f32 %v181, %v3103
    %v3105 = vpop.f32.mrf.mxu0
    %3106 = vdwg.mxu0
    %3107 = vrot.lane.b32.xlu0 %v2315, 32
    %v3108 = vpop.permute.xlu0 %3107
    %3109 = vrot.lane.b32.xlu0 %v2326, 32
    %v3110 = vpop.permute.xlu0 %3109
    %v3112 = vsel %vm479, %v3108, 0
    %v3115 = vsel %vm479, %v3110, 0
    %3117 = vmatprep.subr.bf16.mxu0 0
    %3118 = vmatpush1.bf16.xpose.msra.mxu0 0
    %3119 = vmatprep.subr.bf16.mxu0 0
    %3120 = vmatpush1.bf16.xpose.msra.mxu0 0
    %3121 = vmatprep.subr.bf16.mxu0 0
    %3122 = vmatpush1.bf16.xpose.msra.mxu0 0
    %3123 = vmatprep.subr.bf16.mxu0 0
    %3124 = vmatpush1.bf16.xpose.msra.mxu0 0
    %3125 = vmatprep.subr.bf16.mxu0 0
    %3126 = vmatpush1.bf16.xpose.msra.mxu0 0
    %3127 = vmatprep.subr.bf16.mxu0 0
    %3128 = vmatpush1.bf16.xpose.msra.mxu0 0
    %3129 = vmatprep.subr.bf16.mxu0 0
    %3130 = vmatpush1.bf16.xpose.msra.mxu0 0
    %3131 = vmatprep.subr.bf16.mxu0 0
    %3132 = vmatpush1.bf16.xpose.msra.mxu0 %v3115
    %3133 = vmatprep.subr.bf16.mxu0 0
    %3134 = vmatpush2.bf16.xpose.msra.mxu0 0
    %3135 = vmatprep.subr.bf16.mxu0 0
    %3136 = vmatpush2.bf16.xpose.msra.mxu0 0
    %3137 = vmatprep.subr.bf16.mxu0 0
    %3138 = vmatpush2.bf16.xpose.msra.mxu0 0
    %3139 = vmatprep.subr.bf16.mxu0 0
    %3140 = vmatpush2.bf16.xpose.msra.mxu0 0
    %3141 = vmatprep.subr.bf16.mxu0 0
    %3142 = vmatpush2.bf16.xpose.msra.mxu0 0
    %3143 = vmatprep.subr.bf16.mxu0 0
    %3144 = vmatpush2.bf16.xpose.msra.mxu0 0
    %3145 = vmatprep.subr.bf16.mxu0 0
    %3146 = vmatpush2.bf16.xpose.msra.mxu0 0
    %3147 = vmatprep.subr.bf16.mxu0 0
    %3148 = vmatpush2.bf16.xpose.msra.mxu0 0
    %3149 = vmatprep.mubr.bf16.mxu0 0
    %3150 = vmatmul.mubr.bf16.gmra.mxu0 %v3112
    %v3151 = vpop.f32.mrf.mxu0
    %v3152 = vadd.f32 %v181, %v3151
    %v3153 = vpop.f32.mrf.mxu0
    %v3154 = vpop.f32.mrf.mxu0
    %v3155 = vadd.f32 %v181, %v3154
    %v3156 = vpop.f32.mrf.mxu0
    %3157 = vdwg.mxu0
    %v3158 = vsel %vm574, %v3101, -inf
    %3159 = vmax.xlane.f32.xlu0 %v3158
    %v3160 = vpop.xlane.xlu0 %3159
    %v3161 = vsel %vm574, %v3104, -inf
    %3162 = vmax.xlane.f32.xlu0 %v3161
    %v3163 = vpop.xlane.xlu0 %3162
    %v3164 = vsel %vm574, %v3152, -inf
    %3165 = vmax.xlane.f32.xlu0 %v3164
    %v3166 = vpop.xlane.xlu0 %3165
    %v3167 = vsel %vm574, %v3155, -inf
    %3168 = vmax.xlane.f32.xlu0 %v3167
    %v3169 = vpop.xlane.xlu0 %3168
    %v3170 = vsub.f32 %v3101, %v3160
    %v3171 = vsub.f32 %v3104, %v3163
    %v3172 = vsub.f32 %v3152, %v3166
    %v3173 = vsub.f32 %v3155, %v3169
    %v3174 = vmul.f32 %v3170, 1.442695
    %v3175 = vpow.pop %v3174
    %v3176 = vmul.f32 %v3171, 1.442695
    %v3177 = vpow.pop %v3176
    %v3178 = vmul.f32 %v3172, 1.442695
    %v3179 = vpow.pop %v3178
    %v3180 = vmul.f32 %v3173, 1.442695
    %v3181 = vpow.pop %v3180
    %v3182 = vsel %vm574, %v3175, 0.0
    %3183 = vadd.xlane.f32.xlu0 %v3182
    %v3184 = vpop.xlane.xlu0 %3183
    %v3185 = vsel %vm574, %v3177, 0.0
    %3186 = vadd.xlane.f32.xlu0 %v3185
    %v3187 = vpop.xlane.xlu0 %3186
    %v3188 = vsel %vm574, %v3179, 0.0
    %3189 = vadd.xlane.f32.xlu0 %v3188
    %v3190 = vpop.xlane.xlu0 %3189
    %v3191 = vsel %vm574, %v3181, 0.0
    %3192 = vadd.xlane.f32.xlu0 %v3191
    %v3193 = vpop.xlane.xlu0 %3192
    %v3194 = vrcp.pop %v3184
    %v3195 = vrcp.pop %v3187
    %v3196 = vrcp.pop %v3190
    %v3197 = vrcp.pop %v3193
    %v3198 = vmul.f32 %v3175, %v3194
    %v3199 = vmul.f32 %v3177, %v3195
    %v3200 = vmul.f32 %v3179, %v3196
    %v3201 = vmul.f32 %v3181, %v3197
    %v3202 = vpack.c.bf16 %v3199, %v3198
    %v3203 = vpack.c.bf16 %v3201, %v3200
    %3204 = vrot.lane.b32.xlu0 %v2336, 32
    %v3205 = vpop.permute.xlu0 %3204
    %v3208 = vsel %vm574, %v3202, 0
    %3210 = vmatprep.subr.bf16.mxu0 0
    %3211 = vmatpush1.bf16.msra.mxu0 0
    %3212 = vmatprep.subr.bf16.mxu0 0
    %3213 = vmatpush1.bf16.msra.mxu0 0
    %3214 = vmatprep.subr.bf16.mxu0 0
    %3215 = vmatpush1.bf16.msra.mxu0 0
    %3216 = vmatprep.subr.bf16.mxu0 0
    %3217 = vmatpush1.bf16.msra.mxu0 0
    %3218 = vmatprep.subr.bf16.mxu0 0
    %3219 = vmatpush1.bf16.msra.mxu0 0
    %3220 = vmatprep.subr.bf16.mxu0 0
    %3221 = vmatpush1.bf16.msra.mxu0 0
    %3222 = vmatprep.subr.bf16.mxu0 0
    %3223 = vmatpush1.bf16.msra.mxu0 0
    %3224 = vmatprep.subr.bf16.mxu0 0
    %3225 = vmatpush1.bf16.msra.mxu0 %v3205
    %3226 = vmatprep.subr.bf16.mxu0 0
    %3227 = vmatpush2.bf16.msra.mxu0 0
    %3228 = vmatprep.subr.bf16.mxu0 0
    %3229 = vmatpush2.bf16.msra.mxu0 0
    %3230 = vmatprep.subr.bf16.mxu0 0
    %3231 = vmatpush2.bf16.msra.mxu0 0
    %3232 = vmatprep.subr.bf16.mxu0 0
    %3233 = vmatpush2.bf16.msra.mxu0 0
    %3234 = vmatprep.subr.bf16.mxu0 0
    %3235 = vmatpush2.bf16.msra.mxu0 0
    %3236 = vmatprep.subr.bf16.mxu0 0
    %3237 = vmatpush2.bf16.msra.mxu0 0
    %3238 = vmatprep.subr.bf16.mxu0 0
    %3239 = vmatpush2.bf16.msra.mxu0 0
    %3240 = vmatprep.subr.bf16.mxu0 0
    %3241 = vmatpush2.bf16.msra.mxu0 0
    %3242 = vmatprep.mubr.bf16.mxu0 0
    %3243 = vmatmul.mubr.bf16.gmra.mxu0 %v3208
    %v3244 = vpop.f32.mrf.mxu0
    %v3245 = vadd.f32 0.0, %v3244
    %v3246 = vpop.f32.mrf.mxu0
    %v3247 = vpop.f32.mrf.mxu0
    %v3248 = vadd.f32 0.0, %v3247
    %v3249 = vpop.f32.mrf.mxu0
    %3250 = vdwg.mxu0
    %3251 = vrot.lane.b32.xlu0 %v2337, 32
    %v3252 = vpop.permute.xlu0 %3251
    %v3255 = vsel %vm574, %v3203, 0
    %3257 = vmatprep.subr.bf16.mxu0 0
    %3258 = vmatpush1.bf16.msra.mxu0 0
    %3259 = vmatprep.subr.bf16.mxu0 0
    %3260 = vmatpush1.bf16.msra.mxu0 0
    %3261 = vmatprep.subr.bf16.mxu0 0
    %3262 = vmatpush1.bf16.msra.mxu0 0
    %3263 = vmatprep.subr.bf16.mxu0 0
    %3264 = vmatpush1.bf16.msra.mxu0 0
    %3265 = vmatprep.subr.bf16.mxu0 0
    %3266 = vmatpush1.bf16.msra.mxu0 0
    %3267 = vmatprep.subr.bf16.mxu0 0
    %3268 = vmatpush1.bf16.msra.mxu0 0
    %3269 = vmatprep.subr.bf16.mxu0 0
    %3270 = vmatpush1.bf16.msra.mxu0 0
    %3271 = vmatprep.subr.bf16.mxu0 0
    %3272 = vmatpush1.bf16.msra.mxu0 %v3252
    %3273 = vmatprep.subr.bf16.mxu0 0
    %3274 = vmatpush2.bf16.msra.mxu0 0
    %3275 = vmatprep.subr.bf16.mxu0 0
    %3276 = vmatpush2.bf16.msra.mxu0 0
    %3277 = vmatprep.subr.bf16.mxu0 0
    %3278 = vmatpush2.bf16.msra.mxu0 0
    %3279 = vmatprep.subr.bf16.mxu0 0
    %3280 = vmatpush2.bf16.msra.mxu0 0
    %3281 = vmatprep.subr.bf16.mxu0 0
    %3282 = vmatpush2.bf16.msra.mxu0 0
    %3283 = vmatprep.subr.bf16.mxu0 0
    %3284 = vmatpush2.bf16.msra.mxu0 0
    %3285 = vmatprep.subr.bf16.mxu0 0
    %3286 = vmatpush2.bf16.msra.mxu0 0
    %3287 = vmatprep.subr.bf16.mxu0 0
    %3288 = vmatpush2.bf16.msra.mxu0 0
    %3289 = vmatprep.mubr.bf16.mxu0 0
    %3290 = vmatmul.mubr.bf16.gmra.mxu0 %v3255
    %v3291 = vpop.f32.mrf.mxu0
    %v3292 = vadd.f32 0.0, %v3291
    %v3293 = vpop.f32.mrf.mxu0
    %v3294 = vpop.f32.mrf.mxu0
    %v3295 = vadd.f32 0.0, %v3294
    %v3296 = vpop.f32.mrf.mxu0
    %3297 = vdwg.mxu0
    %3302 = vrot.lane.b32.xlu0 %v2760, 32
    %v3303 = vpop.permute.xlu0 %3302
    %3304 = vrot.lane.b32.xlu0 %v2763, 32
    %v3305 = vpop.permute.xlu0 %3304
    %3306 = vrot.lane.b32.xlu0 %v2808, 32
    %v3307 = vpop.permute.xlu0 %3306
    %3308 = vrot.lane.b32.xlu0 %v2811, 32
    %v3309 = vpop.permute.xlu0 %3308
    %3318 = vrot.lane.b32.xlu0 %v3003, 64
    %v3319 = vpop.permute.xlu0 %3318
    %3320 = vrot.lane.b32.xlu0 %v3006, 64
    %v3321 = vpop.permute.xlu0 %3320
    %3322 = vrot.lane.b32.xlu0 %v3050, 64
    %v3323 = vpop.permute.xlu0 %3322
    %3324 = vrot.lane.b32.xlu0 %v3053, 64
    %v3325 = vpop.permute.xlu0 %3324
    %3334 = vrot.lane.b32.xlu0 %v3245, 96
    %v3335 = vpop.permute.xlu0 %3334
    %3336 = vrot.lane.b32.xlu0 %v3248, 96
    %v3337 = vpop.permute.xlu0 %3336
    %3338 = vrot.lane.b32.xlu0 %v3292, 96
    %v3339 = vpop.permute.xlu0 %3338
    %3340 = vrot.lane.b32.xlu0 %v3295, 96
    %v3341 = vpop.permute.xlu0 %3340
    %v3346 = vsel %vm479, %v2516, %v3303
    %v3347 = vsel %vm479, %v2519, %v3305
    %v3348 = vsel %vm479, %v2560, %v3307
    %v3349 = vsel %vm479, %v2563, %v3309
    %v3350 = vsel %vm1493, %v3346, %v3319
    %v3351 = vsel %vm1493, %v3347, %v3321
    %v3352 = vsel %vm1493, %v3348, %v3323
    %v3353 = vsel %vm1493, %v3349, %v3325
    %v3354 = vsel %vm1498, %v3350, %v3335
    %v3355 = vsel %vm1498, %v3351, %v3337
    %v3356 = vsel %vm1498, %v3352, %v3339
    %v3357 = vsel %vm1498, %v3353, %v3341
    %v3358 = vpack.c.bf16 %v3355, %v3354
    %v3359 = vpack.c.bf16 %v3357, %v3356
    %v3360 = vld [vmem:[%s2041 + $0xc] sm:$0xf]
    %v3361 = vld [vmem:[%s2041 + $0x24] sm:$0xf]
    %v3362 = vld [vmem:[%s2041 + $0x3c] sm:$0xf]
    %v3363 = vld [vmem:[%s2041 + $0x54] sm:$0xf]
    %v3364 = vld [vmem:[%s2041 + $0x6c] sm:$0xf]
    %v3365 = vld [vmem:[%s2041 + $0x84] sm:$0xf]
    %v3366 = vld [vmem:[%s2041 + $0x9c] sm:$0xf]
    %v3367 = vld [vmem:[%s2041 + $0xb4] sm:$0xf]
    %v3368 = vld [vmem:[%s2041 + $0xcc] sm:$0xf]
    %v3369 = vld [vmem:[%s2041 + $0xe4] sm:$0xf]
    %v3370 = vld [vmem:[%s2041 + $0xfc] sm:$0xf]
    %v3371 = vld [vmem:[%s2041 + $0x114] sm:$0xf]
    %v3372 = vld [vmem:[%s2041 + $0x12c] sm:$0xf]
    %v3373 = vld [vmem:[%s2041 + $0x144] sm:$0xf]
    %v3374 = vld [vmem:[%s2041 + $0x15c] sm:$0xf]
    %v3375 = vld [vmem:[%s2041 + $0x174] sm:$0xf]
    %v3376 = vld [vmem:[%s2304 + $0x3] sm:$0x1]
    %v3377 = vlaneseq
    %v3378 = vshrl.u32 %v3377, 7
    %v3379 = vsub.s32 0, %v3378
    %v3380 = vrot.slane %v3376, %v3379
    %v3397 = vunpack.c.l.b16 %v3360
    %v3398 = vunpack.c.l.b16 %v3361
    %v3399 = vunpack.c.l.b16 %v3362
    %v3400 = vunpack.c.l.b16 %v3363
    %v3401 = vunpack.c.l.b16 %v3364
    %v3402 = vunpack.c.l.b16 %v3365
    %v3403 = vunpack.c.l.b16 %v3366
    %v3404 = vunpack.c.l.b16 %v3367
    %v3405 = vunpack.c.l.b16 %v3368
    %v3406 = vunpack.c.l.b16 %v3369
    %v3407 = vunpack.c.l.b16 %v3370
    %v3408 = vunpack.c.l.b16 %v3371
    %v3409 = vunpack.c.l.b16 %v3372
    %v3410 = vunpack.c.l.b16 %v3373
    %v3411 = vunpack.c.l.b16 %v3374
    %v3412 = vunpack.c.l.b16 %v3375
    %v3413 = vpack.c.b16 %v3398, %v3397
    %v3414 = vpack.c.b16 %v3400, %v3399
    %v3415 = vpack.c.b16 %v3402, %v3401
    %v3416 = vpack.c.b16 %v3404, %v3403
    %v3417 = vpack.c.b16 %v3406, %v3405
    %v3418 = vpack.c.b16 %v3408, %v3407
    %v3419 = vpack.c.b16 %v3410, %v3409
    %v3420 = vpack.c.b16 %v3412, %v3411
    %3429 = vmatprep.subr.bf16.mxu0 0
    %3430 = vmatpush1.bf16.msra.mxu0 %v3420
    %3431 = vmatprep.subr.bf16.mxu0 0
    %3432 = vmatpush1.bf16.msra.mxu0 %v3419
    %3433 = vmatprep.subr.bf16.mxu0 0
    %3434 = vmatpush1.bf16.msra.mxu0 %v3418
    %3435 = vmatprep.subr.bf16.mxu0 0
    %3436 = vmatpush1.bf16.msra.mxu0 %v3417
    %3437 = vmatprep.subr.bf16.mxu0 0
    %3438 = vmatpush1.bf16.msra.mxu0 %v3416
    %3439 = vmatprep.subr.bf16.mxu0 0
    %3440 = vmatpush1.bf16.msra.mxu0 %v3415
    %3441 = vmatprep.subr.bf16.mxu0 0
    %3442 = vmatpush1.bf16.msra.mxu0 %v3414
    %3443 = vmatprep.subr.bf16.mxu0 0
    %3444 = vmatpush1.bf16.msra.mxu0 %v3413
    %3445 = vmatprep.subr.bf16.mxu0 0
    %3446 = vmatpush2.bf16.msra.mxu0 0
    %3447 = vmatprep.subr.bf16.mxu0 0
    %3448 = vmatpush2.bf16.msra.mxu0 0
    %3449 = vmatprep.subr.bf16.mxu0 0
    %3450 = vmatpush2.bf16.msra.mxu0 0
    %3451 = vmatprep.subr.bf16.mxu0 0
    %3452 = vmatpush2.bf16.msra.mxu0 0
    %3453 = vmatprep.subr.bf16.mxu0 0
    %3454 = vmatpush2.bf16.msra.mxu0 0
    %3455 = vmatprep.subr.bf16.mxu0 0
    %3456 = vmatpush2.bf16.msra.mxu0 0
    %3457 = vmatprep.subr.bf16.mxu0 0
    %3458 = vmatpush2.bf16.msra.mxu0 0
    %3459 = vmatprep.subr.bf16.mxu0 0
    %3460 = vmatpush2.bf16.msra.mxu0 0
    %3461 = vmatprep.mubr.bf16.mxu0 0
    %3462 = vmatmul.mubr.bf16.gmra.mxu0 %v3358
    %v3463 = vpop.f32.mrf.mxu0
    %v3464 = vadd.f32 %v3380, %v3463
    %v3465 = vpop.f32.mrf.mxu0
    %v3466 = vpop.f32.mrf.mxu0
    %v3467 = vadd.f32 %v3380, %v3466
    %v3468 = vpop.f32.mrf.mxu0
    %3469 = vmatprep.mubr.bf16.mxu0 0
    %3470 = vmatmul.mubr.bf16.gmra.mxu0 %v3359
    %v3471 = vpop.f32.mrf.mxu0
    %v3472 = vadd.f32 %v3380, %v3471
    %v3473 = vpop.f32.mrf.mxu0
    %v3474 = vpop.f32.mrf.mxu0
    %v3475 = vadd.f32 %v3380, %v3474
    %v3476 = vpop.f32.mrf.mxu0
    %3477 = vdwg.mxu0
    %v3478 = vadd.f32 %v2035, %v3464
    %v3479 = vadd.f32 %v2036, %v3467
    %v3480 = vadd.f32 %v2037, %v3472
    %v3481 = vadd.f32 %v2038, %v3475
    %v3482 = vld [vmem:[%s2304 + $0x6] sm:$0x1]
    %v3483 = vld [vmem:[%s2304 + $0x7] sm:$0x1]
    %3484 = vadd.xlane.f32.xlu0 %v3478
    %v3485 = vpop.xlane.xlu0 %3484
    %3486 = vadd.xlane.f32.xlu0 %v3479
    %v3487 = vpop.xlane.xlu0 %3486
    %3488 = vadd.xlane.f32.xlu0 %v3480
    %v3489 = vpop.xlane.xlu0 %3488
    %3490 = vadd.xlane.f32.xlu0 %v3481
    %v3491 = vpop.xlane.xlu0 %3490
    %v3492 = vmul.f32 %v3485, 0.03125
    %v3493 = vmul.f32 %v3487, 0.03125
    %v3494 = vmul.f32 %v3489, 0.03125
    %v3495 = vmul.f32 %v3491, 0.03125
    %v3496 = vsub.f32 %v3478, %v3492
    %v3497 = vsub.f32 %v3479, %v3493
    %v3498 = vsub.f32 %v3480, %v3494
    %v3499 = vsub.f32 %v3481, %v3495
    %v3500 = vmul.f32 %v3496, %v54
    %v3501 = vmul.f32 %v3497, %v54
    %v3502 = vmul.f32 %v3498, %v54
    %v3503 = vmul.f32 %v3499, %v54
    %v3504 = vmul.f32 %v3500, %v3500
    %v3505 = vmul.f32 %v3501, %v3501
    %v3506 = vmul.f32 %v3502, %v3502
    %v3507 = vmul.f32 %v3503, %v3503
    %3508 = vadd.xlane.f32.xlu0 %v3504
    %v3509 = vpop.xlane.xlu0 %3508
    %3510 = vadd.xlane.f32.xlu0 %v3505
    %v3511 = vpop.xlane.xlu0 %3510
    %3512 = vadd.xlane.f32.xlu0 %v3506
    %v3513 = vpop.xlane.xlu0 %3512
    %3514 = vadd.xlane.f32.xlu0 %v3507
    %v3515 = vpop.xlane.xlu0 %3514
    %v3516 = vmul.f32 %v3509, 0.03125
    %v3517 = vmul.f32 %v3511, 0.03125
    %v3518 = vmul.f32 %v3513, 0.03125
    %v3519 = vmul.f32 %v3515, 0.03125
    %v3520 = vadd.f32 %v3516, 1e-05
    %v3521 = vadd.f32 %v3517, 1e-05
    %v3522 = vadd.f32 %v3518, 1e-05
    %v3523 = vadd.f32 %v3519, 1e-05
    %v3524 = vrsqrt.pop %v3520
    %v3525 = vrsqrt.pop %v3521
    %v3526 = vrsqrt.pop %v3522
    %v3527 = vrsqrt.pop %v3523
    %v3528 = vmul.f32 %v3500, %v3524
    %v3529 = vmul.f32 %v3501, %v3525
    %v3530 = vmul.f32 %v3502, %v3526
    %v3531 = vmul.f32 %v3503, %v3527
    %v3532 = vlaneseq
    %v3533 = vshrl.u32 %v3532, 7
    %v3534 = vsub.s32 0, %v3533
    %v3535 = vrot.slane %v3482, %v3534
    %v3536 = vmul.f32 %v3528, %v3535
    %v3537 = vmul.f32 %v3529, %v3535
    %v3538 = vmul.f32 %v3530, %v3535
    %v3539 = vmul.f32 %v3531, %v3535
    %v3540 = vlaneseq
    %v3541 = vshrl.u32 %v3540, 7
    %v3542 = vsub.s32 0, %v3541
    %v3543 = vrot.slane %v3483, %v3542
    %v3544 = vadd.f32 %v3536, %v3543
    %v3545 = vadd.f32 %v3537, %v3543
    %v3546 = vadd.f32 %v3538, %v3543
    %v3547 = vadd.f32 %v3539, %v3543
    %v3548 = vpack.c.bf16 %v3545, %v3544
    %v3549 = vpack.c.bf16 %v3547, %v3546
    %v3550 = vld [vmem:[%s2041 + $0x10] sm:$0xf]
    %v3551 = vld [vmem:[%s2041 + $0x28] sm:$0xf]
    %v3552 = vld [vmem:[%s2041 + $0x40] sm:$0xf]
    %v3553 = vld [vmem:[%s2041 + $0x58] sm:$0xf]
    %v3554 = vld [vmem:[%s2041 + $0x70] sm:$0xf]
    %v3555 = vld [vmem:[%s2041 + $0x88] sm:$0xf]
    %v3556 = vld [vmem:[%s2041 + $0xa0] sm:$0xf]
    %v3557 = vld [vmem:[%s2041 + $0xb8] sm:$0xf]
    %v3558 = vld [vmem:[%s2041 + $0xd0] sm:$0xf]
    %v3559 = vld [vmem:[%s2041 + $0xe8] sm:$0xf]
    %v3560 = vld [vmem:[%s2041 + $0x100] sm:$0xf]
    %v3561 = vld [vmem:[%s2041 + $0x118] sm:$0xf]
    %v3562 = vld [vmem:[%s2041 + $0x130] sm:$0xf]
    %v3563 = vld [vmem:[%s2041 + $0x148] sm:$0xf]
    %v3564 = vld [vmem:[%s2041 + $0x160] sm:$0xf]
    %v3565 = vld [vmem:[%s2041 + $0x178] sm:$0xf]
    %v3566 = vld [vmem:[%s2304 + $0x4] sm:$0x1]
    %v3567 = vlaneseq
    %v3568 = vshrl.u32 %v3567, 7
    %v3569 = vsub.s32 0, %v3568
    %v3570 = vrot.slane %v3566, %v3569
    %v3587 = vunpack.c.l.b16 %v3550
    %v3588 = vunpack.c.l.b16 %v3551
    %v3589 = vunpack.c.l.b16 %v3552
    %v3590 = vunpack.c.l.b16 %v3553
    %v3591 = vunpack.c.l.b16 %v3554
    %v3592 = vunpack.c.l.b16 %v3555
    %v3593 = vunpack.c.l.b16 %v3556
    %v3594 = vunpack.c.l.b16 %v3557
    %v3595 = vunpack.c.l.b16 %v3558
    %v3596 = vunpack.c.l.b16 %v3559
    %v3597 = vunpack.c.l.b16 %v3560
    %v3598 = vunpack.c.l.b16 %v3561
    %v3599 = vunpack.c.l.b16 %v3562
    %v3600 = vunpack.c.l.b16 %v3563
    %v3601 = vunpack.c.l.b16 %v3564
    %v3602 = vunpack.c.l.b16 %v3565
    %v3603 = vpack.c.b16 %v3588, %v3587
    %v3604 = vpack.c.b16 %v3590, %v3589
    %v3605 = vpack.c.b16 %v3592, %v3591
    %v3606 = vpack.c.b16 %v3594, %v3593
    %v3607 = vpack.c.b16 %v3596, %v3595
    %v3608 = vpack.c.b16 %v3598, %v3597
    %v3609 = vpack.c.b16 %v3600, %v3599
    %v3610 = vpack.c.b16 %v3602, %v3601
    %3619 = vmatprep.subr.bf16.mxu0 0
    %3620 = vmatpush1.bf16.msra.mxu0 %v3610
    %3621 = vmatprep.subr.bf16.mxu0 0
    %3622 = vmatpush1.bf16.msra.mxu0 %v3609
    %3623 = vmatprep.subr.bf16.mxu0 0
    %3624 = vmatpush1.bf16.msra.mxu0 %v3608
    %3625 = vmatprep.subr.bf16.mxu0 0
    %3626 = vmatpush1.bf16.msra.mxu0 %v3607
    %3627 = vmatprep.subr.bf16.mxu0 0
    %3628 = vmatpush1.bf16.msra.mxu0 %v3606
    %3629 = vmatprep.subr.bf16.mxu0 0
    %3630 = vmatpush1.bf16.msra.mxu0 %v3605
    %3631 = vmatprep.subr.bf16.mxu0 0
    %3632 = vmatpush1.bf16.msra.mxu0 %v3604
    %3633 = vmatprep.subr.bf16.mxu0 0
    %3634 = vmatpush1.bf16.msra.mxu0 %v3603
    %3635 = vmatprep.subr.bf16.mxu0 0
    %3636 = vmatpush2.bf16.msra.mxu0 0
    %3637 = vmatprep.subr.bf16.mxu0 0
    %3638 = vmatpush2.bf16.msra.mxu0 0
    %3639 = vmatprep.subr.bf16.mxu0 0
    %3640 = vmatpush2.bf16.msra.mxu0 0
    %3641 = vmatprep.subr.bf16.mxu0 0
    %3642 = vmatpush2.bf16.msra.mxu0 0
    %3643 = vmatprep.subr.bf16.mxu0 0
    %3644 = vmatpush2.bf16.msra.mxu0 0
    %3645 = vmatprep.subr.bf16.mxu0 0
    %3646 = vmatpush2.bf16.msra.mxu0 0
    %3647 = vmatprep.subr.bf16.mxu0 0
    %3648 = vmatpush2.bf16.msra.mxu0 0
    %3649 = vmatprep.subr.bf16.mxu0 0
    %3650 = vmatpush2.bf16.msra.mxu0 0
    %3651 = vmatprep.mubr.bf16.mxu0 0
    %3652 = vmatmul.mubr.bf16.gmra.mxu0 %v3548
    %v3653 = vpop.f32.mrf.mxu0
    %v3654 = vadd.f32 %v3570, %v3653
    %v3655 = vpop.f32.mrf.mxu0
    %v3656 = vpop.f32.mrf.mxu0
    %v3657 = vadd.f32 %v3570, %v3656
    %v3658 = vpop.f32.mrf.mxu0
    %3659 = vmatprep.mubr.bf16.mxu0 0
    %3660 = vmatmul.mubr.bf16.gmra.mxu0 %v3549
    %v3661 = vpop.f32.mrf.mxu0
    %v3662 = vadd.f32 %v3570, %v3661
    %v3663 = vpop.f32.mrf.mxu0
    %v3664 = vpop.f32.mrf.mxu0
    %v3665 = vadd.f32 %v3570, %v3664
    %v3666 = vpop.f32.mrf.mxu0
    %3667 = vdwg.mxu0
    %v3668 = vmul.f32 %v3654, 0.5
    %v3669 = vmul.f32 %v3657, 0.5
    %v3670 = vmul.f32 %v3662, 0.5
    %v3671 = vmul.f32 %v3665, 0.5
    %v3672 = vmul.f32 %v3654, 0.044715
    %v3673 = vmul.f32 %v3657, 0.044715
    %v3674 = vmul.f32 %v3662, 0.044715
    %v3675 = vmul.f32 %v3665, 0.044715
    %v3676 = vmul.f32 %v3672, %v3654
    %v3677 = vmul.f32 %v3673, %v3657
    %v3678 = vmul.f32 %v3674, %v3662
    %v3679 = vmul.f32 %v3675, %v3665
    %v3680 = vmul.f32 %v3676, %v3654
    %v3681 = vmul.f32 %v3677, %v3657
    %v3682 = vmul.f32 %v3678, %v3662
    %v3683 = vmul.f32 %v3679, %v3665
    %v3684 = vadd.f32 %v3654, %v3680
    %v3685 = vadd.f32 %v3657, %v3681
    %v3686 = vadd.f32 %v3662, %v3682
    %v3687 = vadd.f32 %v3665, %v3683
    %v3688 = vmul.f32 %v3684, 0.7978846
    %v3689 = vmul.f32 %v3685, 0.7978846
    %v3690 = vmul.f32 %v3686, 0.7978846
    %v3691 = vmul.f32 %v3687, 0.7978846
    %v3692 = vtanh.pop %v3688
    %v3693 = vtanh.pop %v3689
    %v3694 = vtanh.pop %v3690
    %v3695 = vtanh.pop %v3691
    %v3696 = vadd.f32 %v3692, 1.0
    %v3697 = vadd.f32 %v3693, 1.0
    %v3698 = vadd.f32 %v3694, 1.0
    %v3699 = vadd.f32 %v3695, 1.0
    %v3700 = vmul.f32 %v3668, %v3696
    %v3701 = vmul.f32 %v3669, %v3697
    %v3702 = vmul.f32 %v3670, %v3698
    %v3703 = vmul.f32 %v3671, %v3699
    %v3704 = vpack.c.bf16 %v3701, %v3700
    %v3705 = vpack.c.bf16 %v3703, %v3702
    %v3706 = vld [vmem:[%s2041 + $0x14] sm:$0xf]
    %v3707 = vld [vmem:[%s2041 + $0x2c] sm:$0xf]
    %v3708 = vld [vmem:[%s2041 + $0x44] sm:$0xf]
    %v3709 = vld [vmem:[%s2041 + $0x5c] sm:$0xf]
    %v3710 = vld [vmem:[%s2041 + $0x74] sm:$0xf]
    %v3711 = vld [vmem:[%s2041 + $0x8c] sm:$0xf]
    %v3712 = vld [vmem:[%s2041 + $0xa4] sm:$0xf]
    %v3713 = vld [vmem:[%s2041 + $0xbc] sm:$0xf]
    %v3714 = vld [vmem:[%s2041 + $0xd4] sm:$0xf]
    %v3715 = vld [vmem:[%s2041 + $0xec] sm:$0xf]
    %v3716 = vld [vmem:[%s2041 + $0x104] sm:$0xf]
    %v3717 = vld [vmem:[%s2041 + $0x11c] sm:$0xf]
    %v3718 = vld [vmem:[%s2041 + $0x134] sm:$0xf]
    %v3719 = vld [vmem:[%s2041 + $0x14c] sm:$0xf]
    %v3720 = vld [vmem:[%s2041 + $0x164] sm:$0xf]
    %v3721 = vld [vmem:[%s2041 + $0x17c] sm:$0xf]
    %v3722 = vld [vmem:[%s2304 + $0x5] sm:$0x1]
    %v3723 = vlaneseq
    %v3724 = vshrl.u32 %v3723, 7
    %v3725 = vsub.s32 0, %v3724
    %v3726 = vrot.slane %v3722, %v3725
    %v3743 = vunpack.c.l.b16 %v3706
    %v3744 = vunpack.c.l.b16 %v3707
    %v3745 = vunpack.c.l.b16 %v3708
    %v3746 = vunpack.c.l.b16 %v3709
    %v3747 = vunpack.c.l.b16 %v3710
    %v3748 = vunpack.c.l.b16 %v3711
    %v3749 = vunpack.c.l.b16 %v3712
    %v3750 = vunpack.c.l.b16 %v3713
    %v3751 = vunpack.c.l.b16 %v3714
    %v3752 = vunpack.c.l.b16 %v3715
    %v3753 = vunpack.c.l.b16 %v3716
    %v3754 = vunpack.c.l.b16 %v3717
    %v3755 = vunpack.c.l.b16 %v3718
    %v3756 = vunpack.c.l.b16 %v3719
    %v3757 = vunpack.c.l.b16 %v3720
    %v3758 = vunpack.c.l.b16 %v3721
    %v3759 = vpack.c.b16 %v3744, %v3743
    %v3760 = vpack.c.b16 %v3746, %v3745
    %v3761 = vpack.c.b16 %v3748, %v3747
    %v3762 = vpack.c.b16 %v3750, %v3749
    %v3763 = vpack.c.b16 %v3752, %v3751
    %v3764 = vpack.c.b16 %v3754, %v3753
    %v3765 = vpack.c.b16 %v3756, %v3755
    %v3766 = vpack.c.b16 %v3758, %v3757
    %3775 = vmatprep.subr.bf16.mxu0 0
    %3776 = vmatpush1.bf16.msra.mxu0 %v3766
    %3777 = vmatprep.subr.bf16.mxu0 0
    %3778 = vmatpush1.bf16.msra.mxu0 %v3765
    %3779 = vmatprep.subr.bf16.mxu0 0
    %3780 = vmatpush1.bf16.msra.mxu0 %v3764
    %3781 = vmatprep.subr.bf16.mxu0 0
    %3782 = vmatpush1.bf16.msra.mxu0 %v3763
    %3783 = vmatprep.subr.bf16.mxu0 0
    %3784 = vmatpush1.bf16.msra.mxu0 %v3762
    %3785 = vmatprep.subr.bf16.mxu0 0
    %3786 = vmatpush1.bf16.msra.mxu0 %v3761
    %3787 = vmatprep.subr.bf16.mxu0 0
    %3788 = vmatpush1.bf16.msra.mxu0 %v3760
    %3789 = vmatprep.subr.bf16.mxu0 0
    %3790 = vmatpush1.bf16.msra.mxu0 %v3759
    %3791 = vmatprep.subr.bf16.mxu0 0
    %3792 = vmatpush2.bf16.msra.mxu0 0
    %3793 = vmatprep.subr.bf16.mxu0 0
    %3794 = vmatpush2.bf16.msra.mxu0 0
    %3795 = vmatprep.subr.bf16.mxu0 0
    %3796 = vmatpush2.bf16.msra.mxu0 0
    %3797 = vmatprep.subr.bf16.mxu0 0
    %3798 = vmatpush2.bf16.msra.mxu0 0
    %3799 = vmatprep.subr.bf16.mxu0 0
    %3800 = vmatpush2.bf16.msra.mxu0 0
    %3801 = vmatprep.subr.bf16.mxu0 0
    %3802 = vmatpush2.bf16.msra.mxu0 0
    %3803 = vmatprep.subr.bf16.mxu0 0
    %3804 = vmatpush2.bf16.msra.mxu0 0
    %3805 = vmatprep.subr.bf16.mxu0 0
    %3806 = vmatpush2.bf16.msra.mxu0 0
    %3807 = vmatprep.mubr.bf16.mxu0 0
    %3808 = vmatmul.mubr.bf16.gmra.mxu0 %v3704
    %v3809 = vpop.f32.mrf.mxu0
    %v3810 = vadd.f32 %v3726, %v3809
    %v3811 = vpop.f32.mrf.mxu0
    %v3812 = vpop.f32.mrf.mxu0
    %v3813 = vpop.f32.mrf.mxu0
    %3814 = vmatprep.mubr.bf16.mxu0 0
    %3815 = vmatmul.mubr.bf16.gmra.mxu0 %v3705
    %v3816 = vpop.f32.mrf.mxu0
    %v3817 = vadd.f32 %v3726, %v3816
    %v3818 = vpop.f32.mrf.mxu0
    %v3819 = vpop.f32.mrf.mxu0
    %v3820 = vpop.f32.mrf.mxu0
    %3821 = vdwg.mxu0
    %v3822 = vadd.f32 %v3544, %v3810
    %v3823 = vadd.f32 %v3546, %v3817
    %v3824 = vld [vmem:[%s2304 + $0x8] sm:$0x1]
    %v3825 = vld [vmem:[%s2304 + $0x9] sm:$0x1]
    %3826 = vadd.xlane.f32.xlu0 %v3822
    %v3827 = vpop.xlane.xlu0 %3826
    %3828 = vadd.xlane.f32.xlu0 %v3823
    %v3829 = vpop.xlane.xlu0 %3828
    %v3830 = vmul.f32 %v3827, 0.03125
    %v3831 = vmul.f32 %v3829, 0.03125
    %v3832 = vsub.f32 %v3822, %v3830
    %v3833 = vsub.f32 %v3823, %v3831
    %v3834 = vmul.f32 %v3832, %v54
    %v3835 = vmul.f32 %v3833, %v54
    %v3836 = vmul.f32 %v3834, %v3834
    %v3837 = vmul.f32 %v3835, %v3835
    %3838 = vadd.xlane.f32.xlu0 %v3836
    %v3839 = vpop.xlane.xlu0 %3838
    %3840 = vadd.xlane.f32.xlu0 %v3837
    %v3841 = vpop.xlane.xlu0 %3840
    %v3842 = vmul.f32 %v3839, 0.03125
    %v3843 = vmul.f32 %v3841, 0.03125
    %v3844 = vadd.f32 %v3842, 1e-05
    %v3845 = vadd.f32 %v3843, 1e-05
    %v3846 = vrsqrt.pop %v3844
    %v3847 = vrsqrt.pop %v3845
    %v3848 = vmul.f32 %v3834, %v3846
    %v3849 = vmul.f32 %v3835, %v3847
    %v3850 = vlaneseq
    %v3851 = vshrl.u32 %v3850, 7
    %v3852 = vsub.s32 0, %v3851
    %v3853 = vrot.slane %v3824, %v3852
    %v3854 = vmul.f32 %v3848, %v3853
    %v3855 = vmul.f32 %v3849, %v3853
    %v3856 = vlaneseq
    %v3857 = vshrl.u32 %v3856, 7
    %v3858 = vsub.s32 0, %v3857
    %v3859 = vrot.slane %v3825, %v3858
    %v3860 = vadd.f32 %v3854, %v3859
    %v3861 = vadd.f32 %v3855, %v3859
    %v3862 = vpack.c.bf16 %v3860, %v3860
    %v3863 = vpack.c.bf16 %v3861, %v3861
    %v3864 = vld [vmem:[#allocation5 + $0x4] sm:$0xf]
    %v3865 = vld [vmem:[#allocation5 + $0x10] sm:$0xf]
    %v3866 = vld [vmem:[#allocation5 + $0x1c] sm:$0xf]
    %v3867 = vld [vmem:[#allocation5 + $0x28] sm:$0xf]
    %v3868 = vld [vmem:[#allocation5 + $0x34] sm:$0xf]
    %v3869 = vld [vmem:[#allocation5 + $0x40] sm:$0xf]
    %v3870 = vld [vmem:[#allocation5 + $0x4c] sm:$0xf]
    %v3871 = vld [vmem:[#allocation5 + $0x58] sm:$0xf]
    %v3872 = vld [vmem:[#allocation5 + $0x64] sm:$0xf]
    %v3873 = vld [vmem:[#allocation5 + $0x70] sm:$0xf]
    %v3874 = vld [vmem:[#allocation5 + $0x7c] sm:$0xf]
    %v3875 = vld [vmem:[#allocation5 + $0x88] sm:$0xf]
    %v3876 = vld [vmem:[#allocation5 + $0x94] sm:$0xf]
    %v3877 = vld [vmem:[#allocation5 + $0xa0] sm:$0xf]
    %v3878 = vld [vmem:[#allocation5 + $0xac] sm:$0xf]
    %v3879 = vld [vmem:[#allocation5 + $0xb8] sm:$0xf]
    %v3880 = vld [vmem:[%s4 + $0x2] sm:$0x1]
    %v3881 = vlaneseq
    %v3882 = vshrl.u32 %v3881, 7
    %v3883 = vsub.s32 0, %v3882
    %v3884 = vrot.slane %v3880, %v3883
    %v3887 = vunpack.c.l.b16 %v3862
    %v3888 = vunpack.c.l.b16 %v3863
    %v3889 = vrot.slane %v3888, 7
    %vm3890 = vcmask 1041409
    %v3891 = vsel %vm3890, %v3889, %v3887
    %v3892 = vpack.c.b16 %v3891, %v3891
    %v3910 = vunpack.c.l.b16 %v3864
    %v3911 = vunpack.c.l.b16 %v3865
    %v3912 = vunpack.c.l.b16 %v3866
    %v3913 = vunpack.c.l.b16 %v3867
    %v3914 = vunpack.c.l.b16 %v3868
    %v3915 = vunpack.c.l.b16 %v3869
    %v3916 = vunpack.c.l.b16 %v3870
    %v3917 = vunpack.c.l.b16 %v3871
    %v3918 = vunpack.c.l.b16 %v3872
    %v3919 = vunpack.c.l.b16 %v3873
    %v3920 = vunpack.c.l.b16 %v3874
    %v3921 = vunpack.c.l.b16 %v3875
    %v3922 = vunpack.c.l.b16 %v3876
    %v3923 = vunpack.c.l.b16 %v3877
    %v3924 = vunpack.c.l.b16 %v3878
    %v3925 = vunpack.c.l.b16 %v3879
    %v3926 = vpack.c.b16 %v3911, %v3910
    %v3927 = vpack.c.b16 %v3913, %v3912
    %v3928 = vpack.c.b16 %v3915, %v3914
    %v3929 = vpack.c.b16 %v3917, %v3916
    %v3930 = vpack.c.b16 %v3919, %v3918
    %v3931 = vpack.c.b16 %v3921, %v3920
    %v3932 = vpack.c.b16 %v3923, %v3922
    %v3933 = vpack.c.b16 %v3925, %v3924
    %3942 = vmatprep.subr.bf16.mxu0 0
    %3943 = vmatpush1.bf16.msra.mxu0 %v3933
    %3944 = vmatprep.subr.bf16.mxu0 0
    %3945 = vmatpush1.bf16.msra.mxu0 %v3932
    %3946 = vmatprep.subr.bf16.mxu0 0
    %3947 = vmatpush1.bf16.msra.mxu0 %v3931
    %3948 = vmatprep.subr.bf16.mxu0 0
    %3949 = vmatpush1.bf16.msra.mxu0 %v3930
    %3950 = vmatprep.subr.bf16.mxu0 0
    %3951 = vmatpush1.bf16.msra.mxu0 %v3929
    %3952 = vmatprep.subr.bf16.mxu0 0
    %3953 = vmatpush1.bf16.msra.mxu0 %v3928
    %3954 = vmatprep.subr.bf16.mxu0 0
    %3955 = vmatpush1.bf16.msra.mxu0 %v3927
    %3956 = vmatprep.subr.bf16.mxu0 0
    %3957 = vmatpush1.bf16.msra.mxu0 %v3926
    %3958 = vmatprep.subr.bf16.mxu0 0
    %3959 = vmatpush2.bf16.msra.mxu0 0
    %3960 = vmatprep.subr.bf16.mxu0 0
    %3961 = vmatpush2.bf16.msra.mxu0 0
    %3962 = vmatprep.subr.bf16.mxu0 0
    %3963 = vmatpush2.bf16.msra.mxu0 0
    %3964 = vmatprep.subr.bf16.mxu0 0
    %3965 = vmatpush2.bf16.msra.mxu0 0
    %3966 = vmatprep.subr.bf16.mxu0 0
    %3967 = vmatpush2.bf16.msra.mxu0 0
    %3968 = vmatprep.subr.bf16.mxu0 0
    %3969 = vmatpush2.bf16.msra.mxu0 0
    %3970 = vmatprep.subr.bf16.mxu0 0
    %3971 = vmatpush2.bf16.msra.mxu0 0
    %3972 = vmatprep.subr.bf16.mxu0 0
    %3973 = vmatpush2.bf16.msra.mxu0 0
    %3974 = vmatprep.mubr.bf16.mxu0 0
    %3975 = vmatmul.mubr.bf16.gmra.mxu0 %v3892
    %v3976 = vpop.f32.mrf.mxu0
    %v3977 = vadd.f32 %v3884, %v3976
    %v3978 = vpop.f32.mrf.mxu0
    %v3979 = vpop.f32.mrf.mxu0
    %v3980 = vpop.f32.mrf.mxu0
    %3981 = vdwg.mxu0
    %v3982 = vmax.f32 %v3977, 0.0
    %v3983 = vpack.c.bf16 %v3982, %v3982
    %v3984 = vld [vmem:[#allocation5 + $0x8] sm:$0xf]
    %v3985 = vld [vmem:[#allocation5 + $0x14] sm:$0xf]
    %v3986 = vld [vmem:[#allocation5 + $0x20] sm:$0xf]
    %v3987 = vld [vmem:[#allocation5 + $0x2c] sm:$0xf]
    %v3988 = vld [vmem:[#allocation5 + $0x38] sm:$0xf]
    %v3989 = vld [vmem:[#allocation5 + $0x44] sm:$0xf]
    %v3990 = vld [vmem:[#allocation5 + $0x50] sm:$0xf]
    %v3991 = vld [vmem:[#allocation5 + $0x5c] sm:$0xf]
    %v3992 = vld [vmem:[#allocation5 + $0x68] sm:$0xf]
    %v3993 = vld [vmem:[#allocation5 + $0x74] sm:$0xf]
    %v3994 = vld [vmem:[#allocation5 + $0x80] sm:$0xf]
    %v3995 = vld [vmem:[#allocation5 + $0x8c] sm:$0xf]
    %v3996 = vld [vmem:[#allocation5 + $0x98] sm:$0xf]
    %v3997 = vld [vmem:[#allocation5 + $0xa4] sm:$0xf]
    %v3998 = vld [vmem:[#allocation5 + $0xb0] sm:$0xf]
    %v3999 = vld [vmem:[#allocation5 + $0xbc] sm:$0xf]
    %v4000 = vld [vmem:[%s4 + $0x3] sm:$0x1]
    %v4001 = vlaneseq
    %v4002 = vshrl.u32 %v4001, 7
    %v4003 = vsub.s32 0, %v4002
    %v4004 = vrot.slane %v4000, %v4003
    %v4021 = vunpack.c.l.b16 %v3984
    %v4022 = vunpack.c.l.b16 %v3985
    %v4023 = vunpack.c.l.b16 %v3986
    %v4024 = vunpack.c.l.b16 %v3987
    %v4025 = vunpack.c.l.b16 %v3988
    %v4026 = vunpack.c.l.b16 %v3989
    %v4027 = vunpack.c.l.b16 %v3990
    %v4028 = vunpack.c.l.b16 %v3991
    %v4029 = vunpack.c.l.b16 %v3992
    %v4030 = vunpack.c.l.b16 %v3993
    %v4031 = vunpack.c.l.b16 %v3994
    %v4032 = vunpack.c.l.b16 %v3995
    %v4033 = vunpack.c.l.b16 %v3996
    %v4034 = vunpack.c.l.b16 %v3997
    %v4035 = vunpack.c.l.b16 %v3998
    %v4036 = vunpack.c.l.b16 %v3999
    %v4037 = vpack.c.b16 %v4022, %v4021
    %v4038 = vpack.c.b16 %v4024, %v4023
    %v4039 = vpack.c.b16 %v4026, %v4025
    %v4040 = vpack.c.b16 %v4028, %v4027
    %v4041 = vpack.c.b16 %v4030, %v4029
    %v4042 = vpack.c.b16 %v4032, %v4031
    %v4043 = vpack.c.b16 %v4034, %v4033
    %v4044 = vpack.c.b16 %v4036, %v4035
    %4053 = vmatprep.subr.bf16.mxu0 0
    %4054 = vmatpush1.bf16.msra.mxu0 %v4044
    %4055 = vmatprep.subr.bf16.mxu0 0
    %4056 = vmatpush1.bf16.msra.mxu0 %v4043
    %4057 = vmatprep.subr.bf16.mxu0 0
    %4058 = vmatpush1.bf16.msra.mxu0 %v4042
    %4059 = vmatprep.subr.bf16.mxu0 0
    %4060 = vmatpush1.bf16.msra.mxu0 %v4041
    %4061 = vmatprep.subr.bf16.mxu0 0
    %4062 = vmatpush1.bf16.msra.mxu0 %v4040
    %4063 = vmatprep.subr.bf16.mxu0 0
    %4064 = vmatpush1.bf16.msra.mxu0 %v4039
    %4065 = vmatprep.subr.bf16.mxu0 0
    %4066 = vmatpush1.bf16.msra.mxu0 %v4038
    %4067 = vmatprep.subr.bf16.mxu0 0
    %4068 = vmatpush1.bf16.msra.mxu0 %v4037
    %4069 = vmatprep.subr.bf16.mxu0 0
    %4070 = vmatpush2.bf16.msra.mxu0 0
    %4071 = vmatprep.subr.bf16.mxu0 0
    %4072 = vmatpush2.bf16.msra.mxu0 0
    %4073 = vmatprep.subr.bf16.mxu0 0
    %4074 = vmatpush2.bf16.msra.mxu0 0
    %4075 = vmatprep.subr.bf16.mxu0 0
    %4076 = vmatpush2.bf16.msra.mxu0 0
    %4077 = vmatprep.subr.bf16.mxu0 0
    %4078 = vmatpush2.bf16.msra.mxu0 0
    %4079 = vmatprep.subr.bf16.mxu0 0
    %4080 = vmatpush2.bf16.msra.mxu0 0
    %4081 = vmatprep.subr.bf16.mxu0 0
    %4082 = vmatpush2.bf16.msra.mxu0 0
    %4083 = vmatprep.subr.bf16.mxu0 0
    %4084 = vmatpush2.bf16.msra.mxu0 0
    %4085 = vmatprep.mubr.bf16.mxu0 0
    %4086 = vmatmul.mubr.bf16.gmra.mxu0 %v3983
    %v4087 = vpop.f32.mrf.mxu0
    %v4088 = vadd.f32 %v4004, %v4087
    %v4089 = vpop.f32.mrf.mxu0
    %v4090 = vpop.f32.mrf.mxu0
    %v4091 = vpop.f32.mrf.mxu0
    %4092 = vdwg.mxu0
    %4093 = vst [vmem:[#allocation7] sm:$0x3] %v4088
    // Predicated region
    $region30: #{tpu_custom_call.1} parent=1 // pred_check
      _
    $region31: #{tpu_custom_call.1} parent=1 // pred_check_branch
      %4095 = sbr.rel (0) target = $region33
    $region32: #{tpu_custom_call.1} parent=1 // pred_region
      %s4097 = ssub.s32 32, 32
      %4098 = vsyncadd [#allocation4], %s4097
      %s4100 = sshll.u32 [#allocation7], 4
      %s4101 = int_to_ptr.vmem [resolvable:$true] %s4100
      %4103 = dma.vmem_to_hbm [thread:$0]  %s4101, 32, %s5, [#allocation4]
    $region33: #{tpu_custom_call.1} parent=1 // pred_fallthru
      _
    // Predicated region
    $region34: #{tpu_custom_call.1} parent=1 // pred_check
      _
    $region35: #{tpu_custom_call.1} parent=1 // pred_check_branch
      %4105 = sbr.rel (0) target = $region37
    $region36: #{tpu_custom_call.1} parent=1 // pred_region
      %4106 = dma.done [#allocation4], 32
    $region37: #{tpu_custom_call.1} parent=1 // pred_fallthru
      _
    %4107 = vsyncpa [#allocation3], 1
    %4108 = vsyncpa [#allocation6], 1
    %4109 = vsyncpa [#allocation4], 1

</llo_original>
